<compile_context>
chip_gen: v7x
topology: tpu7x:2x2x1
jax: 0.10.0
libtpu: 0.0.40
codegen_flags: <defaults>
</compile_context>

<pallas_src>
import jax
import jax.numpy as jnp
from jax.experimental import pallas as pl
from jax.experimental.pallas import tpu as pltpu

_BN_EPS = 1e-5
_VMEM_LIMIT = 32 * 1024 * 1024   # explicit scoped-VMEM budget (fits v5e/v6e/v7x)


def _hardswish(x):
    return x * jnp.clip(x + 3.0, 0.0, 6.0) * (1.0 / 6.0)


def _mm_small(x, w):
    """x:(N,K) @ w:(K,M), f32.  For the tiny channel counts in this module the MXU
    would be >90% idle, so unroll a VPU multiply-accumulate over K; fall back to
    the MXU (jnp.dot) for larger channel counts."""
    k_dim, m_dim = w.shape
    if k_dim <= 32 and m_dim <= 128:
        acc = x[:, 0:1] * w[0:1, :]
        for k in range(1, k_dim):
            acc = acc + x[:, k:k + 1] * w[k:k + 1, :]
        return acc
    return jnp.dot(x, w, preferred_element_type=jnp.float32)


def _const_zero_map(ndim):
    def index_map(*_):
        return (0,) * ndim
    return index_map


# ----------------------------- down-sample kernel -----------------------------

def _make_down_kernel(c):
    def kernel(x_ref, w_ref, s_ref, b_ref, o_ref):
        # x_ref: (1, th, 2, Wo, 2*C) -- free view of the NHWC input; the 2x2 stride-2
        # taps are extracted here with static slices (no HBM rearrange in the wrapper).
        x = x_ref[0].astype(jnp.float32)                  # (th, 2, Wo, 2C)
        th, _, wo, _ = x.shape
        acc = jnp.zeros((th, wo, c), jnp.float32)
        for di in range(2):
            xd = x[:, di]                                 # (th, Wo, 2C)
            for dj in range(2):
                tap = xd[:, :, dj * c:(dj + 1) * c]       # (th, Wo, C)
                wv = w_ref[di, dj:dj + 1, :].astype(jnp.float32)   # (1, C)
                acc = acc + tap * wv
        y = acc * s_ref[...] + b_ref[...]                 # folded BN (inference)
        o_ref[0] = _hardswish(y).astype(o_ref.dtype)
    return kernel


def _row_tile(ho):
    # prefer >=2 row tiles so the pipeline has more than B steps (and v7x's two
    # TensorCores both get work under "parallel" semantics).
    for t in (32, 16, 8, 4, 2, 1):
        if ho % t == 0 and ho // t >= 2:
            return t
    return ho


def _conv_bn_hs_down(x, p):
    """ConvBnHs(ci->ci, k=2, g=ci, p=0, s=2): depthwise 2x2 stride-2 + BN + hardswish."""
    B, H, W, C = x.shape
    assert H % 2 == 0 and W % 2 == 0
    Ho, Wo = H // 2, W // 2
    th = _row_tile(Ho)
    # Free (no data movement) view: (B, H, W, C) -> (B, Ho, 2, Wo, 2*C)
    xv = x.reshape(B, Ho, 2, Wo, 2 * C)
    return pl.pallas_call(
        _make_down_kernel(C),
        out_shape=jax.ShapeDtypeStruct((B, Ho, Wo, C), x.dtype),
        grid=(B, Ho // th),
        in_specs=[
            pl.BlockSpec((1, th, 2, Wo, 2 * C), lambda b, i: (b, i, 0, 0, 0)),
            pl.BlockSpec((2, 2, C), lambda b, i: (0, 0, 0)),
            pl.BlockSpec((1, C), lambda b, i: (0, 0)),
            pl.BlockSpec((1, C), lambda b, i: (0, 0)),
        ],
        out_specs=pl.BlockSpec((1, th, Wo, C), lambda b, i: (b, i, 0, 0)),
        compiler_params=pltpu.CompilerParams(
            dimension_semantics=("parallel", "parallel"),
            vmem_limit_bytes=_VMEM_LIMIT),
    )(xv, p["w"], p["scale"], p["bias"])


# ----------------------------- fused InvResBlock kernel -----------------------------

def _make_block_kernel(H, W, expand, squeeze, use_res):
    HW = H * W

    def kernel(*refs):
        it = iter(refs)
        x_ref = next(it)
        if expand:
            w_exp, s_exp, b_exp = next(it), next(it), next(it)
        w_dw, s_dw, b_dw = next(it), next(it), next(it)
        if squeeze:
            w_se1t, b_se1, w_se2, b_se2 = next(it), next(it), next(it), next(it)
        w_proj, s_proj, b_proj = next(it), next(it), next(it)
        o_ref = next(it)
        pad_ref = next(it)

        x2 = x_ref[0].astype(jnp.float32)                       # (H*W, Cin)

        # ---- expand 1x1 + folded BN + hardswish (stays in VMEM) ----
        if expand:
            h = _mm_small(x2, w_exp[...].astype(jnp.float32))
            h = _hardswish(h * s_exp[...] + b_exp[...])          # (H*W, Cm)
        else:
            h = x2
        cm = h.shape[1]

        # ---- depthwise 3x3, padding=1: halo lives only in the VMEM scratch ----
        # interior stored at column offset 8 so the store stays sublane-aligned;
        # halo column 7 / column 8+W and halo rows 0 / H+1 stay zero.
        pad_ref[...] = jnp.zeros(pad_ref.shape, pad_ref.dtype)
        pad_ref[1:H + 1, 8:8 + W, :] = h.reshape(H, W, cm)
        acc = jnp.zeros((H, W, cm), jnp.float32)
        for di in range(3):
            for dj in range(3):
                patch = pad_ref[di:di + H, 7 + dj:7 + dj + W, :]
                acc = acc + patch * w_dw[di, dj:dj + 1, :].astype(jnp.float32)
        hd = _hardswish(acc * s_dw[...] + b_dw[...]).reshape(HW, cm)

        # ---- squeeze-excite (VPU broadcast/reduce; fused -> no HBM round trip) ----
        if squeeze:
            m = jnp.mean(hd, axis=0, keepdims=True)              # (1, Cm)
            a1 = jnp.sum(w_se1t[...].astype(jnp.float32) * m, axis=1,
                         keepdims=True) + b_se1[...]             # (Cse, 1)
            a1 = jnp.maximum(a1, 0.0)
            gate = jnp.sum(w_se2[...].astype(jnp.float32) * a1, axis=0,
                           keepdims=True) + b_se2[...]           # (1, Cm)
            gate = jnp.clip(gate + 3.0, 0.0, 6.0) * (1.0 / 6.0)  # hard-sigmoid
            hd = hd * gate

        # ---- project 1x1 + folded BN (+ residual) ----
        y = _mm_small(hd, w_proj[...].astype(jnp.float32))
        y = y * s_proj[...] + b_proj[...]
        if use_res:
            y = y + x2
        o_ref[0] = y.astype(o_ref.dtype)

    return kernel


def _inv_res_block(x2, p, H, W):
    """Fused InvResBlock; x2 is the activation viewed as (B, H*W, Cin)."""
    B, N, cin = x2.shape
    cm = p["w_dw"].shape[2]
    cout = p["w_proj"].shape[1]
    expand, squeeze, use_res = p["expand"], p["squeeze"], p["use_res"]

    args = [x2]
    specs = [pl.BlockSpec((1, N, cin), lambda b: (b, 0, 0))]

    def add_full(a):
        args.append(a)
        specs.append(pl.BlockSpec(a.shape, _const_zero_map(a.ndim)))

    if expand:
        add_full(p["w_exp"]); add_full(p["s_exp"]); add_full(p["b_exp"])
    add_full(p["w_dw"]); add_full(p["s_dw"]); add_full(p["b_dw"])
    if squeeze:
        add_full(p["w_se1t"]); add_full(p["b_se1"])
        add_full(p["w_se2"]); add_full(p["b_se2"])
    add_full(p["w_proj"]); add_full(p["s_proj"]); add_full(p["b_proj"])

    # TODO(synk): for large post-downsample H*W (VMEM pressure on v7x's 64 MiB), add a
    # row-tile grid axis with a 1-row halo exchange; activations here are tiny.
    return pl.pallas_call(
        _make_block_kernel(H, W, expand, squeeze, use_res),
        out_shape=jax.ShapeDtypeStruct((B, N, cout), x2.dtype),
        grid=(B,),
        in_specs=specs,
        out_specs=pl.BlockSpec((1, N, cout), lambda b: (b, 0, 0)),
        scratch_shapes=[pltpu.VMEM((H + 2, W + 16, cm), jnp.float32)],
        compiler_params=pltpu.CompilerParams(
            dimension_semantics=("parallel",),
            vmem_limit_bytes=_VMEM_LIMIT),
    )(*args)


# ----------------------------- forward -----------------------------

def down_forward(fparams, x_nchw):
    x = jnp.transpose(x_nchw, (0, 2, 3, 1))            # NCHW -> NHWC (boundary only)
    x = _conv_bn_hs_down(x, fparams["down"])           # self.down
    B, Ho, Wo, C = x.shape
    h = x.reshape(B, Ho * Wo, C)                       # free view; channels stay minor
    for bp in fparams["blocks"]:                       # self.res (rep_res)
        h = _inv_res_block(h, bp, Ho, Wo)
    return jnp.transpose(h.reshape(B, Ho, Wo, h.shape[-1]), (0, 3, 1, 2))


# ----------------------------- parameters -----------------------------

def _init_bn(key, c):
    k1, k2, k3, k4 = jax.random.split(key, 4)
    return dict(
        gamma=jax.random.uniform(k1, (c,), jnp.float32, 0.5, 1.5),
        beta=0.1 * jax.random.normal(k2, (c,), jnp.float32),
        mean=0.1 * jax.random.normal(k3, (c,), jnp.float32),
        var=jax.random.uniform(k4, (c,), jnp.float32, 0.5, 1.5),
    )


def init_down_params(key, ci, co, ri, ex, sq, n):
    r = max(1, ri // 2)              # rep_res passes r = ri // 2 as expansion ratio
    keys = jax.random.split(key, 2 + n)
    down = dict(
        w=0.3 * jax.random.normal(keys[0], (2, 2, ci), jnp.float32),
        bn=_init_bn(keys[1], ci),
    )
    blocks = []
    for idx in range(n):
        cin = ci if idx == 0 else co
        cm = cin * r if ex else cin
        bk = jax.random.split(keys[2 + idx], 8)
        blk_p = dict(expand=ex, squeeze=sq, use_res=(cin == co))
        if ex:
            blk_p["w_exp"] = 0.3 * jax.random.normal(bk[0], (cin, cm), jnp.float32)
            blk_p["bn_exp"] = _init_bn(bk[1], cm)
        blk_p["w_dw"] = 0.3 * jax.random.normal(bk[2], (3, 3, cm), jnp.float32)
        blk_p["bn_dw"] = _init_bn(bk[3], cm)
        if sq:
            cse = max(4, cm // 4)
            blk_p["w_se1"] = 0.3 * jax.random.normal(bk[4], (cm, cse), jnp.float32)
            blk_p["b_se1"] = jnp.zeros((1, cse), jnp.float32)
            blk_p["w_se2"] = 0.3 * jax.random.normal(bk[5], (cse, cm), jnp.float32)
            blk_p["b_se2"] = jnp.zeros((1, cm), jnp.float32)
        blk_p["w_proj"] = 0.3 * jax.random.normal(bk[6], (cm, co), jnp.float32)
        blk_p["bn_proj"] = _init_bn(bk[7], co)
        blocks.append(blk_p)
    return dict(down=down, blocks=blocks)


def fold_params(params):
    """Hoisted, one-time parameter preparation: fold BN into scale/bias, transpose the
    first SE weight, reshape biases — so the forward path only DMAs ready-to-use
    tensors."""
    def fold_bn(bn):
        scale = bn["gamma"] / jnp.sqrt(bn["var"] + _BN_EPS)
        bias = bn["beta"] - bn["mean"] * scale
        return (scale.reshape(1, -1).astype(jnp.float32),
                bias.reshape(1, -1).astype(jnp.float32))

    d = params["down"]
    s, b = fold_bn(d["bn"])
    out = {"down": {"w": d["w"].astype(jnp.float32), "scale": s, "bias": b},
           "blocks": []}
    for bp in params["blocks"]:
        fb = {"expand": bp["expand"], "squeeze": bp["squeeze"], "use_res": bp["use_res"]}
        if bp["expand"]:
            fb["w_exp"] = bp["w_exp"].astype(jnp.float32)
            fb["s_exp"], fb["b_exp"] = fold_bn(bp["bn_exp"])
        fb["w_dw"] = bp["w_dw"].astype(jnp.float32)
        fb["s_dw"], fb["b_dw"] = fold_bn(bp["bn_dw"])
        if bp["squeeze"]:
            fb["w_se1t"] = bp["w_se1"].T.astype(jnp.float32)          # (Cse, Cm)
            fb["b_se1"] = bp["b_se1"].reshape(-1, 1).astype(jnp.float32)   # (Cse, 1)
            fb["w_se2"] = bp["w_se2"].astype(jnp.float32)             # (Cse, Cm)
            fb["b_se2"] = bp["b_se2"].reshape(1, -1).astype(jnp.float32)
        fb["w_proj"] = bp["w_proj"].astype(jnp.float32)
        fb["s_proj"], fb["b_proj"] = fold_bn(bp["bn_proj"])
        out["blocks"].append(fb)
    return out


# ----------------------------- pure-JAX reference -----------------------------

def _ref_forward(fparams, x_nchw):
    P = jax.lax.Precision.HIGHEST
    x = jnp.transpose(x_nchw, (0, 2, 3, 1)).astype(jnp.float32)
    d = fparams["down"]
    B, H, W, C = x.shape
    xp = x.reshape(B, H // 2, 2, W // 2, 2, C)
    h = jnp.einsum("bhiwjc,ijc->bhwc", xp, d["w"], precision=P)
    h = _hardswish(h * d["scale"].reshape(1, 1, 1, -1) + d["bias"].reshape(1, 1, 1, -1))
    for p in fparams["blocks"]:
        xin = h
        if p["expand"]:
            h = jnp.einsum("bhwc,cd->bhwd", h, p["w_exp"], precision=P)
            h = _hardswish(h * p["s_exp"].reshape(1, 1, 1, -1)
                           + p["b_exp"].reshape(1, 1, 1, -1))
        hp = jnp.pad(h, ((0, 0), (1, 1), (1, 1), (0, 0)))
        hh, ww = h.shape[1], h.shape[2]
        acc = jnp.zeros_like(h)
        for di in range(3):
            for dj in range(3):
                acc = acc + (hp[:, di:di + hh, dj:dj + ww, :]
                             * p["w_dw"][di, dj].reshape(1, 1, 1, -1))
        h = _hardswish(acc * p["s_dw"].reshape(1, 1, 1, -1) + p["b_dw"].reshape(1, 1, 1, -1))
        if p["squeeze"]:
            m = jnp.mean(h, axis=(1, 2), keepdims=True)
            a1 = jnp.maximum(jnp.einsum("bijc,sc->bijs", m, p["w_se1t"], precision=P)
                             + p["b_se1"].reshape(1, 1, 1, -1), 0.0)
            g = (jnp.einsum("bijs,sc->bijc", a1, p["w_se2"], precision=P)
                 + p["b_se2"].reshape(1, 1, 1, -1))
            g = jnp.clip(g + 3.0, 0.0, 6.0) * (1.0 / 6.0)
            h = h * g
        h = jnp.einsum("bhwc,cd->bhwd", h, p["w_proj"], precision=P)
        h = h * p["s_proj"].reshape(1, 1, 1, -1) + p["b_proj"].reshape(1, 1, 1, -1)
        if p["use_res"]:
            h = h + xin
    return jnp.transpose(h, (0, 3, 1, 2))


if __name__ == "__main__":
    key = jax.random.PRNGKey(0)
    kx, kp = jax.random.split(key)
    B, CI, H, W = 2, 4, 16, 16
    CO, RI, N_BLOCKS = 8, 4, 2
    x = jax.random.normal(kx, (B, CI, H, W), jnp.float32)        # NCHW like PyTorch
    raw_params = init_down_params(kp, ci=CI, co=CO, ri=RI, ex=True, sq=True, n=N_BLOCKS)
    fparams = fold_params(raw_params)                            # BN folded once

    fwd = jax.jit(lambda inp: down_forward(fparams, inp))
    y = fwd(x)
    jax.block_until_ready(y)

    assert y.shape == (B, CO, H // 2, W // 2), y.shape
    assert bool(jnp.all(jnp.isfinite(y)))

    y_ref = _ref_forward(fparams, x)
    err = float(jnp.max(jnp.abs(y - y_ref)))
    tol = 5e-3 * (1.0 + float(jnp.max(jnp.abs(y_ref))))
    assert err < tol, (err, tol)
    print("KERNEL_OK")
</pallas_src>

<mosaic_0001>
module attributes {stable_mosaic.version = 11 : i64} {
  func.func @kernel(%arg0: i32, %arg1: i32, %arg2: memref<1x4x2x8x8xf32, #tpu.memory_space<vmem>>, %arg3: memref<2x2x4xf32, #tpu.memory_space<vmem>>, %arg4: memref<1x4xf32, #tpu.memory_space<vmem>>, %arg5: memref<1x4xf32, #tpu.memory_space<vmem>>, %arg6: memref<1x4x8x4xf32, #tpu.memory_space<vmem>>) attributes {dimension_semantics = [#tpu.dimension_semantics<parallel>, #tpu.dimension_semantics<parallel>], iteration_bounds = array<i64: 2, 2>, scalar_prefetch = 0 : i64, scratch_operands = 0 : i64, tpu.core_type = #tpu.core_type<tc>, window_params = [{transform_indices = @transform_0, window_bounds = array<i64: 1, 4, 2, 8, 8>}, {pipeline_mode = #tpu.pipeline_mode<synchronous>, transform_indices = @transform_1, window_bounds = array<i64: 2, 2, 4>}, {pipeline_mode = #tpu.pipeline_mode<synchronous>, transform_indices = @transform_2, window_bounds = array<i64: 1, 4>}, {pipeline_mode = #tpu.pipeline_mode<synchronous>, transform_indices = @transform_3, window_bounds = array<i64: 1, 4>}, {transform_indices = @transform_4, window_bounds = array<i64: 1, 4, 8, 4>}]} {
    %c0 = arith.constant 0 : index
    %c0_0 = arith.constant 0 : index
    %c0_1 = arith.constant 0 : index
    %c0_2 = arith.constant 0 : index
    %c0_3 = arith.constant 0 : index
    %0 = vector.load %arg2[%c0, %c0_0, %c0_1, %c0_2, %c0_3] : memref<1x4x2x8x8xf32, #tpu.memory_space<vmem>>, vector<1x4x2x8x8xf32>
    %1 = vector.shape_cast %0 : vector<1x4x2x8x8xf32> to vector<4x2x8x8xf32>
    %cst = arith.constant 0.000000e+00 : f32
    %2 = vector.broadcast %cst : f32 to vector<4x8x4xf32>
    %3 = vector.extract_strided_slice %1 {offsets = [0, 0, 0, 0], sizes = [4, 1, 8, 8], strides = [1, 1, 1, 1]} : vector<4x2x8x8xf32> to vector<4x1x8x8xf32>
    %4 = vector.shape_cast %3 : vector<4x1x8x8xf32> to vector<4x8x8xf32>
    %5 = vector.extract_strided_slice %4 {offsets = [0, 0, 0], sizes = [4, 8, 4], strides = [1, 1, 1]} : vector<4x8x8xf32> to vector<4x8x4xf32>
    %c0_4 = arith.constant 0 : index
    %c0_5 = arith.constant 0 : index
    %c0_6 = arith.constant 0 : index
    %6 = vector.load %arg3[%c0_4, %c0_5, %c0_6] : memref<2x2x4xf32, #tpu.memory_space<vmem>>, vector<1x1x4xf32>
    %7 = vector.shape_cast %6 : vector<1x1x4xf32> to vector<1x4xf32>
    %8 = vector.shape_cast %7 : vector<1x4xf32> to vector<1x1x4xf32>
    %9 = vector.broadcast %8 : vector<1x1x4xf32> to vector<4x8x4xf32>
    %10 = arith.mulf %5, %9 : vector<4x8x4xf32>
    %11 = arith.addf %2, %10 : vector<4x8x4xf32>
    %12 = vector.extract_strided_slice %4 {offsets = [0, 0, 4], sizes = [4, 8, 4], strides = [1, 1, 1]} : vector<4x8x8xf32> to vector<4x8x4xf32>
    %c0_7 = arith.constant 0 : index
    %c1 = arith.constant 1 : index
    %c0_8 = arith.constant 0 : index
    %13 = vector.load %arg3[%c0_7, %c1, %c0_8] : memref<2x2x4xf32, #tpu.memory_space<vmem>>, vector<1x1x4xf32>
    %14 = vector.shape_cast %13 : vector<1x1x4xf32> to vector<1x4xf32>
    %15 = vector.shape_cast %14 : vector<1x4xf32> to vector<1x1x4xf32>
    %16 = vector.broadcast %15 : vector<1x1x4xf32> to vector<4x8x4xf32>
    %17 = arith.mulf %12, %16 : vector<4x8x4xf32>
    %18 = arith.addf %11, %17 : vector<4x8x4xf32>
    %19 = vector.extract_strided_slice %1 {offsets = [0, 1, 0, 0], sizes = [4, 1, 8, 8], strides = [1, 1, 1, 1]} : vector<4x2x8x8xf32> to vector<4x1x8x8xf32>
    %20 = vector.shape_cast %19 : vector<4x1x8x8xf32> to vector<4x8x8xf32>
    %21 = vector.extract_strided_slice %20 {offsets = [0, 0, 0], sizes = [4, 8, 4], strides = [1, 1, 1]} : vector<4x8x8xf32> to vector<4x8x4xf32>
    %c1_9 = arith.constant 1 : index
    %c0_10 = arith.constant 0 : index
    %c0_11 = arith.constant 0 : index
    %22 = vector.load %arg3[%c1_9, %c0_10, %c0_11] : memref<2x2x4xf32, #tpu.memory_space<vmem>>, vector<1x1x4xf32>
    %23 = vector.shape_cast %22 : vector<1x1x4xf32> to vector<1x4xf32>
    %24 = vector.shape_cast %23 : vector<1x4xf32> to vector<1x1x4xf32>
    %25 = vector.broadcast %24 : vector<1x1x4xf32> to vector<4x8x4xf32>
    %26 = arith.mulf %21, %25 : vector<4x8x4xf32>
    %27 = arith.addf %18, %26 : vector<4x8x4xf32>
    %28 = vector.extract_strided_slice %20 {offsets = [0, 0, 4], sizes = [4, 8, 4], strides = [1, 1, 1]} : vector<4x8x8xf32> to vector<4x8x4xf32>
    %c1_12 = arith.constant 1 : index
    %c1_13 = arith.constant 1 : index
    %c0_14 = arith.constant 0 : index
    %29 = vector.load %arg3[%c1_12, %c1_13, %c0_14] : memref<2x2x4xf32, #tpu.memory_space<vmem>>, vector<1x1x4xf32>
    %30 = vector.shape_cast %29 : vector<1x1x4xf32> to vector<1x4xf32>
    %31 = vector.shape_cast %30 : vector<1x4xf32> to vector<1x1x4xf32>
    %32 = vector.broadcast %31 : vector<1x1x4xf32> to vector<4x8x4xf32>
    %33 = arith.mulf %28, %32 : vector<4x8x4xf32>
    %34 = arith.addf %27, %33 : vector<4x8x4xf32>
    %c0_15 = arith.constant 0 : index
    %c0_16 = arith.constant 0 : index
    %35 = vector.load %arg4[%c0_15, %c0_16] : memref<1x4xf32, #tpu.memory_space<vmem>>, vector<1x4xf32>
    %36 = vector.shape_cast %35 : vector<1x4xf32> to vector<1x1x4xf32>
    %37 = vector.broadcast %36 : vector<1x1x4xf32> to vector<4x8x4xf32>
    %38 = arith.mulf %34, %37 : vector<4x8x4xf32>
    %c0_17 = arith.constant 0 : index
    %c0_18 = arith.constant 0 : index
    %39 = vector.load %arg5[%c0_17, %c0_18] : memref<1x4xf32, #tpu.memory_space<vmem>>, vector<1x4xf32>
    %40 = vector.shape_cast %39 : vector<1x4xf32> to vector<1x1x4xf32>
    %41 = vector.broadcast %40 : vector<1x1x4xf32> to vector<4x8x4xf32>
    %42 = arith.addf %38, %41 : vector<4x8x4xf32>
    %cst_19 = arith.constant 3.000000e+00 : f32
    %43 = vector.broadcast %cst_19 : f32 to vector<4x8x4xf32>
    %44 = arith.addf %42, %43 : vector<4x8x4xf32>
    %cst_20 = arith.constant 0.000000e+00 : f32
    %cst_21 = arith.constant 6.000000e+00 : f32
    %45 = vector.broadcast %cst_20 : f32 to vector<4x8x4xf32>
    %46 = arith.maximumf %45, %44 : vector<4x8x4xf32>
    %47 = vector.broadcast %cst_21 : f32 to vector<4x8x4xf32>
    %48 = arith.minimumf %47, %46 : vector<4x8x4xf32>
    %49 = arith.mulf %42, %48 : vector<4x8x4xf32>
    %cst_22 = arith.constant 0.166666672 : f32
    %50 = vector.broadcast %cst_22 : f32 to vector<4x8x4xf32>
    %51 = arith.mulf %49, %50 : vector<4x8x4xf32>
    %c0_23 = arith.constant 0 : index
    %c0_24 = arith.constant 0 : index
    %c0_25 = arith.constant 0 : index
    %c0_26 = arith.constant 0 : index
    %52 = vector.load %arg6[%c0_23, %c0_24, %c0_25, %c0_26] : memref<1x4x8x4xf32, #tpu.memory_space<vmem>>, vector<1x4x8x4xf32>
    %53 = vector.shape_cast %52 : vector<1x4x8x4xf32> to vector<4x8x4xf32>
    %54 = vector.shape_cast %51 : vector<4x8x4xf32> to vector<1x4x8x4xf32>
    tpu.vector_store %arg6[%c0_23, %c0_24, %c0_25, %c0_26], %54 {strides = array<i32>} : memref<1x4x8x4xf32, #tpu.memory_space<vmem>>, vector<1x4x8x4xf32>,
    return
  }
  func.func @transform_0(%arg0: i32, %arg1: i32) -> (i32, i32, i32, i32, i32) {
    %c0_i32 = arith.constant 0 : i32
    %c0_i32_0 = arith.constant 0 : i32
    %c0_i32_1 = arith.constant 0 : i32
    %c0_i32_2 = arith.constant 0 : i32
    return %arg0, %arg1, %c0_i32, %c0_i32_0, %c0_i32_1 : i32, i32, i32, i32, i32
  }
  func.func @transform_1(%arg0: i32, %arg1: i32) -> (i32, i32, i32) {
    %c0_i32 = arith.constant 0 : i32
    %c0_i32_0 = arith.constant 0 : i32
    %c0_i32_1 = arith.constant 0 : i32
    %c0_i32_2 = arith.constant 0 : i32
    return %c0_i32, %c0_i32_0, %c0_i32_1 : i32, i32, i32
  }
  func.func @transform_2(%arg0: i32, %arg1: i32) -> (i32, i32) {
    %c0_i32 = arith.constant 0 : i32
    %c0_i32_0 = arith.constant 0 : i32
    %c0_i32_1 = arith.constant 0 : i32
    return %c0_i32, %c0_i32_0 : i32, i32
  }
  func.func @transform_3(%arg0: i32, %arg1: i32) -> (i32, i32) {
    %c0_i32 = arith.constant 0 : i32
    %c0_i32_0 = arith.constant 0 : i32
    %c0_i32_1 = arith.constant 0 : i32
    return %c0_i32, %c0_i32_0 : i32, i32
  }
  func.func @transform_4(%arg0: i32, %arg1: i32) -> (i32, i32, i32, i32) {
    %c0_i32 = arith.constant 0 : i32
    %c0_i32_0 = arith.constant 0 : i32
    %c0_i32_1 = arith.constant 0 : i32
    return %arg0, %arg1, %c0_i32, %c0_i32_0 : i32, i32, i32, i32
  }
}

module attributes {stable_mosaic.version = 11 : i64} {
  func.func @kernel(%arg0: i32, %arg1: memref<1x64x4xf32, #tpu.memory_space<vmem>>, %arg2: memref<4x8xf32, #tpu.memory_space<vmem>>, %arg3: memref<1x8xf32, #tpu.memory_space<vmem>>, %arg4: memref<1x8xf32, #tpu.memory_space<vmem>>, %arg5: memref<3x3x8xf32, #tpu.memory_space<vmem>>, %arg6: memref<1x8xf32, #tpu.memory_space<vmem>>, %arg7: memref<1x8xf32, #tpu.memory_space<vmem>>, %arg8: memref<4x8xf32, #tpu.memory_space<vmem>>, %arg9: memref<4x1xf32, #tpu.memory_space<vmem>>, %arg10: memref<4x8xf32, #tpu.memory_space<vmem>>, %arg11: memref<1x8xf32, #tpu.memory_space<vmem>>, %arg12: memref<8x8xf32, #tpu.memory_space<vmem>>, %arg13: memref<1x8xf32, #tpu.memory_space<vmem>>, %arg14: memref<1x8xf32, #tpu.memory_space<vmem>>, %arg15: memref<1x64x8xf32, #tpu.memory_space<vmem>>, %arg16: memref<10x24x8xf32, #tpu.memory_space<vmem>>) attributes {dimension_semantics = [#tpu.dimension_semantics<parallel>], iteration_bounds = array<i64: 2>, scalar_prefetch = 0 : i64, scratch_operands = 1 : i64, tpu.core_type = #tpu.core_type<tc>, window_params = [{transform_indices = @transform_0, window_bounds = array<i64: 1, 64, 4>}, {pipeline_mode = #tpu.pipeline_mode<synchronous>, transform_indices = @transform_1, window_bounds = array<i64: 4, 8>}, {pipeline_mode = #tpu.pipeline_mode<synchronous>, transform_indices = @transform_2, window_bounds = array<i64: 1, 8>}, {pipeline_mode = #tpu.pipeline_mode<synchronous>, transform_indices = @transform_3, window_bounds = array<i64: 1, 8>}, {pipeline_mode = #tpu.pipeline_mode<synchronous>, transform_indices = @transform_4, window_bounds = array<i64: 3, 3, 8>}, {pipeline_mode = #tpu.pipeline_mode<synchronous>, transform_indices = @transform_5, window_bounds = array<i64: 1, 8>}, {pipeline_mode = #tpu.pipeline_mode<synchronous>, transform_indices = @transform_6, window_bounds = array<i64: 1, 8>}, {pipeline_mode = #tpu.pipeline_mode<synchronous>, transform_indices = @transform_7, window_bounds = array<i64: 4, 8>}, {pipeline_mode = #tpu.pipeline_mode<synchronous>, transform_indices = @transform_8, window_bounds = array<i64: 4, 1>}, {pipeline_mode = #tpu.pipeline_mode<synchronous>, transform_indices = @transform_9, window_bounds = array<i64: 4, 8>}, {pipeline_mode = #tpu.pipeline_mode<synchronous>, transform_indices = @transform_10, window_bounds = array<i64: 1, 8>}, {pipeline_mode = #tpu.pipeline_mode<synchronous>, transform_indices = @transform_11, window_bounds = array<i64: 8, 8>}, {pipeline_mode = #tpu.pipeline_mode<synchronous>, transform_indices = @transform_12, window_bounds = array<i64: 1, 8>}, {pipeline_mode = #tpu.pipeline_mode<synchronous>, transform_indices = @transform_13, window_bounds = array<i64: 1, 8>}, {transform_indices = @transform_14, window_bounds = array<i64: 1, 64, 8>}]} {
    %c0 = arith.constant 0 : index
    %c0_0 = arith.constant 0 : index
    %c0_1 = arith.constant 0 : index
    %0 = vector.load %arg1[%c0, %c0_0, %c0_1] : memref<1x64x4xf32, #tpu.memory_space<vmem>>, vector<1x64x4xf32>
    %1 = vector.shape_cast %0 : vector<1x64x4xf32> to vector<64x4xf32>
    %c0_2 = arith.constant 0 : index
    %c0_3 = arith.constant 0 : index
    %2 = vector.load %arg2[%c0_2, %c0_3] : memref<4x8xf32, #tpu.memory_space<vmem>>, vector<4x8xf32>
    %3 = vector.extract_strided_slice %1 {offsets = [0, 0], sizes = [64, 1], strides = [1, 1]} : vector<64x4xf32> to vector<64x1xf32>
    %4 = vector.extract_strided_slice %2 {offsets = [0, 0], sizes = [1, 8], strides = [1, 1]} : vector<4x8xf32> to vector<1x8xf32>
    %5 = vector.broadcast %3 : vector<64x1xf32> to vector<64x8xf32>
    %6 = vector.broadcast %4 : vector<1x8xf32> to vector<64x8xf32>
    %7 = arith.mulf %5, %6 : vector<64x8xf32>
    %8 = vector.extract_strided_slice %1 {offsets = [0, 1], sizes = [64, 1], strides = [1, 1]} : vector<64x4xf32> to vector<64x1xf32>
    %9 = vector.extract_strided_slice %2 {offsets = [1, 0], sizes = [1, 8], strides = [1, 1]} : vector<4x8xf32> to vector<1x8xf32>
    %10 = vector.broadcast %8 : vector<64x1xf32> to vector<64x8xf32>
    %11 = vector.broadcast %9 : vector<1x8xf32> to vector<64x8xf32>
    %12 = arith.mulf %10, %11 : vector<64x8xf32>
    %13 = arith.addf %7, %12 : vector<64x8xf32>
    %14 = vector.extract_strided_slice %1 {offsets = [0, 2], sizes = [64, 1], strides = [1, 1]} : vector<64x4xf32> to vector<64x1xf32>
    %15 = vector.extract_strided_slice %2 {offsets = [2, 0], sizes = [1, 8], strides = [1, 1]} : vector<4x8xf32> to vector<1x8xf32>
    %16 = vector.broadcast %14 : vector<64x1xf32> to vector<64x8xf32>
    %17 = vector.broadcast %15 : vector<1x8xf32> to vector<64x8xf32>
    %18 = arith.mulf %16, %17 : vector<64x8xf32>
    %19 = arith.addf %13, %18 : vector<64x8xf32>
    %20 = vector.extract_strided_slice %1 {offsets = [0, 3], sizes = [64, 1], strides = [1, 1]} : vector<64x4xf32> to vector<64x1xf32>
    %21 = vector.extract_strided_slice %2 {offsets = [3, 0], sizes = [1, 8], strides = [1, 1]} : vector<4x8xf32> to vector<1x8xf32>
    %22 = vector.broadcast %20 : vector<64x1xf32> to vector<64x8xf32>
    %23 = vector.broadcast %21 : vector<1x8xf32> to vector<64x8xf32>
    %24 = arith.mulf %22, %23 : vector<64x8xf32>
    %25 = arith.addf %19, %24 : vector<64x8xf32>
    %c0_4 = arith.constant 0 : index
    %c0_5 = arith.constant 0 : index
    %26 = vector.load %arg3[%c0_4, %c0_5] : memref<1x8xf32, #tpu.memory_space<vmem>>, vector<1x8xf32>
    %27 = vector.broadcast %26 : vector<1x8xf32> to vector<64x8xf32>
    %28 = arith.mulf %25, %27 : vector<64x8xf32>
    %c0_6 = arith.constant 0 : index
    %c0_7 = arith.constant 0 : index
    %29 = vector.load %arg4[%c0_6, %c0_7] : memref<1x8xf32, #tpu.memory_space<vmem>>, vector<1x8xf32>
    %30 = vector.broadcast %29 : vector<1x8xf32> to vector<64x8xf32>
    %31 = arith.addf %28, %30 : vector<64x8xf32>
    %cst = arith.constant 3.000000e+00 : f32
    %32 = vector.broadcast %cst : f32 to vector<64x8xf32>
    %33 = arith.addf %31, %32 : vector<64x8xf32>
    %cst_8 = arith.constant 0.000000e+00 : f32
    %cst_9 = arith.constant 6.000000e+00 : f32
    %34 = vector.broadcast %cst_8 : f32 to vector<64x8xf32>
    %35 = arith.maximumf %34, %33 : vector<64x8xf32>
    %36 = vector.broadcast %cst_9 : f32 to vector<64x8xf32>
    %37 = arith.minimumf %36, %35 : vector<64x8xf32>
    %38 = arith.mulf %31, %37 : vector<64x8xf32>
    %cst_10 = arith.constant 0.166666672 : f32
    %39 = vector.broadcast %cst_10 : f32 to vector<64x8xf32>
    %40 = arith.mulf %38, %39 : vector<64x8xf32>
    %cst_11 = arith.constant 0.000000e+00 : f32
    %41 = vector.broadcast %cst_11 : f32 to vector<10x24x8xf32>
    %c0_12 = arith.constant 0 : index
    %c0_13 = arith.constant 0 : index
    %c0_14 = arith.constant 0 : index
    %42 = vector.load %arg16[%c0_12, %c0_13, %c0_14] : memref<10x24x8xf32, #tpu.memory_space<vmem>>, vector<10x24x8xf32>
    tpu.vector_store %arg16[%c0_12, %c0_13, %c0_14], %41 {strides = array<i32>} : memref<10x24x8xf32, #tpu.memory_space<vmem>>, vector<10x24x8xf32>,
    %43 = vector.shape_cast %40 : vector<64x8xf32> to vector<8x8x8xf32>
    %c1 = arith.constant 1 : index
    %c8 = arith.constant 8 : index
    %c0_15 = arith.constant 0 : index
    %44 = vector.load %arg16[%c1, %c8, %c0_15] : memref<10x24x8xf32, #tpu.memory_space<vmem>>, vector<8x8x8xf32>
    tpu.vector_store %arg16[%c1, %c8, %c0_15], %43 {strides = array<i32>} : memref<10x24x8xf32, #tpu.memory_space<vmem>>, vector<8x8x8xf32>,
    %cst_16 = arith.constant 0.000000e+00 : f32
    %45 = vector.broadcast %cst_16 : f32 to vector<8x8x8xf32>
    %c0_17 = arith.constant 0 : index
    %c7 = arith.constant 7 : index
    %c0_18 = arith.constant 0 : index
    %46 = vector.load %arg16[%c0_17, %c7, %c0_18] : memref<10x24x8xf32, #tpu.memory_space<vmem>>, vector<8x8x8xf32>
    %c0_19 = arith.constant 0 : index
    %c0_20 = arith.constant 0 : index
    %c0_21 = arith.constant 0 : index
    %47 = vector.load %arg5[%c0_19, %c0_20, %c0_21] : memref<3x3x8xf32, #tpu.memory_space<vmem>>, vector<1x1x8xf32>
    %48 = vector.shape_cast %47 : vector<1x1x8xf32> to vector<1x8xf32>
    %49 = vector.shape_cast %48 : vector<1x8xf32> to vector<1x1x8xf32>
    %50 = vector.broadcast %49 : vector<1x1x8xf32> to vector<8x8x8xf32>
    %51 = arith.mulf %46, %50 : vector<8x8x8xf32>
    %52 = arith.addf %45, %51 : vector<8x8x8xf32>
    %c0_22 = arith.constant 0 : index
    %c8_23 = arith.constant 8 : index
    %c0_24 = arith.constant 0 : index
    %53 = vector.load %arg16[%c0_22, %c8_23, %c0_24] : memref<10x24x8xf32, #tpu.memory_space<vmem>>, vector<8x8x8xf32>
    %c0_25 = arith.constant 0 : index
    %c1_26 = arith.constant 1 : index
    %c0_27 = arith.constant 0 : index
    %54 = vector.load %arg5[%c0_25, %c1_26, %c0_27] : memref<3x3x8xf32, #tpu.memory_space<vmem>>, vector<1x1x8xf32>
    %55 = vector.shape_cast %54 : vector<1x1x8xf32> to vector<1x8xf32>
    %56 = vector.shape_cast %55 : vector<1x8xf32> to vector<1x1x8xf32>
    %57 = vector.broadcast %56 : vector<1x1x8xf32> to vector<8x8x8xf32>
    %58 = arith.mulf %53, %57 : vector<8x8x8xf32>
    %59 = arith.addf %52, %58 : vector<8x8x8xf32>
    %c0_28 = arith.constant 0 : index
    %c9 = arith.constant 9 : index
    %c0_29 = arith.constant 0 : index
    %60 = vector.load %arg16[%c0_28, %c9, %c0_29] : memref<10x24x8xf32, #tpu.memory_space<vmem>>, vector<8x8x8xf32>
    %c0_30 = arith.constant 0 : index
    %c2 = arith.constant 2 : index
    %c0_31 = arith.constant 0 : index
    %61 = vector.load %arg5[%c0_30, %c2, %c0_31] : memref<3x3x8xf32, #tpu.memory_space<vmem>>, vector<1x1x8xf32>
    %62 = vector.shape_cast %61 : vector<1x1x8xf32> to vector<1x8xf32>
    %63 = vector.shape_cast %62 : vector<1x8xf32> to vector<1x1x8xf32>
    %64 = vector.broadcast %63 : vector<1x1x8xf32> to vector<8x8x8xf32>
    %65 = arith.mulf %60, %64 : vector<8x8x8xf32>
    %66 = arith.addf %59, %65 : vector<8x8x8xf32>
    %c1_32 = arith.constant 1 : index
    %c7_33 = arith.constant 7 : index
    %c0_34 = arith.constant 0 : index
    %67 = vector.load %arg16[%c1_32, %c7_33, %c0_34] : memref<10x24x8xf32, #tpu.memory_space<vmem>>, vector<8x8x8xf32>
    %c1_35 = arith.constant 1 : index
    %c0_36 = arith.constant 0 : index
    %c0_37 = arith.constant 0 : index
    %68 = vector.load %arg5[%c1_35, %c0_36, %c0_37] : memref<3x3x8xf32, #tpu.memory_space<vmem>>, vector<1x1x8xf32>
    %69 = vector.shape_cast %68 : vector<1x1x8xf32> to vector<1x8xf32>
    %70 = vector.shape_cast %69 : vector<1x8xf32> to vector<1x1x8xf32>
    %71 = vector.broadcast %70 : vector<1x1x8xf32> to vector<8x8x8xf32>
    %72 = arith.mulf %67, %71 : vector<8x8x8xf32>
    %73 = arith.addf %66, %72 : vector<8x8x8xf32>
    %c1_38 = arith.constant 1 : index
    %c8_39 = arith.constant 8 : index
    %c0_40 = arith.constant 0 : index
    %74 = vector.load %arg16[%c1_38, %c8_39, %c0_40] : memref<10x24x8xf32, #tpu.memory_space<vmem>>, vector<8x8x8xf32>
    %c1_41 = arith.constant 1 : index
    %c1_42 = arith.constant 1 : index
    %c0_43 = arith.constant 0 : index
    %75 = vector.load %arg5[%c1_41, %c1_42, %c0_43] : memref<3x3x8xf32, #tpu.memory_space<vmem>>, vector<1x1x8xf32>
    %76 = vector.shape_cast %75 : vector<1x1x8xf32> to vector<1x8xf32>
    %77 = vector.shape_cast %76 : vector<1x8xf32> to vector<1x1x8xf32>
    %78 = vector.broadcast %77 : vector<1x1x8xf32> to vector<8x8x8xf32>
    %79 = arith.mulf %74, %78 : vector<8x8x8xf32>
    %80 = arith.addf %73, %79 : vector<8x8x8xf32>
    %c1_44 = arith.constant 1 : index
    %c9_45 = arith.constant 9 : index
    %c0_46 = arith.constant 0 : index
    %81 = vector.load %arg16[%c1_44, %c9_45, %c0_46] : memref<10x24x8xf32, #tpu.memory_space<vmem>>, vector<8x8x8xf32>
    %c1_47 = arith.constant 1 : index
    %c2_48 = arith.constant 2 : index
    %c0_49 = arith.constant 0 : index
    %82 = vector.load %arg5[%c1_47, %c2_48, %c0_49] : memref<3x3x8xf32, #tpu.memory_space<vmem>>, vector<1x1x8xf32>
    %83 = vector.shape_cast %82 : vector<1x1x8xf32> to vector<1x8xf32>
    %84 = vector.shape_cast %83 : vector<1x8xf32> to vector<1x1x8xf32>
    %85 = vector.broadcast %84 : vector<1x1x8xf32> to vector<8x8x8xf32>
    %86 = arith.mulf %81, %85 : vector<8x8x8xf32>
    %87 = arith.addf %80, %86 : vector<8x8x8xf32>
    %c2_50 = arith.constant 2 : index
    %c7_51 = arith.constant 7 : index
    %c0_52 = arith.constant 0 : index
    %88 = vector.load %arg16[%c2_50, %c7_51, %c0_52] : memref<10x24x8xf32, #tpu.memory_space<vmem>>, vector<8x8x8xf32>
    %c2_53 = arith.constant 2 : index
    %c0_54 = arith.constant 0 : index
    %c0_55 = arith.constant 0 : index
    %89 = vector.load %arg5[%c2_53, %c0_54, %c0_55] : memref<3x3x8xf32, #tpu.memory_space<vmem>>, vector<1x1x8xf32>
    %90 = vector.shape_cast %89 : vector<1x1x8xf32> to vector<1x8xf32>
    %91 = vector.shape_cast %90 : vector<1x8xf32> to vector<1x1x8xf32>
    %92 = vector.broadcast %91 : vector<1x1x8xf32> to vector<8x8x8xf32>
    %93 = arith.mulf %88, %92 : vector<8x8x8xf32>
    %94 = arith.addf %87, %93 : vector<8x8x8xf32>
    %c2_56 = arith.constant 2 : index
    %c8_57 = arith.constant 8 : index
    %c0_58 = arith.constant 0 : index
    %95 = vector.load %arg16[%c2_56, %c8_57, %c0_58] : memref<10x24x8xf32, #tpu.memory_space<vmem>>, vector<8x8x8xf32>
    %c2_59 = arith.constant 2 : index
    %c1_60 = arith.constant 1 : index
    %c0_61 = arith.constant 0 : index
    %96 = vector.load %arg5[%c2_59, %c1_60, %c0_61] : memref<3x3x8xf32, #tpu.memory_space<vmem>>, vector<1x1x8xf32>
    %97 = vector.shape_cast %96 : vector<1x1x8xf32> to vector<1x8xf32>
    %98 = vector.shape_cast %97 : vector<1x8xf32> to vector<1x1x8xf32>
    %99 = vector.broadcast %98 : vector<1x1x8xf32> to vector<8x8x8xf32>
    %100 = arith.mulf %95, %99 : vector<8x8x8xf32>
    %101 = arith.addf %94, %100 : vector<8x8x8xf32>
    %c2_62 = arith.constant 2 : index
    %c9_63 = arith.constant 9 : index
    %c0_64 = arith.constant 0 : index
    %102 = vector.load %arg16[%c2_62, %c9_63, %c0_64] : memref<10x24x8xf32, #tpu.memory_space<vmem>>, vector<8x8x8xf32>
    %c2_65 = arith.constant 2 : index
    %c2_66 = arith.constant 2 : index
    %c0_67 = arith.constant 0 : index
    %103 = vector.load %arg5[%c2_65, %c2_66, %c0_67] : memref<3x3x8xf32, #tpu.memory_space<vmem>>, vector<1x1x8xf32>
    %104 = vector.shape_cast %103 : vector<1x1x8xf32> to vector<1x8xf32>
    %105 = vector.shape_cast %104 : vector<1x8xf32> to vector<1x1x8xf32>
    %106 = vector.broadcast %105 : vector<1x1x8xf32> to vector<8x8x8xf32>
    %107 = arith.mulf %102, %106 : vector<8x8x8xf32>
    %108 = arith.addf %101, %107 : vector<8x8x8xf32>
    %c0_68 = arith.constant 0 : index
    %c0_69 = arith.constant 0 : index
    %109 = vector.load %arg6[%c0_68, %c0_69] : memref<1x8xf32, #tpu.memory_space<vmem>>, vector<1x8xf32>
    %110 = vector.shape_cast %109 : vector<1x8xf32> to vector<1x1x8xf32>
    %111 = vector.broadcast %110 : vector<1x1x8xf32> to vector<8x8x8xf32>
    %112 = arith.mulf %108, %111 : vector<8x8x8xf32>
    %c0_70 = arith.constant 0 : index
    %c0_71 = arith.constant 0 : index
    %113 = vector.load %arg7[%c0_70, %c0_71] : memref<1x8xf32, #tpu.memory_space<vmem>>, vector<1x8xf32>
    %114 = vector.shape_cast %113 : vector<1x8xf32> to vector<1x1x8xf32>
    %115 = vector.broadcast %114 : vector<1x1x8xf32> to vector<8x8x8xf32>
    %116 = arith.addf %112, %115 : vector<8x8x8xf32>
    %cst_72 = arith.constant 3.000000e+00 : f32
    %117 = vector.broadcast %cst_72 : f32 to vector<8x8x8xf32>
    %118 = arith.addf %116, %117 : vector<8x8x8xf32>
    %cst_73 = arith.constant 0.000000e+00 : f32
    %cst_74 = arith.constant 6.000000e+00 : f32
    %119 = vector.broadcast %cst_73 : f32 to vector<8x8x8xf32>
    %120 = arith.maximumf %119, %118 : vector<8x8x8xf32>
    %121 = vector.broadcast %cst_74 : f32 to vector<8x8x8xf32>
    %122 = arith.minimumf %121, %120 : vector<8x8x8xf32>
    %123 = arith.mulf %116, %122 : vector<8x8x8xf32>
    %cst_75 = arith.constant 0.166666672 : f32
    %124 = vector.broadcast %cst_75 : f32 to vector<8x8x8xf32>
    %125 = arith.mulf %123, %124 : vector<8x8x8xf32>
    %126 = vector.shape_cast %125 : vector<8x8x8xf32> to vector<64x8xf32>
    %cst_76 = arith.constant dense<0.000000e+00> : vector<8xf32>
    %127 = vector.multi_reduction <add>, %126, %cst_76 [0] : vector<64x8xf32> to vector<8xf32>
    %128 = vector.shape_cast %127 : vector<8xf32> to vector<1x8xf32>
    %cst_77 = arith.constant 6.400000e+01 : f32
    %129 = vector.broadcast %cst_77 : f32 to vector<1x8xf32>
    %130 = arith.divf %128, %129 : vector<1x8xf32>
    %c0_78 = arith.constant 0 : index
    %c0_79 = arith.constant 0 : index
    %131 = vector.load %arg8[%c0_78, %c0_79] : memref<4x8xf32, #tpu.memory_space<vmem>>, vector<4x8xf32>
    %132 = vector.broadcast %130 : vector<1x8xf32> to vector<4x8xf32>
    %133 = arith.mulf %131, %132 : vector<4x8xf32>
    %cst_80 = arith.constant dense<0.000000e+00> : vector<4xf32>
    %134 = vector.multi_reduction <add>, %133, %cst_80 [1] : vector<4x8xf32> to vector<4xf32>
    %135 = vector.shape_cast %134 : vector<4xf32> to vector<4x1xf32>
    %c0_81 = arith.constant 0 : index
    %c0_82 = arith.constant 0 : index
    %136 = vector.load %arg9[%c0_81, %c0_82] : memref<4x1xf32, #tpu.memory_space<vmem>>, vector<4x1xf32>
    %137 = arith.addf %135, %136 : vector<4x1xf32>
    %cst_83 = arith.constant 0.000000e+00 : f32
    %138 = vector.broadcast %cst_83 : f32 to vector<4x1xf32>
    %139 = arith.maximumf %137, %138 : vector<4x1xf32>
    %c0_84 = arith.constant 0 : index
    %c0_85 = arith.constant 0 : index
    %140 = vector.load %arg10[%c0_84, %c0_85] : memref<4x8xf32, #tpu.memory_space<vmem>>, vector<4x8xf32>
    %141 = vector.broadcast %139 : vector<4x1xf32> to vector<4x8xf32>
    %142 = arith.mulf %140, %141 : vector<4x8xf32>
    %cst_86 = arith.constant dense<0.000000e+00> : vector<8xf32>
    %143 = vector.multi_reduction <add>, %142, %cst_86 [0] : vector<4x8xf32> to vector<8xf32>
    %144 = vector.shape_cast %143 : vector<8xf32> to vector<1x8xf32>
    %c0_87 = arith.constant 0 : index
    %c0_88 = arith.constant 0 : index
    %145 = vector.load %arg11[%c0_87, %c0_88] : memref<1x8xf32, #tpu.memory_space<vmem>>, vector<1x8xf32>
    %146 = arith.addf %144, %145 : vector<1x8xf32>
    %cst_89 = arith.constant 3.000000e+00 : f32
    %147 = vector.broadcast %cst_89 : f32 to vector<1x8xf32>
    %148 = arith.addf %146, %147 : vector<1x8xf32>
    %cst_90 = arith.constant 0.000000e+00 : f32
    %cst_91 = arith.constant 6.000000e+00 : f32
    %149 = vector.broadcast %cst_90 : f32 to vector<1x8xf32>
    %150 = arith.maximumf %149, %148 : vector<1x8xf32>
    %151 = vector.broadcast %cst_91 : f32 to vector<1x8xf32>
    %152 = arith.minimumf %151, %150 : vector<1x8xf32>
    %cst_92 = arith.constant 0.166666672 : f32
    %153 = vector.broadcast %cst_92 : f32 to vector<1x8xf32>
    %154 = arith.mulf %152, %153 : vector<1x8xf32>
    %155 = vector.broadcast %154 : vector<1x8xf32> to vector<64x8xf32>
    %156 = arith.mulf %126, %155 : vector<64x8xf32>
    %c0_93 = arith.constant 0 : index
    %c0_94 = arith.constant 0 : index
    %157 = vector.load %arg12[%c0_93, %c0_94] : memref<8x8xf32, #tpu.memory_space<vmem>>, vector<8x8xf32>
    %158 = vector.extract_strided_slice %156 {offsets = [0, 0], sizes = [64, 1], strides = [1, 1]} : vector<64x8xf32> to vector<64x1xf32>
    %159 = vector.extract_strided_slice %157 {offsets = [0, 0], sizes = [1, 8], strides = [1, 1]} : vector<8x8xf32> to vector<1x8xf32>
    %160 = vector.broadcast %158 : vector<64x1xf32> to vector<64x8xf32>
    %161 = vector.broadcast %159 : vector<1x8xf32> to vector<64x8xf32>
    %162 = arith.mulf %160, %161 : vector<64x8xf32>
    %163 = vector.extract_strided_slice %156 {offsets = [0, 1], sizes = [64, 1], strides = [1, 1]} : vector<64x8xf32> to vector<64x1xf32>
    %164 = vector.extract_strided_slice %157 {offsets = [1, 0], sizes = [1, 8], strides = [1, 1]} : vector<8x8xf32> to vector<1x8xf32>
    %165 = vector.broadcast %163 : vector<64x1xf32> to vector<64x8xf32>
    %166 = vector.broadcast %164 : vector<1x8xf32> to vector<64x8xf32>
    %167 = arith.mulf %165, %166 : vector<64x8xf32>
    %168 = arith.addf %162, %167 : vector<64x8xf32>
    %169 = vector.extract_strided_slice %156 {offsets = [0, 2], sizes = [64, 1], strides = [1, 1]} : vector<64x8xf32> to vector<64x1xf32>
    %170 = vector.extract_strided_slice %157 {offsets = [2, 0], sizes = [1, 8], strides = [1, 1]} : vector<8x8xf32> to vector<1x8xf32>
    %171 = vector.broadcast %169 : vector<64x1xf32> to vector<64x8xf32>
    %172 = vector.broadcast %170 : vector<1x8xf32> to vector<64x8xf32>
    %173 = arith.mulf %171, %172 : vector<64x8xf32>
    %174 = arith.addf %168, %173 : vector<64x8xf32>
    %175 = vector.extract_strided_slice %156 {offsets = [0, 3], sizes = [64, 1], strides = [1, 1]} : vector<64x8xf32> to vector<64x1xf32>
    %176 = vector.extract_strided_slice %157 {offsets = [3, 0], sizes = [1, 8], strides = [1, 1]} : vector<8x8xf32> to vector<1x8xf32>
    %177 = vector.broadcast %175 : vector<64x1xf32> to vector<64x8xf32>
    %178 = vector.broadcast %176 : vector<1x8xf32> to vector<64x8xf32>
    %179 = arith.mulf %177, %178 : vector<64x8xf32>
    %180 = arith.addf %174, %179 : vector<64x8xf32>
    %181 = vector.extract_strided_slice %156 {offsets = [0, 4], sizes = [64, 1], strides = [1, 1]} : vector<64x8xf32> to vector<64x1xf32>
    %182 = vector.extract_strided_slice %157 {offsets = [4, 0], sizes = [1, 8], strides = [1, 1]} : vector<8x8xf32> to vector<1x8xf32>
    %183 = vector.broadcast %181 : vector<64x1xf32> to vector<64x8xf32>
    %184 = vector.broadcast %182 : vector<1x8xf32> to vector<64x8xf32>
    %185 = arith.mulf %183, %184 : vector<64x8xf32>
    %186 = arith.addf %180, %185 : vector<64x8xf32>
    %187 = vector.extract_strided_slice %156 {offsets = [0, 5], sizes = [64, 1], strides = [1, 1]} : vector<64x8xf32> to vector<64x1xf32>
    %188 = vector.extract_strided_slice %157 {offsets = [5, 0], sizes = [1, 8], strides = [1, 1]} : vector<8x8xf32> to vector<1x8xf32>
    %189 = vector.broadcast %187 : vector<64x1xf32> to vector<64x8xf32>
    %190 = vector.broadcast %188 : vector<1x8xf32> to vector<64x8xf32>
    %191 = arith.mulf %189, %190 : vector<64x8xf32>
    %192 = arith.addf %186, %191 : vector<64x8xf32>
    %193 = vector.extract_strided_slice %156 {offsets = [0, 6], sizes = [64, 1], strides = [1, 1]} : vector<64x8xf32> to vector<64x1xf32>
    %194 = vector.extract_strided_slice %157 {offsets = [6, 0], sizes = [1, 8], strides = [1, 1]} : vector<8x8xf32> to vector<1x8xf32>
    %195 = vector.broadcast %193 : vector<64x1xf32> to vector<64x8xf32>
    %196 = vector.broadcast %194 : vector<1x8xf32> to vector<64x8xf32>
    %197 = arith.mulf %195, %196 : vector<64x8xf32>
    %198 = arith.addf %192, %197 : vector<64x8xf32>
    %199 = vector.extract_strided_slice %156 {offsets = [0, 7], sizes = [64, 1], strides = [1, 1]} : vector<64x8xf32> to vector<64x1xf32>
    %200 = vector.extract_strided_slice %157 {offsets = [7, 0], sizes = [1, 8], strides = [1, 1]} : vector<8x8xf32> to vector<1x8xf32>
    %201 = vector.broadcast %199 : vector<64x1xf32> to vector<64x8xf32>
    %202 = vector.broadcast %200 : vector<1x8xf32> to vector<64x8xf32>
    %203 = arith.mulf %201, %202 : vector<64x8xf32>
    %204 = arith.addf %198, %203 : vector<64x8xf32>
    %c0_95 = arith.constant 0 : index
    %c0_96 = arith.constant 0 : index
    %205 = vector.load %arg13[%c0_95, %c0_96] : memref<1x8xf32, #tpu.memory_space<vmem>>, vector<1x8xf32>
    %206 = vector.broadcast %205 : vector<1x8xf32> to vector<64x8xf32>
    %207 = arith.mulf %204, %206 : vector<64x8xf32>
    %c0_97 = arith.constant 0 : index
    %c0_98 = arith.constant 0 : index
    %208 = vector.load %arg14[%c0_97, %c0_98] : memref<1x8xf32, #tpu.memory_space<vmem>>, vector<1x8xf32>
    %209 = vector.broadcast %208 : vector<1x8xf32> to vector<64x8xf32>
    %210 = arith.addf %207, %209 : vector<64x8xf32>
    %c0_99 = arith.constant 0 : index
    %c0_100 = arith.constant 0 : index
    %c0_101 = arith.constant 0 : index
    %211 = vector.load %arg15[%c0_99, %c0_100, %c0_101] : memref<1x64x8xf32, #tpu.memory_space<vmem>>, vector<1x64x8xf32>
    %212 = vector.shape_cast %211 : vector<1x64x8xf32> to vector<64x8xf32>
    %213 = vector.shape_cast %210 : vector<64x8xf32> to vector<1x64x8xf32>
    tpu.vector_store %arg15[%c0_99, %c0_100, %c0_101], %213 {strides = array<i32>} : memref<1x64x8xf32, #tpu.memory_space<vmem>>, vector<1x64x8xf32>,
    return
  }
  func.func @transform_0(%arg0: i32) -> (i32, i32, i32) {
    %c0_i32 = arith.constant 0 : i32
    %c0_i32_0 = arith.constant 0 : i32
    %c0_i32_1 = arith.constant 0 : i32
    return %arg0, %c0_i32, %c0_i32_0 : i32, i32, i32
  }
  func.func @transform_1(%arg0: i32) -> (i32, i32) {
    %c0_i32 = arith.constant 0 : i32
    %c0_i32_0 = arith.constant 0 : i32
    %c0_i32_1 = arith.constant 0 : i32
    return %c0_i32, %c0_i32_0 : i32, i32
  }
  func.func @transform_2(%arg0: i32) -> (i32, i32) {
    %c0_i32 = arith.constant 0 : i32
    %c0_i32_0 = arith.constant 0 : i32
    %c0_i32_1 = arith.constant 0 : i32
    return %c0_i32, %c0_i32_0 : i32, i32
  }
  func.func @transform_3(%arg0: i32) -> (i32, i32) {
    %c0_i32 = arith.constant 0 : i32
    %c0_i32_0 = arith.constant 0 : i32
    %c0_i32_1 = arith.constant 0 : i32
    return %c0_i32, %c0_i32_0 : i32, i32
  }
  func.func @transform_4(%arg0: i32) -> (i32, i32, i32) {
    %c0_i32 = arith.constant 0 : i32
    %c0_i32_0 = arith.constant 0 : i32
    %c0_i32_1 = arith.constant 0 : i32
    %c0_i32_2 = arith.constant 0 : i32
    return %c0_i32, %c0_i32_0, %c0_i32_1 : i32, i32, i32
  }
  func.func @transform_5(%arg0: i32) -> (i32, i32) {
    %c0_i32 = arith.constant 0 : i32
    %c0_i32_0 = arith.constant 0 : i32
    %c0_i32_1 = arith.constant 0 : i32
    return %c0_i32, %c0_i32_0 : i32, i32
  }
  func.func @transform_6(%arg0: i32) -> (i32, i32) {
    %c0_i32 = arith.constant 0 : i32
    %c0_i32_0 = arith.constant 0 : i32
    %c0_i32_1 = arith.constant 0 : i32
    return %c0_i32, %c0_i32_0 : i32, i32
  }
  func.func @transform_7(%arg0: i32) -> (i32, i32) {
    %c0_i32 = arith.constant 0 : i32
    %c0_i32_0 = arith.constant 0 : i32
    %c0_i32_1 = arith.constant 0 : i32
    return %c0_i32, %c0_i32_0 : i32, i32
  }
  func.func @transform_8(%arg0: i32) -> (i32, i32) {
    %c0_i32 = arith.constant 0 : i32
    %c0_i32_0 = arith.constant 0 : i32
    %c0_i32_1 = arith.constant 0 : i32
    return %c0_i32, %c0_i32_0 : i32, i32
  }
  func.func @transform_9(%arg0: i32) -> (i32, i32) {
    %c0_i32 = arith.constant 0 : i32
    %c0_i32_0 = arith.constant 0 : i32
    %c0_i32_1 = arith.constant 0 : i32
    return %c0_i32, %c0_i32_0 : i32, i32
  }
  func.func @transform_10(%arg0: i32) -> (i32, i32) {
    %c0_i32 = arith.constant 0 : i32
    %c0_i32_0 = arith.constant 0 : i32
    %c0_i32_1 = arith.constant 0 : i32
    return %c0_i32, %c0_i32_0 : i32, i32
  }
  func.func @transform_11(%arg0: i32) -> (i32, i32) {
    %c0_i32 = arith.constant 0 : i32
    %c0_i32_0 = arith.constant 0 : i32
    %c0_i32_1 = arith.constant 0 : i32
    return %c0_i32, %c0_i32_0 : i32, i32
  }
  func.func @transform_12(%arg0: i32) -> (i32, i32) {
    %c0_i32 = arith.constant 0 : i32
    %c0_i32_0 = arith.constant 0 : i32
    %c0_i32_1 = arith.constant 0 : i32
    return %c0_i32, %c0_i32_0 : i32, i32
  }
  func.func @transform_13(%arg0: i32) -> (i32, i32) {
    %c0_i32 = arith.constant 0 : i32
    %c0_i32_0 = arith.constant 0 : i32
    %c0_i32_1 = arith.constant 0 : i32
    return %c0_i32, %c0_i32_0 : i32, i32
  }
  func.func @transform_14(%arg0: i32) -> (i32, i32, i32) {
    %c0_i32 = arith.constant 0 : i32
    %c0_i32_0 = arith.constant 0 : i32
    %c0_i32_1 = arith.constant 0 : i32
    return %arg0, %c0_i32, %c0_i32_0 : i32, i32, i32
  }
}

module attributes {stable_mosaic.version = 11 : i64} {
  func.func @kernel(%arg0: i32, %arg1: memref<1x64x8xf32, #tpu.memory_space<vmem>>, %arg2: memref<8x16xf32, #tpu.memory_space<vmem>>, %arg3: memref<1x16xf32, #tpu.memory_space<vmem>>, %arg4: memref<1x16xf32, #tpu.memory_space<vmem>>, %arg5: memref<3x3x16xf32, #tpu.memory_space<vmem>>, %arg6: memref<1x16xf32, #tpu.memory_space<vmem>>, %arg7: memref<1x16xf32, #tpu.memory_space<vmem>>, %arg8: memref<4x16xf32, #tpu.memory_space<vmem>>, %arg9: memref<4x1xf32, #tpu.memory_space<vmem>>, %arg10: memref<4x16xf32, #tpu.memory_space<vmem>>, %arg11: memref<1x16xf32, #tpu.memory_space<vmem>>, %arg12: memref<16x8xf32, #tpu.memory_space<vmem>>, %arg13: memref<1x8xf32, #tpu.memory_space<vmem>>, %arg14: memref<1x8xf32, #tpu.memory_space<vmem>>, %arg15: memref<1x64x8xf32, #tpu.memory_space<vmem>>, %arg16: memref<10x24x16xf32, #tpu.memory_space<vmem>>) attributes {dimension_semantics = [#tpu.dimension_semantics<parallel>], iteration_bounds = array<i64: 2>, scalar_prefetch = 0 : i64, scratch_operands = 1 : i64, tpu.core_type = #tpu.core_type<tc>, window_params = [{transform_indices = @transform_0, window_bounds = array<i64: 1, 64, 8>}, {pipeline_mode = #tpu.pipeline_mode<synchronous>, transform_indices = @transform_1, window_bounds = array<i64: 8, 16>}, {pipeline_mode = #tpu.pipeline_mode<synchronous>, transform_indices = @transform_2, window_bounds = array<i64: 1, 16>}, {pipeline_mode = #tpu.pipeline_mode<synchronous>, transform_indices = @transform_3, window_bounds = array<i64: 1, 16>}, {pipeline_mode = #tpu.pipeline_mode<synchronous>, transform_indices = @transform_4, window_bounds = array<i64: 3, 3, 16>}, {pipeline_mode = #tpu.pipeline_mode<synchronous>, transform_indices = @transform_5, window_bounds = array<i64: 1, 16>}, {pipeline_mode = #tpu.pipeline_mode<synchronous>, transform_indices = @transform_6, window_bounds = array<i64: 1, 16>}, {pipeline_mode = #tpu.pipeline_mode<synchronous>, transform_indices = @transform_7, window_bounds = array<i64: 4, 16>}, {pipeline_mode = #tpu.pipeline_mode<synchronous>, transform_indices = @transform_8, window_bounds = array<i64: 4, 1>}, {pipeline_mode = #tpu.pipeline_mode<synchronous>, transform_indices = @transform_9, window_bounds = array<i64: 4, 16>}, {pipeline_mode = #tpu.pipeline_mode<synchronous>, transform_indices = @transform_10, window_bounds = array<i64: 1, 16>}, {pipeline_mode = #tpu.pipeline_mode<synchronous>, transform_indices = @transform_11, window_bounds = array<i64: 16, 8>}, {pipeline_mode = #tpu.pipeline_mode<synchronous>, transform_indices = @transform_12, window_bounds = array<i64: 1, 8>}, {pipeline_mode = #tpu.pipeline_mode<synchronous>, transform_indices = @transform_13, window_bounds = array<i64: 1, 8>}, {transform_indices = @transform_14, window_bounds = array<i64: 1, 64, 8>}]} {
    %c0 = arith.constant 0 : index
    %c0_0 = arith.constant 0 : index
    %c0_1 = arith.constant 0 : index
    %0 = vector.load %arg1[%c0, %c0_0, %c0_1] : memref<1x64x8xf32, #tpu.memory_space<vmem>>, vector<1x64x8xf32>
    %1 = vector.shape_cast %0 : vector<1x64x8xf32> to vector<64x8xf32>
    %c0_2 = arith.constant 0 : index
    %c0_3 = arith.constant 0 : index
    %2 = vector.load %arg2[%c0_2, %c0_3] : memref<8x16xf32, #tpu.memory_space<vmem>>, vector<8x16xf32>
    %3 = vector.extract_strided_slice %1 {offsets = [0, 0], sizes = [64, 1], strides = [1, 1]} : vector<64x8xf32> to vector<64x1xf32>
    %4 = vector.extract_strided_slice %2 {offsets = [0, 0], sizes = [1, 16], strides = [1, 1]} : vector<8x16xf32> to vector<1x16xf32>
    %5 = vector.broadcast %3 : vector<64x1xf32> to vector<64x16xf32>
    %6 = vector.broadcast %4 : vector<1x16xf32> to vector<64x16xf32>
    %7 = arith.mulf %5, %6 : vector<64x16xf32>
    %8 = vector.extract_strided_slice %1 {offsets = [0, 1], sizes = [64, 1], strides = [1, 1]} : vector<64x8xf32> to vector<64x1xf32>
    %9 = vector.extract_strided_slice %2 {offsets = [1, 0], sizes = [1, 16], strides = [1, 1]} : vector<8x16xf32> to vector<1x16xf32>
    %10 = vector.broadcast %8 : vector<64x1xf32> to vector<64x16xf32>
    %11 = vector.broadcast %9 : vector<1x16xf32> to vector<64x16xf32>
    %12 = arith.mulf %10, %11 : vector<64x16xf32>
    %13 = arith.addf %7, %12 : vector<64x16xf32>
    %14 = vector.extract_strided_slice %1 {offsets = [0, 2], sizes = [64, 1], strides = [1, 1]} : vector<64x8xf32> to vector<64x1xf32>
    %15 = vector.extract_strided_slice %2 {offsets = [2, 0], sizes = [1, 16], strides = [1, 1]} : vector<8x16xf32> to vector<1x16xf32>
    %16 = vector.broadcast %14 : vector<64x1xf32> to vector<64x16xf32>
    %17 = vector.broadcast %15 : vector<1x16xf32> to vector<64x16xf32>
    %18 = arith.mulf %16, %17 : vector<64x16xf32>
    %19 = arith.addf %13, %18 : vector<64x16xf32>
    %20 = vector.extract_strided_slice %1 {offsets = [0, 3], sizes = [64, 1], strides = [1, 1]} : vector<64x8xf32> to vector<64x1xf32>
    %21 = vector.extract_strided_slice %2 {offsets = [3, 0], sizes = [1, 16], strides = [1, 1]} : vector<8x16xf32> to vector<1x16xf32>
    %22 = vector.broadcast %20 : vector<64x1xf32> to vector<64x16xf32>
    %23 = vector.broadcast %21 : vector<1x16xf32> to vector<64x16xf32>
    %24 = arith.mulf %22, %23 : vector<64x16xf32>
    %25 = arith.addf %19, %24 : vector<64x16xf32>
    %26 = vector.extract_strided_slice %1 {offsets = [0, 4], sizes = [64, 1], strides = [1, 1]} : vector<64x8xf32> to vector<64x1xf32>
    %27 = vector.extract_strided_slice %2 {offsets = [4, 0], sizes = [1, 16], strides = [1, 1]} : vector<8x16xf32> to vector<1x16xf32>
    %28 = vector.broadcast %26 : vector<64x1xf32> to vector<64x16xf32>
    %29 = vector.broadcast %27 : vector<1x16xf32> to vector<64x16xf32>
    %30 = arith.mulf %28, %29 : vector<64x16xf32>
    %31 = arith.addf %25, %30 : vector<64x16xf32>
    %32 = vector.extract_strided_slice %1 {offsets = [0, 5], sizes = [64, 1], strides = [1, 1]} : vector<64x8xf32> to vector<64x1xf32>
    %33 = vector.extract_strided_slice %2 {offsets = [5, 0], sizes = [1, 16], strides = [1, 1]} : vector<8x16xf32> to vector<1x16xf32>
    %34 = vector.broadcast %32 : vector<64x1xf32> to vector<64x16xf32>
    %35 = vector.broadcast %33 : vector<1x16xf32> to vector<64x16xf32>
    %36 = arith.mulf %34, %35 : vector<64x16xf32>
    %37 = arith.addf %31, %36 : vector<64x16xf32>
    %38 = vector.extract_strided_slice %1 {offsets = [0, 6], sizes = [64, 1], strides = [1, 1]} : vector<64x8xf32> to vector<64x1xf32>
    %39 = vector.extract_strided_slice %2 {offsets = [6, 0], sizes = [1, 16], strides = [1, 1]} : vector<8x16xf32> to vector<1x16xf32>
    %40 = vector.broadcast %38 : vector<64x1xf32> to vector<64x16xf32>
    %41 = vector.broadcast %39 : vector<1x16xf32> to vector<64x16xf32>
    %42 = arith.mulf %40, %41 : vector<64x16xf32>
    %43 = arith.addf %37, %42 : vector<64x16xf32>
    %44 = vector.extract_strided_slice %1 {offsets = [0, 7], sizes = [64, 1], strides = [1, 1]} : vector<64x8xf32> to vector<64x1xf32>
    %45 = vector.extract_strided_slice %2 {offsets = [7, 0], sizes = [1, 16], strides = [1, 1]} : vector<8x16xf32> to vector<1x16xf32>
    %46 = vector.broadcast %44 : vector<64x1xf32> to vector<64x16xf32>
    %47 = vector.broadcast %45 : vector<1x16xf32> to vector<64x16xf32>
    %48 = arith.mulf %46, %47 : vector<64x16xf32>
    %49 = arith.addf %43, %48 : vector<64x16xf32>
    %c0_4 = arith.constant 0 : index
    %c0_5 = arith.constant 0 : index
    %50 = vector.load %arg3[%c0_4, %c0_5] : memref<1x16xf32, #tpu.memory_space<vmem>>, vector<1x16xf32>
    %51 = vector.broadcast %50 : vector<1x16xf32> to vector<64x16xf32>
    %52 = arith.mulf %49, %51 : vector<64x16xf32>
    %c0_6 = arith.constant 0 : index
    %c0_7 = arith.constant 0 : index
    %53 = vector.load %arg4[%c0_6, %c0_7] : memref<1x16xf32, #tpu.memory_space<vmem>>, vector<1x16xf32>
    %54 = vector.broadcast %53 : vector<1x16xf32> to vector<64x16xf32>
    %55 = arith.addf %52, %54 : vector<64x16xf32>
    %cst = arith.constant 3.000000e+00 : f32
    %56 = vector.broadcast %cst : f32 to vector<64x16xf32>
    %57 = arith.addf %55, %56 : vector<64x16xf32>
    %cst_8 = arith.constant 0.000000e+00 : f32
    %cst_9 = arith.constant 6.000000e+00 : f32
    %58 = vector.broadcast %cst_8 : f32 to vector<64x16xf32>
    %59 = arith.maximumf %58, %57 : vector<64x16xf32>
    %60 = vector.broadcast %cst_9 : f32 to vector<64x16xf32>
    %61 = arith.minimumf %60, %59 : vector<64x16xf32>
    %62 = arith.mulf %55, %61 : vector<64x16xf32>
    %cst_10 = arith.constant 0.166666672 : f32
    %63 = vector.broadcast %cst_10 : f32 to vector<64x16xf32>
    %64 = arith.mulf %62, %63 : vector<64x16xf32>
    %cst_11 = arith.constant 0.000000e+00 : f32
    %65 = vector.broadcast %cst_11 : f32 to vector<10x24x16xf32>
    %c0_12 = arith.constant 0 : index
    %c0_13 = arith.constant 0 : index
    %c0_14 = arith.constant 0 : index
    %66 = vector.load %arg16[%c0_12, %c0_13, %c0_14] : memref<10x24x16xf32, #tpu.memory_space<vmem>>, vector<10x24x16xf32>
    tpu.vector_store %arg16[%c0_12, %c0_13, %c0_14], %65 {strides = array<i32>} : memref<10x24x16xf32, #tpu.memory_space<vmem>>, vector<10x24x16xf32>,
    %67 = vector.shape_cast %64 : vector<64x16xf32> to vector<8x8x16xf32>
    %c1 = arith.constant 1 : index
    %c8 = arith.constant 8 : index
    %c0_15 = arith.constant 0 : index
    %68 = vector.load %arg16[%c1, %c8, %c0_15] : memref<10x24x16xf32, #tpu.memory_space<vmem>>, vector<8x8x16xf32>
    tpu.vector_store %arg16[%c1, %c8, %c0_15], %67 {strides = array<i32>} : memref<10x24x16xf32, #tpu.memory_space<vmem>>, vector<8x8x16xf32>,
    %cst_16 = arith.constant 0.000000e+00 : f32
    %69 = vector.broadcast %cst_16 : f32 to vector<8x8x16xf32>
    %c0_17 = arith.constant 0 : index
    %c7 = arith.constant 7 : index
    %c0_18 = arith.constant 0 : index
    %70 = vector.load %arg16[%c0_17, %c7, %c0_18] : memref<10x24x16xf32, #tpu.memory_space<vmem>>, vector<8x8x16xf32>
    %c0_19 = arith.constant 0 : index
    %c0_20 = arith.constant 0 : index
    %c0_21 = arith.constant 0 : index
    %71 = vector.load %arg5[%c0_19, %c0_20, %c0_21] : memref<3x3x16xf32, #tpu.memory_space<vmem>>, vector<1x1x16xf32>
    %72 = vector.shape_cast %71 : vector<1x1x16xf32> to vector<1x16xf32>
    %73 = vector.shape_cast %72 : vector<1x16xf32> to vector<1x1x16xf32>
    %74 = vector.broadcast %73 : vector<1x1x16xf32> to vector<8x8x16xf32>
    %75 = arith.mulf %70, %74 : vector<8x8x16xf32>
    %76 = arith.addf %69, %75 : vector<8x8x16xf32>
    %c0_22 = arith.constant 0 : index
    %c8_23 = arith.constant 8 : index
    %c0_24 = arith.constant 0 : index
    %77 = vector.load %arg16[%c0_22, %c8_23, %c0_24] : memref<10x24x16xf32, #tpu.memory_space<vmem>>, vector<8x8x16xf32>
    %c0_25 = arith.constant 0 : index
    %c1_26 = arith.constant 1 : index
    %c0_27 = arith.constant 0 : index
    %78 = vector.load %arg5[%c0_25, %c1_26, %c0_27] : memref<3x3x16xf32, #tpu.memory_space<vmem>>, vector<1x1x16xf32>
    %79 = vector.shape_cast %78 : vector<1x1x16xf32> to vector<1x16xf32>
    %80 = vector.shape_cast %79 : vector<1x16xf32> to vector<1x1x16xf32>
    %81 = vector.broadcast %80 : vector<1x1x16xf32> to vector<8x8x16xf32>
    %82 = arith.mulf %77, %81 : vector<8x8x16xf32>
    %83 = arith.addf %76, %82 : vector<8x8x16xf32>
    %c0_28 = arith.constant 0 : index
    %c9 = arith.constant 9 : index
    %c0_29 = arith.constant 0 : index
    %84 = vector.load %arg16[%c0_28, %c9, %c0_29] : memref<10x24x16xf32, #tpu.memory_space<vmem>>, vector<8x8x16xf32>
    %c0_30 = arith.constant 0 : index
    %c2 = arith.constant 2 : index
    %c0_31 = arith.constant 0 : index
    %85 = vector.load %arg5[%c0_30, %c2, %c0_31] : memref<3x3x16xf32, #tpu.memory_space<vmem>>, vector<1x1x16xf32>
    %86 = vector.shape_cast %85 : vector<1x1x16xf32> to vector<1x16xf32>
    %87 = vector.shape_cast %86 : vector<1x16xf32> to vector<1x1x16xf32>
    %88 = vector.broadcast %87 : vector<1x1x16xf32> to vector<8x8x16xf32>
    %89 = arith.mulf %84, %88 : vector<8x8x16xf32>
    %90 = arith.addf %83, %89 : vector<8x8x16xf32>
    %c1_32 = arith.constant 1 : index
    %c7_33 = arith.constant 7 : index
    %c0_34 = arith.constant 0 : index
    %91 = vector.load %arg16[%c1_32, %c7_33, %c0_34] : memref<10x24x16xf32, #tpu.memory_space<vmem>>, vector<8x8x16xf32>
    %c1_35 = arith.constant 1 : index
    %c0_36 = arith.constant 0 : index
    %c0_37 = arith.constant 0 : index
    %92 = vector.load %arg5[%c1_35, %c0_36, %c0_37] : memref<3x3x16xf32, #tpu.memory_space<vmem>>, vector<1x1x16xf32>
    %93 = vector.shape_cast %92 : vector<1x1x16xf32> to vector<1x16xf32>
    %94 = vector.shape_cast %93 : vector<1x16xf32> to vector<1x1x16xf32>
    %95 = vector.broadcast %94 : vector<1x1x16xf32> to vector<8x8x16xf32>
    %96 = arith.mulf %91, %95 : vector<8x8x16xf32>
    %97 = arith.addf %90, %96 : vector<8x8x16xf32>
    %c1_38 = arith.constant 1 : index
    %c8_39 = arith.constant 8 : index
    %c0_40 = arith.constant 0 : index
    %98 = vector.load %arg16[%c1_38, %c8_39, %c0_40] : memref<10x24x16xf32, #tpu.memory_space<vmem>>, vector<8x8x16xf32>
    %c1_41 = arith.constant 1 : index
    %c1_42 = arith.constant 1 : index
    %c0_43 = arith.constant 0 : index
    %99 = vector.load %arg5[%c1_41, %c1_42, %c0_43] : memref<3x3x16xf32, #tpu.memory_space<vmem>>, vector<1x1x16xf32>
    %100 = vector.shape_cast %99 : vector<1x1x16xf32> to vector<1x16xf32>
    %101 = vector.shape_cast %100 : vector<1x16xf32> to vector<1x1x16xf32>
    %102 = vector.broadcast %101 : vector<1x1x16xf32> to vector<8x8x16xf32>
    %103 = arith.mulf %98, %102 : vector<8x8x16xf32>
    %104 = arith.addf %97, %103 : vector<8x8x16xf32>
    %c1_44 = arith.constant 1 : index
    %c9_45 = arith.constant 9 : index
    %c0_46 = arith.constant 0 : index
    %105 = vector.load %arg16[%c1_44, %c9_45, %c0_46] : memref<10x24x16xf32, #tpu.memory_space<vmem>>, vector<8x8x16xf32>
    %c1_47 = arith.constant 1 : index
    %c2_48 = arith.constant 2 : index
    %c0_49 = arith.constant 0 : index
    %106 = vector.load %arg5[%c1_47, %c2_48, %c0_49] : memref<3x3x16xf32, #tpu.memory_space<vmem>>, vector<1x1x16xf32>
    %107 = vector.shape_cast %106 : vector<1x1x16xf32> to vector<1x16xf32>
    %108 = vector.shape_cast %107 : vector<1x16xf32> to vector<1x1x16xf32>
    %109 = vector.broadcast %108 : vector<1x1x16xf32> to vector<8x8x16xf32>
    %110 = arith.mulf %105, %109 : vector<8x8x16xf32>
    %111 = arith.addf %104, %110 : vector<8x8x16xf32>
    %c2_50 = arith.constant 2 : index
    %c7_51 = arith.constant 7 : index
    %c0_52 = arith.constant 0 : index
    %112 = vector.load %arg16[%c2_50, %c7_51, %c0_52] : memref<10x24x16xf32, #tpu.memory_space<vmem>>, vector<8x8x16xf32>
    %c2_53 = arith.constant 2 : index
    %c0_54 = arith.constant 0 : index
    %c0_55 = arith.constant 0 : index
    %113 = vector.load %arg5[%c2_53, %c0_54, %c0_55] : memref<3x3x16xf32, #tpu.memory_space<vmem>>, vector<1x1x16xf32>
    %114 = vector.shape_cast %113 : vector<1x1x16xf32> to vector<1x16xf32>
    %115 = vector.shape_cast %114 : vector<1x16xf32> to vector<1x1x16xf32>
    %116 = vector.broadcast %115 : vector<1x1x16xf32> to vector<8x8x16xf32>
    %117 = arith.mulf %112, %116 : vector<8x8x16xf32>
    %118 = arith.addf %111, %117 : vector<8x8x16xf32>
    %c2_56 = arith.constant 2 : index
    %c8_57 = arith.constant 8 : index
    %c0_58 = arith.constant 0 : index
    %119 = vector.load %arg16[%c2_56, %c8_57, %c0_58] : memref<10x24x16xf32, #tpu.memory_space<vmem>>, vector<8x8x16xf32>
    %c2_59 = arith.constant 2 : index
    %c1_60 = arith.constant 1 : index
    %c0_61 = arith.constant 0 : index
    %120 = vector.load %arg5[%c2_59, %c1_60, %c0_61] : memref<3x3x16xf32, #tpu.memory_space<vmem>>, vector<1x1x16xf32>
    %121 = vector.shape_cast %120 : vector<1x1x16xf32> to vector<1x16xf32>
    %122 = vector.shape_cast %121 : vector<1x16xf32> to vector<1x1x16xf32>
    %123 = vector.broadcast %122 : vector<1x1x16xf32> to vector<8x8x16xf32>
    %124 = arith.mulf %119, %123 : vector<8x8x16xf32>
    %125 = arith.addf %118, %124 : vector<8x8x16xf32>
    %c2_62 = arith.constant 2 : index
    %c9_63 = arith.constant 9 : index
    %c0_64 = arith.constant 0 : index
    %126 = vector.load %arg16[%c2_62, %c9_63, %c0_64] : memref<10x24x16xf32, #tpu.memory_space<vmem>>, vector<8x8x16xf32>
    %c2_65 = arith.constant 2 : index
    %c2_66 = arith.constant 2 : index
    %c0_67 = arith.constant 0 : index
    %127 = vector.load %arg5[%c2_65, %c2_66, %c0_67] : memref<3x3x16xf32, #tpu.memory_space<vmem>>, vector<1x1x16xf32>
    %128 = vector.shape_cast %127 : vector<1x1x16xf32> to vector<1x16xf32>
    %129 = vector.shape_cast %128 : vector<1x16xf32> to vector<1x1x16xf32>
    %130 = vector.broadcast %129 : vector<1x1x16xf32> to vector<8x8x16xf32>
    %131 = arith.mulf %126, %130 : vector<8x8x16xf32>
    %132 = arith.addf %125, %131 : vector<8x8x16xf32>
    %c0_68 = arith.constant 0 : index
    %c0_69 = arith.constant 0 : index
    %133 = vector.load %arg6[%c0_68, %c0_69] : memref<1x16xf32, #tpu.memory_space<vmem>>, vector<1x16xf32>
    %134 = vector.shape_cast %133 : vector<1x16xf32> to vector<1x1x16xf32>
    %135 = vector.broadcast %134 : vector<1x1x16xf32> to vector<8x8x16xf32>
    %136 = arith.mulf %132, %135 : vector<8x8x16xf32>
    %c0_70 = arith.constant 0 : index
    %c0_71 = arith.constant 0 : index
    %137 = vector.load %arg7[%c0_70, %c0_71] : memref<1x16xf32, #tpu.memory_space<vmem>>, vector<1x16xf32>
    %138 = vector.shape_cast %137 : vector<1x16xf32> to vector<1x1x16xf32>
    %139 = vector.broadcast %138 : vector<1x1x16xf32> to vector<8x8x16xf32>
    %140 = arith.addf %136, %139 : vector<8x8x16xf32>
    %cst_72 = arith.constant 3.000000e+00 : f32
    %141 = vector.broadcast %cst_72 : f32 to vector<8x8x16xf32>
    %142 = arith.addf %140, %141 : vector<8x8x16xf32>
    %cst_73 = arith.constant 0.000000e+00 : f32
    %cst_74 = arith.constant 6.000000e+00 : f32
    %143 = vector.broadcast %cst_73 : f32 to vector<8x8x16xf32>
    %144 = arith.maximumf %143, %142 : vector<8x8x16xf32>
    %145 = vector.broadcast %cst_74 : f32 to vector<8x8x16xf32>
    %146 = arith.minimumf %145, %144 : vector<8x8x16xf32>
    %147 = arith.mulf %140, %146 : vector<8x8x16xf32>
    %cst_75 = arith.constant 0.166666672 : f32
    %148 = vector.broadcast %cst_75 : f32 to vector<8x8x16xf32>
    %149 = arith.mulf %147, %148 : vector<8x8x16xf32>
    %150 = vector.shape_cast %149 : vector<8x8x16xf32> to vector<64x16xf32>
    %cst_76 = arith.constant dense<0.000000e+00> : vector<16xf32>
    %151 = vector.multi_reduction <add>, %150, %cst_76 [0] : vector<64x16xf32> to vector<16xf32>
    %152 = vector.shape_cast %151 : vector<16xf32> to vector<1x16xf32>
    %cst_77 = arith.constant 6.400000e+01 : f32
    %153 = vector.broadcast %cst_77 : f32 to vector<1x16xf32>
    %154 = arith.divf %152, %153 : vector<1x16xf32>
    %c0_78 = arith.constant 0 : index
    %c0_79 = arith.constant 0 : index
    %155 = vector.load %arg8[%c0_78, %c0_79] : memref<4x16xf32, #tpu.memory_space<vmem>>, vector<4x16xf32>
    %156 = vector.broadcast %154 : vector<1x16xf32> to vector<4x16xf32>
    %157 = arith.mulf %155, %156 : vector<4x16xf32>
    %cst_80 = arith.constant dense<0.000000e+00> : vector<4xf32>
    %158 = vector.multi_reduction <add>, %157, %cst_80 [1] : vector<4x16xf32> to vector<4xf32>
    %159 = vector.shape_cast %158 : vector<4xf32> to vector<4x1xf32>
    %c0_81 = arith.constant 0 : index
    %c0_82 = arith.constant 0 : index
    %160 = vector.load %arg9[%c0_81, %c0_82] : memref<4x1xf32, #tpu.memory_space<vmem>>, vector<4x1xf32>
    %161 = arith.addf %159, %160 : vector<4x1xf32>
    %cst_83 = arith.constant 0.000000e+00 : f32
    %162 = vector.broadcast %cst_83 : f32 to vector<4x1xf32>
    %163 = arith.maximumf %161, %162 : vector<4x1xf32>
    %c0_84 = arith.constant 0 : index
    %c0_85 = arith.constant 0 : index
    %164 = vector.load %arg10[%c0_84, %c0_85] : memref<4x16xf32, #tpu.memory_space<vmem>>, vector<4x16xf32>
    %165 = vector.broadcast %163 : vector<4x1xf32> to vector<4x16xf32>
    %166 = arith.mulf %164, %165 : vector<4x16xf32>
    %cst_86 = arith.constant dense<0.000000e+00> : vector<16xf32>
    %167 = vector.multi_reduction <add>, %166, %cst_86 [0] : vector<4x16xf32> to vector<16xf32>
    %168 = vector.shape_cast %167 : vector<16xf32> to vector<1x16xf32>
    %c0_87 = arith.constant 0 : index
    %c0_88 = arith.constant 0 : index
    %169 = vector.load %arg11[%c0_87, %c0_88] : memref<1x16xf32, #tpu.memory_space<vmem>>, vector<1x16xf32>
    %170 = arith.addf %168, %169 : vector<1x16xf32>
    %cst_89 = arith.constant 3.000000e+00 : f32
    %171 = vector.broadcast %cst_89 : f32 to vector<1x16xf32>
    %172 = arith.addf %170, %171 : vector<1x16xf32>
    %cst_90 = arith.constant 0.000000e+00 : f32
    %cst_91 = arith.constant 6.000000e+00 : f32
    %173 = vector.broadcast %cst_90 : f32 to vector<1x16xf32>
    %174 = arith.maximumf %173, %172 : vector<1x16xf32>
    %175 = vector.broadcast %cst_91 : f32 to vector<1x16xf32>
    %176 = arith.minimumf %175, %174 : vector<1x16xf32>
    %cst_92 = arith.constant 0.166666672 : f32
    %177 = vector.broadcast %cst_92 : f32 to vector<1x16xf32>
    %178 = arith.mulf %176, %177 : vector<1x16xf32>
    %179 = vector.broadcast %178 : vector<1x16xf32> to vector<64x16xf32>
    %180 = arith.mulf %150, %179 : vector<64x16xf32>
    %c0_93 = arith.constant 0 : index
    %c0_94 = arith.constant 0 : index
    %181 = vector.load %arg12[%c0_93, %c0_94] : memref<16x8xf32, #tpu.memory_space<vmem>>, vector<16x8xf32>
    %182 = vector.extract_strided_slice %180 {offsets = [0, 0], sizes = [64, 1], strides = [1, 1]} : vector<64x16xf32> to vector<64x1xf32>
    %183 = vector.extract_strided_slice %181 {offsets = [0, 0], sizes = [1, 8], strides = [1, 1]} : vector<16x8xf32> to vector<1x8xf32>
    %184 = vector.broadcast %182 : vector<64x1xf32> to vector<64x8xf32>
    %185 = vector.broadcast %183 : vector<1x8xf32> to vector<64x8xf32>
    %186 = arith.mulf %184, %185 : vector<64x8xf32>
    %187 = vector.extract_strided_slice %180 {offsets = [0, 1], sizes = [64, 1], strides = [1, 1]} : vector<64x16xf32> to vector<64x1xf32>
    %188 = vector.extract_strided_slice %181 {offsets = [1, 0], sizes = [1, 8], strides = [1, 1]} : vector<16x8xf32> to vector<1x8xf32>
    %189 = vector.broadcast %187 : vector<64x1xf32> to vector<64x8xf32>
    %190 = vector.broadcast %188 : vector<1x8xf32> to vector<64x8xf32>
    %191 = arith.mulf %189, %190 : vector<64x8xf32>
    %192 = arith.addf %186, %191 : vector<64x8xf32>
    %193 = vector.extract_strided_slice %180 {offsets = [0, 2], sizes = [64, 1], strides = [1, 1]} : vector<64x16xf32> to vector<64x1xf32>
    %194 = vector.extract_strided_slice %181 {offsets = [2, 0], sizes = [1, 8], strides = [1, 1]} : vector<16x8xf32> to vector<1x8xf32>
    %195 = vector.broadcast %193 : vector<64x1xf32> to vector<64x8xf32>
    %196 = vector.broadcast %194 : vector<1x8xf32> to vector<64x8xf32>
    %197 = arith.mulf %195, %196 : vector<64x8xf32>
    %198 = arith.addf %192, %197 : vector<64x8xf32>
    %199 = vector.extract_strided_slice %180 {offsets = [0, 3], sizes = [64, 1], strides = [1, 1]} : vector<64x16xf32> to vector<64x1xf32>
    %200 = vector.extract_strided_slice %181 {offsets = [3, 0], sizes = [1, 8], strides = [1, 1]} : vector<16x8xf32> to vector<1x8xf32>
    %201 = vector.broadcast %199 : vector<64x1xf32> to vector<64x8xf32>
    %202 = vector.broadcast %200 : vector<1x8xf32> to vector<64x8xf32>
    %203 = arith.mulf %201, %202 : vector<64x8xf32>
    %204 = arith.addf %198, %203 : vector<64x8xf32>
    %205 = vector.extract_strided_slice %180 {offsets = [0, 4], sizes = [64, 1], strides = [1, 1]} : vector<64x16xf32> to vector<64x1xf32>
    %206 = vector.extract_strided_slice %181 {offsets = [4, 0], sizes = [1, 8], strides = [1, 1]} : vector<16x8xf32> to vector<1x8xf32>
    %207 = vector.broadcast %205 : vector<64x1xf32> to vector<64x8xf32>
    %208 = vector.broadcast %206 : vector<1x8xf32> to vector<64x8xf32>
    %209 = arith.mulf %207, %208 : vector<64x8xf32>
    %210 = arith.addf %204, %209 : vector<64x8xf32>
    %211 = vector.extract_strided_slice %180 {offsets = [0, 5], sizes = [64, 1], strides = [1, 1]} : vector<64x16xf32> to vector<64x1xf32>
    %212 = vector.extract_strided_slice %181 {offsets = [5, 0], sizes = [1, 8], strides = [1, 1]} : vector<16x8xf32> to vector<1x8xf32>
    %213 = vector.broadcast %211 : vector<64x1xf32> to vector<64x8xf32>
    %214 = vector.broadcast %212 : vector<1x8xf32> to vector<64x8xf32>
    %215 = arith.mulf %213, %214 : vector<64x8xf32>
    %216 = arith.addf %210, %215 : vector<64x8xf32>
    %217 = vector.extract_strided_slice %180 {offsets = [0, 6], sizes = [64, 1], strides = [1, 1]} : vector<64x16xf32> to vector<64x1xf32>
    %218 = vector.extract_strided_slice %181 {offsets = [6, 0], sizes = [1, 8], strides = [1, 1]} : vector<16x8xf32> to vector<1x8xf32>
    %219 = vector.broadcast %217 : vector<64x1xf32> to vector<64x8xf32>
    %220 = vector.broadcast %218 : vector<1x8xf32> to vector<64x8xf32>
    %221 = arith.mulf %219, %220 : vector<64x8xf32>
    %222 = arith.addf %216, %221 : vector<64x8xf32>
    %223 = vector.extract_strided_slice %180 {offsets = [0, 7], sizes = [64, 1], strides = [1, 1]} : vector<64x16xf32> to vector<64x1xf32>
    %224 = vector.extract_strided_slice %181 {offsets = [7, 0], sizes = [1, 8], strides = [1, 1]} : vector<16x8xf32> to vector<1x8xf32>
    %225 = vector.broadcast %223 : vector<64x1xf32> to vector<64x8xf32>
    %226 = vector.broadcast %224 : vector<1x8xf32> to vector<64x8xf32>
    %227 = arith.mulf %225, %226 : vector<64x8xf32>
    %228 = arith.addf %222, %227 : vector<64x8xf32>
    %229 = vector.extract_strided_slice %180 {offsets = [0, 8], sizes = [64, 1], strides = [1, 1]} : vector<64x16xf32> to vector<64x1xf32>
    %230 = vector.extract_strided_slice %181 {offsets = [8, 0], sizes = [1, 8], strides = [1, 1]} : vector<16x8xf32> to vector<1x8xf32>
    %231 = vector.broadcast %229 : vector<64x1xf32> to vector<64x8xf32>
    %232 = vector.broadcast %230 : vector<1x8xf32> to vector<64x8xf32>
    %233 = arith.mulf %231, %232 : vector<64x8xf32>
    %234 = arith.addf %228, %233 : vector<64x8xf32>
    %235 = vector.extract_strided_slice %180 {offsets = [0, 9], sizes = [64, 1], strides = [1, 1]} : vector<64x16xf32> to vector<64x1xf32>
    %236 = vector.extract_strided_slice %181 {offsets = [9, 0], sizes = [1, 8], strides = [1, 1]} : vector<16x8xf32> to vector<1x8xf32>
    %237 = vector.broadcast %235 : vector<64x1xf32> to vector<64x8xf32>
    %238 = vector.broadcast %236 : vector<1x8xf32> to vector<64x8xf32>
    %239 = arith.mulf %237, %238 : vector<64x8xf32>
    %240 = arith.addf %234, %239 : vector<64x8xf32>
    %241 = vector.extract_strided_slice %180 {offsets = [0, 10], sizes = [64, 1], strides = [1, 1]} : vector<64x16xf32> to vector<64x1xf32>
    %242 = vector.extract_strided_slice %181 {offsets = [10, 0], sizes = [1, 8], strides = [1, 1]} : vector<16x8xf32> to vector<1x8xf32>
    %243 = vector.broadcast %241 : vector<64x1xf32> to vector<64x8xf32>
    %244 = vector.broadcast %242 : vector<1x8xf32> to vector<64x8xf32>
    %245 = arith.mulf %243, %244 : vector<64x8xf32>
    %246 = arith.addf %240, %245 : vector<64x8xf32>
    %247 = vector.extract_strided_slice %180 {offsets = [0, 11], sizes = [64, 1], strides = [1, 1]} : vector<64x16xf32> to vector<64x1xf32>
    %248 = vector.extract_strided_slice %181 {offsets = [11, 0], sizes = [1, 8], strides = [1, 1]} : vector<16x8xf32> to vector<1x8xf32>
    %249 = vector.broadcast %247 : vector<64x1xf32> to vector<64x8xf32>
    %250 = vector.broadcast %248 : vector<1x8xf32> to vector<64x8xf32>
    %251 = arith.mulf %249, %250 : vector<64x8xf32>
    %252 = arith.addf %246, %251 : vector<64x8xf32>
    %253 = vector.extract_strided_slice %180 {offsets = [0, 12], sizes = [64, 1], strides = [1, 1]} : vector<64x16xf32> to vector<64x1xf32>
    %254 = vector.extract_strided_slice %181 {offsets = [12, 0], sizes = [1, 8], strides = [1, 1]} : vector<16x8xf32> to vector<1x8xf32>
    %255 = vector.broadcast %253 : vector<64x1xf32> to vector<64x8xf32>
    %256 = vector.broadcast %254 : vector<1x8xf32> to vector<64x8xf32>
    %257 = arith.mulf %255, %256 : vector<64x8xf32>
    %258 = arith.addf %252, %257 : vector<64x8xf32>
    %259 = vector.extract_strided_slice %180 {offsets = [0, 13], sizes = [64, 1], strides = [1, 1]} : vector<64x16xf32> to vector<64x1xf32>
    %260 = vector.extract_strided_slice %181 {offsets = [13, 0], sizes = [1, 8], strides = [1, 1]} : vector<16x8xf32> to vector<1x8xf32>
    %261 = vector.broadcast %259 : vector<64x1xf32> to vector<64x8xf32>
    %262 = vector.broadcast %260 : vector<1x8xf32> to vector<64x8xf32>
    %263 = arith.mulf %261, %262 : vector<64x8xf32>
    %264 = arith.addf %258, %263 : vector<64x8xf32>
    %265 = vector.extract_strided_slice %180 {offsets = [0, 14], sizes = [64, 1], strides = [1, 1]} : vector<64x16xf32> to vector<64x1xf32>
    %266 = vector.extract_strided_slice %181 {offsets = [14, 0], sizes = [1, 8], strides = [1, 1]} : vector<16x8xf32> to vector<1x8xf32>
    %267 = vector.broadcast %265 : vector<64x1xf32> to vector<64x8xf32>
    %268 = vector.broadcast %266 : vector<1x8xf32> to vector<64x8xf32>
    %269 = arith.mulf %267, %268 : vector<64x8xf32>
    %270 = arith.addf %264, %269 : vector<64x8xf32>
    %271 = vector.extract_strided_slice %180 {offsets = [0, 15], sizes = [64, 1], strides = [1, 1]} : vector<64x16xf32> to vector<64x1xf32>
    %272 = vector.extract_strided_slice %181 {offsets = [15, 0], sizes = [1, 8], strides = [1, 1]} : vector<16x8xf32> to vector<1x8xf32>
    %273 = vector.broadcast %271 : vector<64x1xf32> to vector<64x8xf32>
    %274 = vector.broadcast %272 : vector<1x8xf32> to vector<64x8xf32>
    %275 = arith.mulf %273, %274 : vector<64x8xf32>
    %276 = arith.addf %270, %275 : vector<64x8xf32>
    %c0_95 = arith.constant 0 : index
    %c0_96 = arith.constant 0 : index
    %277 = vector.load %arg13[%c0_95, %c0_96] : memref<1x8xf32, #tpu.memory_space<vmem>>, vector<1x8xf32>
    %278 = vector.broadcast %277 : vector<1x8xf32> to vector<64x8xf32>
    %279 = arith.mulf %276, %278 : vector<64x8xf32>
    %c0_97 = arith.constant 0 : index
    %c0_98 = arith.constant 0 : index
    %280 = vector.load %arg14[%c0_97, %c0_98] : memref<1x8xf32, #tpu.memory_space<vmem>>, vector<1x8xf32>
    %281 = vector.broadcast %280 : vector<1x8xf32> to vector<64x8xf32>
    %282 = arith.addf %279, %281 : vector<64x8xf32>
    %283 = arith.addf %282, %1 : vector<64x8xf32>
    %c0_99 = arith.constant 0 : index
    %c0_100 = arith.constant 0 : index
    %c0_101 = arith.constant 0 : index
    %284 = vector.load %arg15[%c0_99, %c0_100, %c0_101] : memref<1x64x8xf32, #tpu.memory_space<vmem>>, vector<1x64x8xf32>
    %285 = vector.shape_cast %284 : vector<1x64x8xf32> to vector<64x8xf32>
    %286 = vector.shape_cast %283 : vector<64x8xf32> to vector<1x64x8xf32>
    tpu.vector_store %arg15[%c0_99, %c0_100, %c0_101], %286 {strides = array<i32>} : memref<1x64x8xf32, #tpu.memory_space<vmem>>, vector<1x64x8xf32>,
    return
  }
  func.func @transform_0(%arg0: i32) -> (i32, i32, i32) {
    %c0_i32 = arith.constant 0 : i32
    %c0_i32_0 = arith.constant 0 : i32
    %c0_i32_1 = arith.constant 0 : i32
    return %arg0, %c0_i32, %c0_i32_0 : i32, i32, i32
  }
  func.func @transform_1(%arg0: i32) -> (i32, i32) {
    %c0_i32 = arith.constant 0 : i32
    %c0_i32_0 = arith.constant 0 : i32
    %c0_i32_1 = arith.constant 0 : i32
    return %c0_i32, %c0_i32_0 : i32, i32
  }
  func.func @transform_2(%arg0: i32) -> (i32, i32) {
    %c0_i32 = arith.constant 0 : i32
    %c0_i32_0 = arith.constant 0 : i32
    %c0_i32_1 = arith.constant 0 : i32
    return %c0_i32, %c0_i32_0 : i32, i32
  }
  func.func @transform_3(%arg0: i32) -> (i32, i32) {
    %c0_i32 = arith.constant 0 : i32
    %c0_i32_0 = arith.constant 0 : i32
    %c0_i32_1 = arith.constant 0 : i32
    return %c0_i32, %c0_i32_0 : i32, i32
  }
  func.func @transform_4(%arg0: i32) -> (i32, i32, i32) {
    %c0_i32 = arith.constant 0 : i32
    %c0_i32_0 = arith.constant 0 : i32
    %c0_i32_1 = arith.constant 0 : i32
    %c0_i32_2 = arith.constant 0 : i32
    return %c0_i32, %c0_i32_0, %c0_i32_1 : i32, i32, i32
  }
  func.func @transform_5(%arg0: i32) -> (i32, i32) {
    %c0_i32 = arith.constant 0 : i32
    %c0_i32_0 = arith.constant 0 : i32
    %c0_i32_1 = arith.constant 0 : i32
    return %c0_i32, %c0_i32_0 : i32, i32
  }
  func.func @transform_6(%arg0: i32) -> (i32, i32) {
    %c0_i32 = arith.constant 0 : i32
    %c0_i32_0 = arith.constant 0 : i32
    %c0_i32_1 = arith.constant 0 : i32
    return %c0_i32, %c0_i32_0 : i32, i32
  }
  func.func @transform_7(%arg0: i32) -> (i32, i32) {
    %c0_i32 = arith.constant 0 : i32
    %c0_i32_0 = arith.constant 0 : i32
    %c0_i32_1 = arith.constant 0 : i32
    return %c0_i32, %c0_i32_0 : i32, i32
  }
  func.func @transform_8(%arg0: i32) -> (i32, i32) {
    %c0_i32 = arith.constant 0 : i32
    %c0_i32_0 = arith.constant 0 : i32
    %c0_i32_1 = arith.constant 0 : i32
    return %c0_i32, %c0_i32_0 : i32, i32
  }
  func.func @transform_9(%arg0: i32) -> (i32, i32) {
    %c0_i32 = arith.constant 0 : i32
    %c0_i32_0 = arith.constant 0 : i32
    %c0_i32_1 = arith.constant 0 : i32
    return %c0_i32, %c0_i32_0 : i32, i32
  }
  func.func @transform_10(%arg0: i32) -> (i32, i32) {
    %c0_i32 = arith.constant 0 : i32
    %c0_i32_0 = arith.constant 0 : i32
    %c0_i32_1 = arith.constant 0 : i32
    return %c0_i32, %c0_i32_0 : i32, i32
  }
  func.func @transform_11(%arg0: i32) -> (i32, i32) {
    %c0_i32 = arith.constant 0 : i32
    %c0_i32_0 = arith.constant 0 : i32
    %c0_i32_1 = arith.constant 0 : i32
    return %c0_i32, %c0_i32_0 : i32, i32
  }
  func.func @transform_12(%arg0: i32) -> (i32, i32) {
    %c0_i32 = arith.constant 0 : i32
    %c0_i32_0 = arith.constant 0 : i32
    %c0_i32_1 = arith.constant 0 : i32
    return %c0_i32, %c0_i32_0 : i32, i32
  }
  func.func @transform_13(%arg0: i32) -> (i32, i32) {
    %c0_i32 = arith.constant 0 : i32
    %c0_i32_0 = arith.constant 0 : i32
    %c0_i32_1 = arith.constant 0 : i32
    return %c0_i32, %c0_i32_0 : i32, i32
  }
  func.func @transform_14(%arg0: i32) -> (i32, i32, i32) {
    %c0_i32 = arith.constant 0 : i32
    %c0_i32_0 = arith.constant 0 : i32
    %c0_i32_1 = arith.constant 0 : i32
    return %arg0, %c0_i32, %c0_i32_0 : i32, i32, i32
  }
}

</mosaic_0001>

<llo_original>
// kernel: _lambda_.3
$region0: #{_lambda_.3}
  #allocation0 [shape = 'u32[]', space=smem, size = 0x4, offset = 0x4, fixed_abs, tag = 'smem constant byte address 0x4 - core index']
  #allocation1 [shape = 'u32[144,128]{1,0:T(1,128)}', space=vmem, size = 0x12000, scoped, tag = 'internal scratch']
  %s0 = inlined_call_operand.vmem [shape: f32[2,8,2,8,8], index: 0, kind: input, shape index: {}]
  %s1 = inlined_call_operand.vmem [shape: f32[2,2,4], index: 1, kind: input, shape index: {}]
  %s2 = inlined_call_operand.vmem [shape: f32[1,4], index: 2, kind: input, shape index: {}]
  %s3 = inlined_call_operand.vmem [shape: f32[1,4], index: 3, kind: input, shape index: {}]
  %s4 = inlined_call_operand.vmem [shape: f32[2,8,8,4], index: 4, kind: output, shape index: {}]
  %s5 = sld [smem:[#allocation0]]
  $region49: #{_lambda_.3} parent=0
    _
  %s7 = ssub.s32 1, %s5
  %s8 = scalar_select 0, %s7, %s5
  loop: start=0, step=1, limit=6
  $region2: #{_lambda_.3} parent=0 // loop_pre_header
    _
  $region3: #{_lambda_.3} parent=0 // loop_header
    %s10 = sphi 0, %s14
    %p11 = scmp.ge.s32.totalorder %s10, 6
    %s17 = sphi 0, %s29
    %s18 = sphi 0, %s25
    %s19 = sphi 0, %s17
    %s20 = sphi 0, %s18
    %s21 = sphi 0, %s19
    %s22 = sphi 0, %s20
    %s34 = sphi 0, %s36
    %s37 = sphi 0, %s34
    %s38 = sphi 0, %s37
    %s54 = sphi 0, %s38
    %s58 = sphi 0, %s58
    %s60 = sphi 0, %s58
    %s61 = sphi 0, %s60
    %s75 = sphi 0, %s61
    %s79 = sphi 0, %s79
    %s81 = sphi 0, %s79
    %s82 = sphi 0, %s81
    %s96 = sphi 0, %s82
    %s100 = sphi 0, %s100
    %s102 = sphi 0, %s100
    %s103 = sphi 0, %s102
    %s117 = sphi 0, %s103
    %s125 = sphi 0, %s127
    %s128 = sphi 0, %s125
    %s129 = sphi 0, %s128
    %s145 = sphi 0, %s129
  $region4: #{_lambda_.3} parent=0 // loop_header_branch
    %13 = sbr.rel (%p11) target = $region8
  $region5: #{_lambda_.3} parent=0 // loop_body
    %s15 = ssub.s32 %s10, 1
    %s16 = ssub.s32 %s10, 2
    %s23 = sadd.s32 1, %s18
    %p24 = scmp.ge.s32.totalorder %s23, 2
    %s25 = scalar_select %p24, 0, %s23
    %s26 = sadd.s32 1, %s17
    %s27 = scalar_select %p24, %s26, %s17
    %p28 = scmp.ge.s32.totalorder %s27, 2
    %s29 = scalar_select %p28, 0, %s27
    %s30 = ssub.s32 %s17, %s29
    %s31 = ssub.s32 %s18, %s25
    %s32 = sor.u32 %s30, %s31
    %p33 = scmp.eq.s32.totalorder %s32, 0
    %s35 = sadd.s32 %s34, 1
    %s36 = scalar_select %p33, %s34, %s35
    %p39 = pneg %p33
    %p40 = scmp.eq.s32.totalorder %s10, 3
    %p41 = por %p39, %p40
    %p42 = scmp.ne.s32.totalorder %s34, %s37
    %p43 = scmp.eq.s32.totalorder %s10, 0
    %p44 = por %p42, %p43
    %p45 = scmp.ne.s32.totalorder %s34, %s37
    %p46 = scmp.eq.s32.totalorder %s15, 3
    %p47 = por %p45, %p46
    %p48 = scmp.ne.s32.totalorder %s37, %s38
    %p49 = scmp.eq.s32.totalorder %s15, 0
    %p50 = por %p48, %p49
    %p51 = scmp.ne.s32.totalorder %s37, %s38
    %p52 = scmp.eq.s32.totalorder %s16, 3
    %p53 = por %p51, %p52
    %p55 = scmp.ne.s32.totalorder %s38, %s54
    %p56 = scmp.eq.s32.totalorder %s16, 0
    %p57 = por %p55, %p56
    %s59 = sadd.s32 %s58, 1
    %p62 = scmp.eq.s32.totalorder %s10, 3
    %p63 = scmp.ne.s32.totalorder %s58, %s60
    %p64 = scmp.eq.s32.totalorder %s10, 0
    %p65 = por %p63, %p64
    %p66 = scmp.ne.s32.totalorder %s58, %s60
    %p67 = scmp.eq.s32.totalorder %s15, 3
    %p68 = por %p66, %p67
    %p69 = scmp.ne.s32.totalorder %s60, %s61
    %p70 = scmp.eq.s32.totalorder %s15, 0
    %p71 = por %p69, %p70
    %p72 = scmp.ne.s32.totalorder %s60, %s61
    %p73 = scmp.eq.s32.totalorder %s16, 3
    %p74 = por %p72, %p73
    %p76 = scmp.ne.s32.totalorder %s61, %s75
    %p77 = scmp.eq.s32.totalorder %s16, 0
    %p78 = por %p76, %p77
    %s80 = sadd.s32 %s79, 1
    %p83 = scmp.eq.s32.totalorder %s10, 3
    %p84 = scmp.ne.s32.totalorder %s79, %s81
    %p85 = scmp.eq.s32.totalorder %s10, 0
    %p86 = por %p84, %p85
    %p87 = scmp.ne.s32.totalorder %s79, %s81
    %p88 = scmp.eq.s32.totalorder %s15, 3
    %p89 = por %p87, %p88
    %p90 = scmp.ne.s32.totalorder %s81, %s82
    %p91 = scmp.eq.s32.totalorder %s15, 0
    %p92 = por %p90, %p91
    %p93 = scmp.ne.s32.totalorder %s81, %s82
    %p94 = scmp.eq.s32.totalorder %s16, 3
    %p95 = por %p93, %p94
    %p97 = scmp.ne.s32.totalorder %s82, %s96
    %p98 = scmp.eq.s32.totalorder %s16, 0
    %p99 = por %p97, %p98
    %s101 = sadd.s32 %s100, 1
    %p104 = scmp.eq.s32.totalorder %s10, 3
    %p105 = scmp.ne.s32.totalorder %s100, %s102
    %p106 = scmp.eq.s32.totalorder %s10, 0
    %p107 = por %p105, %p106
    %p108 = scmp.ne.s32.totalorder %s100, %s102
    %p109 = scmp.eq.s32.totalorder %s15, 3
    %p110 = por %p108, %p109
    %p111 = scmp.ne.s32.totalorder %s102, %s103
    %p112 = scmp.eq.s32.totalorder %s15, 0
    %p113 = por %p111, %p112
    %p114 = scmp.ne.s32.totalorder %s102, %s103
    %p115 = scmp.eq.s32.totalorder %s16, 3
    %p116 = por %p114, %p115
    %p118 = scmp.ne.s32.totalorder %s103, %s117
    %p119 = scmp.eq.s32.totalorder %s16, 0
    %p120 = por %p118, %p119
    %s121 = ssub.s32 %s17, %s29
    %s122 = ssub.s32 %s18, %s25
    %s123 = sor.u32 %s121, %s122
    %p124 = scmp.eq.s32.totalorder %s123, 0
    %s126 = sadd.s32 %s125, 1
    %s127 = scalar_select %p124, %s125, %s126
    %p130 = pneg %p124
    %p131 = scmp.eq.s32.totalorder %s10, 3
    %p132 = por %p130, %p131
    %p133 = scmp.ne.s32.totalorder %s125, %s128
    %p134 = scmp.eq.s32.totalorder %s10, 0
    %p135 = por %p133, %p134
    %p136 = scmp.ne.s32.totalorder %s125, %s128
    %p137 = scmp.eq.s32.totalorder %s15, 3
    %p138 = por %p136, %p137
    %p139 = scmp.ne.s32.totalorder %s128, %s129
    %p140 = scmp.eq.s32.totalorder %s15, 0
    %p141 = por %p139, %p140
    %p142 = scmp.ne.s32.totalorder %s128, %s129
    %p143 = scmp.eq.s32.totalorder %s16, 3
    %p144 = por %p142, %p143
    %p146 = scmp.ne.s32.totalorder %s129, %s145
    %p147 = scmp.eq.s32.totalorder %s16, 0
    %p148 = por %p146, %p147
    %p149 = scmp.le.s32.totalorder 1, %s10
    %p150 = scmp.lt.s32.totalorder %s10, 5
    %p151 = pnand %p149, %p150
    %p152 = pneg %p151
    // Predicated region
    $region9: #{_lambda_.3} parent=5 // pred_check
      _
    $region10: #{_lambda_.3} parent=5 // pred_check_branch
      %154 = sbr.rel (%p151) target = $region12
    $region11: #{_lambda_.3} parent=5 // pred_region
      %s155 = ssub.s32 %s10, 1
      // Predicated region
      $region13: #{_lambda_.3} parent=11 // pred_check
        %p156 = pneg %p71
      $region14: #{_lambda_.3} parent=11 // pred_check_branch
        %158 = sbr.rel (%p156) target = $region16
      $region15: #{_lambda_.3} parent=11 // pred_region
        _
      $region16: #{_lambda_.3} parent=11 // pred_fallthru
        _
      // Predicated region
      $region17: #{_lambda_.3} parent=11 // pred_check
        %p159 = pneg %p92
      $region18: #{_lambda_.3} parent=11 // pred_check_branch
        %161 = sbr.rel (%p159) target = $region20
      $region19: #{_lambda_.3} parent=11 // pred_region
        _
      $region20: #{_lambda_.3} parent=11 // pred_fallthru
        _
      // Predicated region
      $region21: #{_lambda_.3} parent=11 // pred_check
        %p162 = pneg %p113
      $region22: #{_lambda_.3} parent=11 // pred_check_branch
        %164 = sbr.rel (%p162) target = $region24
      $region23: #{_lambda_.3} parent=11 // pred_region
        _
      $region24: #{_lambda_.3} parent=11 // pred_fallthru
        _
    $region12: #{_lambda_.3} parent=5 // pred_fallthru
      _
    %p165 = scmp.lt.s32.totalorder %s10, 4
    // Predicated region
    $region25: #{_lambda_.3} parent=5 // pred_check
      %p166 = pneg %p165
    $region26: #{_lambda_.3} parent=5 // pred_check_branch
      %168 = sbr.rel (%p166) target = $region28
    $region27: #{_lambda_.3} parent=5 // pred_region
      // Predicated region
      $region29: #{_lambda_.3} parent=27 // pred_check
        %p169 = pneg %p44
      $region30: #{_lambda_.3} parent=27 // pred_check_branch
        %171 = sbr.rel (%p169) target = $region32
      $region31: #{_lambda_.3} parent=27 // pred_region
        %s172 = smul.u32 4, %s18
        %p173 = scmp.lt.s32.totalorder %s17, 1
        %s174 = scalar_select %p173, %s17, 1
        %p175 = scmp.lt.s32.totalorder %s172, 7
        %s176 = scalar_select %p175, %s172, 7
        %s177 = smul.addr %s176, 2
        %s178 = smul.addr %s174, 16
        %s179 = sadd.s32 %s177, %s178
        %s180 = smul.addr %s179, 8
        %s181 = scalar_lea.vmem %s0, %s180
        %s182 = smul.u32 4, %s18
      $region32: #{_lambda_.3} parent=27 // pred_fallthru
        _
    $region28: #{_lambda_.3} parent=5 // pred_fallthru
      _
    %p183 = scmp.le.s32.totalorder 1, %s10
    %p184 = scmp.lt.s32.totalorder %s10, 5
    %p185 = pnand %p183, %p184
    %p186 = pneg %p185
    // Predicated region
    $region33: #{_lambda_.3} parent=5 // pred_check
      _
    $region34: #{_lambda_.3} parent=5 // pred_check_branch
      %188 = sbr.rel (%p185) target = $region36
    $region35: #{_lambda_.3} parent=5 // pred_region
      %s189 = ssub.s32 %s10, 1
      %s190 = smul.u32 4, %s20
      %p191 = scmp.lt.s32.totalorder %s19, 1
      %s192 = scalar_select %p191, %s19, 1
      %p193 = scmp.lt.s32.totalorder %s190, 7
      %s194 = scalar_select %p193, %s190, 7
      %s195 = smul.addr %s194, 2
      %s196 = smul.addr %s192, 16
      %s197 = sadd.s32 %s195, %s196
      %s198 = smul.addr %s197, 8
      %s199 = scalar_lea.vmem %s0, %s198
      %p200 = pneg %p50
      %p201 = pneg %p47
      %p202 = pneg %p71
      %p203 = pneg %p68
      %p204 = pneg %p92
      %p205 = pneg %p89
      %p206 = pneg %p113
      %p207 = pneg %p110
      %p208 = pneg %p141
      %p209 = pneg %p138
      %s210 = smul.u32 4, %s20
      %p211 = scmp.lt.s32.totalorder %s19, 1
      %s212 = scalar_select %p211, %s19, 1
      %p213 = scmp.lt.s32.totalorder %s210, 7
      %s214 = scalar_select %p213, %s210, 7
      %s215 = smul.addr %s212, 8
      %s216 = sadd.s32 %s214, %s215
      %s217 = smul.addr %s216, 8
      %s218 = scalar_lea.vmem %s4, %s217
      %s219 = smul.u32 4, %s20
      %p220 = scmp.lt.s32.totalorder %s19, 1
      %s221 = scalar_select %p220, %s19, 1
      %p222 = scmp.lt.s32.totalorder %s219, 7
      %s223 = scalar_select %p222, %s219, 7
      %s224 = smul.addr %s223, 2
      %s225 = smul.addr %s221, 16
      %s226 = sadd.s32 %s224, %s225
      %s227 = smul.addr %s226, 8
      %s228 = scalar_lea.vmem %s0, %s227
      %s229 = smul.u32 4, %s20
      %s230 = smul.u32 4, %s20
      %p231 = scmp.lt.s32.totalorder %s19, 1
      %s232 = scalar_select %p231, %s19, 1
      %p233 = scmp.lt.s32.totalorder %s230, 7
      %s234 = scalar_select %p233, %s230, 7
      %s235 = smul.addr %s232, 8
      %s236 = sadd.s32 %s234, %s235
      %s237 = smul.addr %s236, 8
      %s238 = scalar_lea.vmem %s4, %s237
      %s239 = smul.u32 4, %s20
      %v240 = vld [vmem:[%s228] sm:$0xff]
      %v241 = vld [vmem:[%s228 + $0x8] sm:$0xff]
      %v242 = vld [vmem:[%s228 + $0x10] sm:$0xff]
      %v243 = vld [vmem:[%s228 + $0x18] sm:$0xff]
      %v244 = vld [vmem:[%s228 + $0x20] sm:$0xff]
      %v245 = vld [vmem:[%s228 + $0x28] sm:$0xff]
      %v246 = vld [vmem:[%s228 + $0x30] sm:$0xff]
      %v247 = vld [vmem:[%s228 + $0x38] sm:$0xff]
      %v248 = vld [vmem:[%s1] sm:$0x1]
      %v249 = vlaneseq
      %v250 = vshrl.u32 %v249, 7
      %v251 = vsub.s32 0, %v250
      %v252 = vrot.slane %v248, %v251
      %v253 = vmul.f32 %v240, %v252
      %v254 = vmul.f32 %v242, %v252
      %v255 = vmul.f32 %v244, %v252
      %v256 = vmul.f32 %v246, %v252
      %v257 = vadd.f32 %v253, 0.0
      %v258 = vadd.f32 %v254, 0.0
      %v259 = vadd.f32 %v255, 0.0
      %v260 = vadd.f32 %v256, 0.0
      %v261 = vld [vmem:[%s1 + $0x1] sm:$0x1]
      %v262 = vlaneseq
      %v263 = vshrl.u32 %v262, 7
      %v264 = vsub.s32 0, %v263
      %v265 = vrot.slane %v261, %v264
      %267 = vrot.lane.b32.xlu0 %v265, 4
      %v268 = vpop.permute.xlu0 %267
      %v270 = vmul.f32 %v240, %v268
      %v271 = vmul.f32 %v242, %v268
      %v272 = vmul.f32 %v244, %v268
      %v273 = vmul.f32 %v246, %v268
      %278 = vrot.lane.b32.xlu0 %v270, 124
      %v279 = vpop.permute.xlu0 %278
      %280 = vrot.lane.b32.xlu0 %v271, 124
      %v281 = vpop.permute.xlu0 %280
      %282 = vrot.lane.b32.xlu0 %v272, 124
      %v283 = vpop.permute.xlu0 %282
      %284 = vrot.lane.b32.xlu0 %v273, 124
      %v285 = vpop.permute.xlu0 %284
      %v290 = vadd.f32 %v257, %v279
      %v291 = vadd.f32 %v258, %v281
      %v292 = vadd.f32 %v259, %v283
      %v293 = vadd.f32 %v260, %v285
      %s294 = scalar_lea.vmem %s1, 2
      %v295 = vld [vmem:[%s294] sm:$0x1]
      %v296 = vlaneseq
      %v297 = vshrl.u32 %v296, 7
      %v298 = vsub.s32 0, %v297
      %v299 = vrot.slane %v295, %v298
      %v300 = vmul.f32 %v241, %v299
      %v301 = vmul.f32 %v243, %v299
      %v302 = vmul.f32 %v245, %v299
      %v303 = vmul.f32 %v247, %v299
      %v304 = vadd.f32 %v290, %v300
      %v305 = vadd.f32 %v291, %v301
      %v306 = vadd.f32 %v292, %v302
      %v307 = vadd.f32 %v293, %v303
      %v308 = vld [vmem:[%s294 + $0x1] sm:$0x1]
      %v309 = vlaneseq
      %v310 = vshrl.u32 %v309, 7
      %v311 = vsub.s32 0, %v310
      %v312 = vrot.slane %v308, %v311
      %314 = vrot.lane.b32.xlu0 %v312, 4
      %v315 = vpop.permute.xlu0 %314
      %v317 = vmul.f32 %v241, %v315
      %v318 = vmul.f32 %v243, %v315
      %v319 = vmul.f32 %v245, %v315
      %v320 = vmul.f32 %v247, %v315
      %325 = vrot.lane.b32.xlu0 %v317, 124
      %v326 = vpop.permute.xlu0 %325
      %327 = vrot.lane.b32.xlu0 %v318, 124
      %v328 = vpop.permute.xlu0 %327
      %329 = vrot.lane.b32.xlu0 %v319, 124
      %v330 = vpop.permute.xlu0 %329
      %331 = vrot.lane.b32.xlu0 %v320, 124
      %v332 = vpop.permute.xlu0 %331
      %v337 = vadd.f32 %v304, %v326
      %v338 = vadd.f32 %v305, %v328
      %v339 = vadd.f32 %v306, %v330
      %v340 = vadd.f32 %v307, %v332
      %v341 = vld [vmem:[%s2] sm:$0x1]
      %v343 = vlaneseq
      %v344 = vshrl.u32 %v343, 7
      %v345 = vsub.s32 0, %v344
      %v346 = vrot.slane %v341, %v345
      %v348 = vmul.f32 %v337, %v346
      %v349 = vmul.f32 %v338, %v346
      %v350 = vmul.f32 %v339, %v346
      %v351 = vmul.f32 %v340, %v346
      %v352 = vld [vmem:[%s3] sm:$0x1]
      %v354 = vlaneseq
      %v355 = vshrl.u32 %v354, 7
      %v356 = vsub.s32 0, %v355
      %v357 = vrot.slane %v352, %v356
      %v359 = vadd.f32 %v348, %v357
      %v360 = vadd.f32 %v349, %v357
      %v361 = vadd.f32 %v350, %v357
      %v362 = vadd.f32 %v351, %v357
      %v363 = vadd.f32 %v359, 3.0
      %v364 = vadd.f32 %v360, 3.0
      %v365 = vadd.f32 %v361, 3.0
      %v366 = vadd.f32 %v362, 3.0
      %v367 = vmax.f32 %v363, 0.0
      %v368 = vmax.f32 %v364, 0.0
      %v369 = vmax.f32 %v365, 0.0
      %v370 = vmax.f32 %v366, 0.0
      %v371 = vmin.f32 %v367, 6.0
      %v372 = vmin.f32 %v368, 6.0
      %v373 = vmin.f32 %v369, 6.0
      %v374 = vmin.f32 %v370, 6.0
      %v375 = vmul.f32 %v359, %v371
      %v376 = vmul.f32 %v360, %v372
      %v377 = vmul.f32 %v361, %v373
      %v378 = vmul.f32 %v362, %v374
      %v379 = vmul.f32 %v375, 0.16666667
      %v380 = vmul.f32 %v376, 0.16666667
      %v381 = vmul.f32 %v377, 0.16666667
      %v382 = vmul.f32 %v378, 0.16666667
      %vm383 = vcmask 31744
      %384 = vst.msk [vmem:[%s238] sm:$0xff] %vm383, %v379
      %385 = vst.msk [vmem:[%s238 + $0x8] sm:$0xff] %vm383, %v380
      %386 = vst.msk [vmem:[%s238 + $0x10] sm:$0xff] %vm383, %v381
      %387 = vst.msk [vmem:[%s238 + $0x18] sm:$0xff] %vm383, %v382
      %s388 = smul.u32 4, %s20
      %p389 = scmp.lt.s32.totalorder %s19, 1
      %s390 = scalar_select %p389, %s19, 1
      %p391 = scmp.lt.s32.totalorder %s388, 7
      %s392 = scalar_select %p391, %s388, 7
      %s393 = smul.addr %s390, 8
      %s394 = sadd.s32 %s392, %s393
      %s395 = smul.addr %s394, 8
      %s396 = scalar_lea.vmem %s4, %s395
      // Predicated region
      $region37: #{_lambda_.3} parent=35 // pred_check
        %p397 = pneg %p138
      $region38: #{_lambda_.3} parent=35 // pred_check_branch
        %399 = sbr.rel (%p397) target = $region40
      $region39: #{_lambda_.3} parent=35 // pred_region
        %s400 = smul.u32 4, %s20
      $region40: #{_lambda_.3} parent=35 // pred_fallthru
        _
    $region36: #{_lambda_.3} parent=5 // pred_fallthru
      _
    %p401 = scmp.le.s32.totalorder 2, %s10
    // Predicated region
    $region41: #{_lambda_.3} parent=5 // pred_check
      %p402 = pneg %p401
    $region42: #{_lambda_.3} parent=5 // pred_check_branch
      %404 = sbr.rel (%p402) target = $region44
    $region43: #{_lambda_.3} parent=5 // pred_region
      %s405 = ssub.s32 %s10, 2
      // Predicated region
      $region45: #{_lambda_.3} parent=43 // pred_check
        %p406 = pneg %p144
      $region46: #{_lambda_.3} parent=43 // pred_check_branch
        %408 = sbr.rel (%p406) target = $region48
      $region47: #{_lambda_.3} parent=43 // pred_region
        %s409 = smul.u32 4, %s22
        %p410 = scmp.lt.s32.totalorder %s21, 1
        %s411 = scalar_select %p410, %s21, 1
        %p412 = scmp.lt.s32.totalorder %s409, 7
        %s413 = scalar_select %p412, %s409, 7
        %s414 = smul.addr %s411, 8
        %s415 = sadd.s32 %s413, %s414
        %s416 = smul.addr %s415, 8
        %s417 = scalar_lea.vmem %s4, %s416
      $region48: #{_lambda_.3} parent=43 // pred_fallthru
        _
    $region44: #{_lambda_.3} parent=5 // pred_fallthru
      _
  $region6: #{_lambda_.3} parent=0 // loop_footer
    %s14 = sadd.s32 1, %s10
  $region7: #{_lambda_.3} parent=0 // loop_footer_branch
    %9 = sbr.rel target = $region3
  $region8: #{_lambda_.3} parent=0 // loop_exit
    _

// kernel: _lambda_.4
$region0: #{_lambda_.4}
  #allocation0 [shape = 'u32[]', space=smem, size = 0x4, offset = 0x4, fixed_abs, tag = 'smem constant byte address 0x4 - core index']
  #allocation1 [shape = 'u32[144,128]{1,0:T(1,128)}', space=vmem, size = 0x12000, scoped, tag = 'internal scratch']
  #allocation2 [shape = 'f32[10,24,8]{2,1,0:T(8,128)}', space=vmem, size = 0x1e000, scoped, tag = 'scratch operand']
  %s0 = inlined_call_operand.vmem [shape: f32[2,64,4], index: 0, kind: input, shape index: {}]
  %s1 = inlined_call_operand.vmem [shape: f32[4,8], index: 1, kind: input, shape index: {}]
  %s2 = inlined_call_operand.vmem [shape: f32[1,8], index: 2, kind: input, shape index: {}]
  %s3 = inlined_call_operand.vmem [shape: f32[1,8], index: 3, kind: input, shape index: {}]
  %s4 = inlined_call_operand.vmem [shape: f32[3,3,8], index: 4, kind: input, shape index: {}]
  %s5 = inlined_call_operand.vmem [shape: f32[1,8], index: 5, kind: input, shape index: {}]
  %s6 = inlined_call_operand.vmem [shape: f32[1,8], index: 6, kind: input, shape index: {}]
  %s7 = inlined_call_operand.vmem [shape: f32[4,8], index: 7, kind: input, shape index: {}]
  %s8 = inlined_call_operand.vmem [shape: f32[4,1], index: 8, kind: input, shape index: {}]
  %s9 = inlined_call_operand.vmem [shape: f32[4,8], index: 9, kind: input, shape index: {}]
  %s10 = inlined_call_operand.vmem [shape: f32[1,8], index: 10, kind: input, shape index: {}]
  %s11 = inlined_call_operand.vmem [shape: f32[8,8], index: 11, kind: input, shape index: {}]
  %s12 = inlined_call_operand.vmem [shape: f32[1,8], index: 12, kind: input, shape index: {}]
  %s13 = inlined_call_operand.vmem [shape: f32[1,8], index: 13, kind: input, shape index: {}]
  %s14 = inlined_call_operand.vmem [shape: f32[2,64,8], index: 14, kind: output, shape index: {}]
  %s15 = sld [smem:[#allocation0]]
  $region89: #{_lambda_.4} parent=0
    _
  %s17 = ssub.s32 1, %s15
  %s18 = scalar_select 0, %s17, %s15
  loop: start=0, step=1, limit=4
  $region2: #{_lambda_.4} parent=0 // loop_pre_header
    _
  $region3: #{_lambda_.4} parent=0 // loop_header
    %s20 = sphi 0, %s24
    %p21 = scmp.ge.s32.totalorder %s20, 4
    %s30 = sphi 0, %s32
    %s33 = sphi 0, %s30
    %s34 = sphi 0, %s33
    %s50 = sphi 0, %s34
    %s54 = sphi 0, %s54
    %s56 = sphi 0, %s54
    %s57 = sphi 0, %s56
    %s71 = sphi 0, %s57
    %s75 = sphi 0, %s75
    %s77 = sphi 0, %s75
    %s78 = sphi 0, %s77
    %s92 = sphi 0, %s78
    %s96 = sphi 0, %s96
    %s98 = sphi 0, %s96
    %s99 = sphi 0, %s98
    %s113 = sphi 0, %s99
    %s117 = sphi 0, %s117
    %s119 = sphi 0, %s117
    %s120 = sphi 0, %s119
    %s134 = sphi 0, %s120
    %s138 = sphi 0, %s138
    %s140 = sphi 0, %s138
    %s141 = sphi 0, %s140
    %s155 = sphi 0, %s141
    %s159 = sphi 0, %s159
    %s161 = sphi 0, %s159
    %s162 = sphi 0, %s161
    %s176 = sphi 0, %s162
    %s180 = sphi 0, %s180
    %s182 = sphi 0, %s180
    %s183 = sphi 0, %s182
    %s197 = sphi 0, %s183
    %s201 = sphi 0, %s201
    %s203 = sphi 0, %s201
    %s204 = sphi 0, %s203
    %s218 = sphi 0, %s204
    %s222 = sphi 0, %s222
    %s224 = sphi 0, %s222
    %s225 = sphi 0, %s224
    %s239 = sphi 0, %s225
    %s243 = sphi 0, %s243
    %s245 = sphi 0, %s243
    %s246 = sphi 0, %s245
    %s260 = sphi 0, %s246
    %s264 = sphi 0, %s264
    %s266 = sphi 0, %s264
    %s267 = sphi 0, %s266
    %s281 = sphi 0, %s267
    %s285 = sphi 0, %s285
    %s287 = sphi 0, %s285
    %s288 = sphi 0, %s287
    %s302 = sphi 0, %s288
    %s306 = sphi 0, %s306
    %s308 = sphi 0, %s306
    %s309 = sphi 0, %s308
    %s323 = sphi 0, %s309
    %s329 = sphi 0, %s331
    %s332 = sphi 0, %s329
    %s333 = sphi 0, %s332
    %s349 = sphi 0, %s333
  $region4: #{_lambda_.4} parent=0 // loop_header_branch
    %23 = sbr.rel (%p21) target = $region8
  $region5: #{_lambda_.4} parent=0 // loop_body
    %s25 = ssub.s32 %s20, 1
    %s26 = ssub.s32 %s20, 2
    %s27 = sadd.s32 %s20, 1
    %s28 = ssub.s32 %s20, %s27
    %p29 = scmp.eq.s32.totalorder %s28, 0
    %s31 = sadd.s32 %s30, 1
    %s32 = scalar_select %p29, %s30, %s31
    %p35 = pneg %p29
    %p36 = scmp.eq.s32.totalorder %s20, 1
    %p37 = por %p35, %p36
    %p38 = scmp.ne.s32.totalorder %s30, %s33
    %p39 = scmp.eq.s32.totalorder %s20, 0
    %p40 = por %p38, %p39
    %p41 = scmp.ne.s32.totalorder %s30, %s33
    %p42 = scmp.eq.s32.totalorder %s25, 1
    %p43 = por %p41, %p42
    %p44 = scmp.ne.s32.totalorder %s33, %s34
    %p45 = scmp.eq.s32.totalorder %s25, 0
    %p46 = por %p44, %p45
    %p47 = scmp.ne.s32.totalorder %s33, %s34
    %p48 = scmp.eq.s32.totalorder %s26, 1
    %p49 = por %p47, %p48
    %p51 = scmp.ne.s32.totalorder %s34, %s50
    %p52 = scmp.eq.s32.totalorder %s26, 0
    %p53 = por %p51, %p52
    %s55 = sadd.s32 %s54, 1
    %p58 = scmp.eq.s32.totalorder %s20, 1
    %p59 = scmp.ne.s32.totalorder %s54, %s56
    %p60 = scmp.eq.s32.totalorder %s20, 0
    %p61 = por %p59, %p60
    %p62 = scmp.ne.s32.totalorder %s54, %s56
    %p63 = scmp.eq.s32.totalorder %s25, 1
    %p64 = por %p62, %p63
    %p65 = scmp.ne.s32.totalorder %s56, %s57
    %p66 = scmp.eq.s32.totalorder %s25, 0
    %p67 = por %p65, %p66
    %p68 = scmp.ne.s32.totalorder %s56, %s57
    %p69 = scmp.eq.s32.totalorder %s26, 1
    %p70 = por %p68, %p69
    %p72 = scmp.ne.s32.totalorder %s57, %s71
    %p73 = scmp.eq.s32.totalorder %s26, 0
    %p74 = por %p72, %p73
    %s76 = sadd.s32 %s75, 1
    %p79 = scmp.eq.s32.totalorder %s20, 1
    %p80 = scmp.ne.s32.totalorder %s75, %s77
    %p81 = scmp.eq.s32.totalorder %s20, 0
    %p82 = por %p80, %p81
    %p83 = scmp.ne.s32.totalorder %s75, %s77
    %p84 = scmp.eq.s32.totalorder %s25, 1
    %p85 = por %p83, %p84
    %p86 = scmp.ne.s32.totalorder %s77, %s78
    %p87 = scmp.eq.s32.totalorder %s25, 0
    %p88 = por %p86, %p87
    %p89 = scmp.ne.s32.totalorder %s77, %s78
    %p90 = scmp.eq.s32.totalorder %s26, 1
    %p91 = por %p89, %p90
    %p93 = scmp.ne.s32.totalorder %s78, %s92
    %p94 = scmp.eq.s32.totalorder %s26, 0
    %p95 = por %p93, %p94
    %s97 = sadd.s32 %s96, 1
    %p100 = scmp.eq.s32.totalorder %s20, 1
    %p101 = scmp.ne.s32.totalorder %s96, %s98
    %p102 = scmp.eq.s32.totalorder %s20, 0
    %p103 = por %p101, %p102
    %p104 = scmp.ne.s32.totalorder %s96, %s98
    %p105 = scmp.eq.s32.totalorder %s25, 1
    %p106 = por %p104, %p105
    %p107 = scmp.ne.s32.totalorder %s98, %s99
    %p108 = scmp.eq.s32.totalorder %s25, 0
    %p109 = por %p107, %p108
    %p110 = scmp.ne.s32.totalorder %s98, %s99
    %p111 = scmp.eq.s32.totalorder %s26, 1
    %p112 = por %p110, %p111
    %p114 = scmp.ne.s32.totalorder %s99, %s113
    %p115 = scmp.eq.s32.totalorder %s26, 0
    %p116 = por %p114, %p115
    %s118 = sadd.s32 %s117, 1
    %p121 = scmp.eq.s32.totalorder %s20, 1
    %p122 = scmp.ne.s32.totalorder %s117, %s119
    %p123 = scmp.eq.s32.totalorder %s20, 0
    %p124 = por %p122, %p123
    %p125 = scmp.ne.s32.totalorder %s117, %s119
    %p126 = scmp.eq.s32.totalorder %s25, 1
    %p127 = por %p125, %p126
    %p128 = scmp.ne.s32.totalorder %s119, %s120
    %p129 = scmp.eq.s32.totalorder %s25, 0
    %p130 = por %p128, %p129
    %p131 = scmp.ne.s32.totalorder %s119, %s120
    %p132 = scmp.eq.s32.totalorder %s26, 1
    %p133 = por %p131, %p132
    %p135 = scmp.ne.s32.totalorder %s120, %s134
    %p136 = scmp.eq.s32.totalorder %s26, 0
    %p137 = por %p135, %p136
    %s139 = sadd.s32 %s138, 1
    %p142 = scmp.eq.s32.totalorder %s20, 1
    %p143 = scmp.ne.s32.totalorder %s138, %s140
    %p144 = scmp.eq.s32.totalorder %s20, 0
    %p145 = por %p143, %p144
    %p146 = scmp.ne.s32.totalorder %s138, %s140
    %p147 = scmp.eq.s32.totalorder %s25, 1
    %p148 = por %p146, %p147
    %p149 = scmp.ne.s32.totalorder %s140, %s141
    %p150 = scmp.eq.s32.totalorder %s25, 0
    %p151 = por %p149, %p150
    %p152 = scmp.ne.s32.totalorder %s140, %s141
    %p153 = scmp.eq.s32.totalorder %s26, 1
    %p154 = por %p152, %p153
    %p156 = scmp.ne.s32.totalorder %s141, %s155
    %p157 = scmp.eq.s32.totalorder %s26, 0
    %p158 = por %p156, %p157
    %s160 = sadd.s32 %s159, 1
    %p163 = scmp.eq.s32.totalorder %s20, 1
    %p164 = scmp.ne.s32.totalorder %s159, %s161
    %p165 = scmp.eq.s32.totalorder %s20, 0
    %p166 = por %p164, %p165
    %p167 = scmp.ne.s32.totalorder %s159, %s161
    %p168 = scmp.eq.s32.totalorder %s25, 1
    %p169 = por %p167, %p168
    %p170 = scmp.ne.s32.totalorder %s161, %s162
    %p171 = scmp.eq.s32.totalorder %s25, 0
    %p172 = por %p170, %p171
    %p173 = scmp.ne.s32.totalorder %s161, %s162
    %p174 = scmp.eq.s32.totalorder %s26, 1
    %p175 = por %p173, %p174
    %p177 = scmp.ne.s32.totalorder %s162, %s176
    %p178 = scmp.eq.s32.totalorder %s26, 0
    %p179 = por %p177, %p178
    %s181 = sadd.s32 %s180, 1
    %p184 = scmp.eq.s32.totalorder %s20, 1
    %p185 = scmp.ne.s32.totalorder %s180, %s182
    %p186 = scmp.eq.s32.totalorder %s20, 0
    %p187 = por %p185, %p186
    %p188 = scmp.ne.s32.totalorder %s180, %s182
    %p189 = scmp.eq.s32.totalorder %s25, 1
    %p190 = por %p188, %p189
    %p191 = scmp.ne.s32.totalorder %s182, %s183
    %p192 = scmp.eq.s32.totalorder %s25, 0
    %p193 = por %p191, %p192
    %p194 = scmp.ne.s32.totalorder %s182, %s183
    %p195 = scmp.eq.s32.totalorder %s26, 1
    %p196 = por %p194, %p195
    %p198 = scmp.ne.s32.totalorder %s183, %s197
    %p199 = scmp.eq.s32.totalorder %s26, 0
    %p200 = por %p198, %p199
    %s202 = sadd.s32 %s201, 1
    %p205 = scmp.eq.s32.totalorder %s20, 1
    %p206 = scmp.ne.s32.totalorder %s201, %s203
    %p207 = scmp.eq.s32.totalorder %s20, 0
    %p208 = por %p206, %p207
    %p209 = scmp.ne.s32.totalorder %s201, %s203
    %p210 = scmp.eq.s32.totalorder %s25, 1
    %p211 = por %p209, %p210
    %p212 = scmp.ne.s32.totalorder %s203, %s204
    %p213 = scmp.eq.s32.totalorder %s25, 0
    %p214 = por %p212, %p213
    %p215 = scmp.ne.s32.totalorder %s203, %s204
    %p216 = scmp.eq.s32.totalorder %s26, 1
    %p217 = por %p215, %p216
    %p219 = scmp.ne.s32.totalorder %s204, %s218
    %p220 = scmp.eq.s32.totalorder %s26, 0
    %p221 = por %p219, %p220
    %s223 = sadd.s32 %s222, 1
    %p226 = scmp.eq.s32.totalorder %s20, 1
    %p227 = scmp.ne.s32.totalorder %s222, %s224
    %p228 = scmp.eq.s32.totalorder %s20, 0
    %p229 = por %p227, %p228
    %p230 = scmp.ne.s32.totalorder %s222, %s224
    %p231 = scmp.eq.s32.totalorder %s25, 1
    %p232 = por %p230, %p231
    %p233 = scmp.ne.s32.totalorder %s224, %s225
    %p234 = scmp.eq.s32.totalorder %s25, 0
    %p235 = por %p233, %p234
    %p236 = scmp.ne.s32.totalorder %s224, %s225
    %p237 = scmp.eq.s32.totalorder %s26, 1
    %p238 = por %p236, %p237
    %p240 = scmp.ne.s32.totalorder %s225, %s239
    %p241 = scmp.eq.s32.totalorder %s26, 0
    %p242 = por %p240, %p241
    %s244 = sadd.s32 %s243, 1
    %p247 = scmp.eq.s32.totalorder %s20, 1
    %p248 = scmp.ne.s32.totalorder %s243, %s245
    %p249 = scmp.eq.s32.totalorder %s20, 0
    %p250 = por %p248, %p249
    %p251 = scmp.ne.s32.totalorder %s243, %s245
    %p252 = scmp.eq.s32.totalorder %s25, 1
    %p253 = por %p251, %p252
    %p254 = scmp.ne.s32.totalorder %s245, %s246
    %p255 = scmp.eq.s32.totalorder %s25, 0
    %p256 = por %p254, %p255
    %p257 = scmp.ne.s32.totalorder %s245, %s246
    %p258 = scmp.eq.s32.totalorder %s26, 1
    %p259 = por %p257, %p258
    %p261 = scmp.ne.s32.totalorder %s246, %s260
    %p262 = scmp.eq.s32.totalorder %s26, 0
    %p263 = por %p261, %p262
    %s265 = sadd.s32 %s264, 1
    %p268 = scmp.eq.s32.totalorder %s20, 1
    %p269 = scmp.ne.s32.totalorder %s264, %s266
    %p270 = scmp.eq.s32.totalorder %s20, 0
    %p271 = por %p269, %p270
    %p272 = scmp.ne.s32.totalorder %s264, %s266
    %p273 = scmp.eq.s32.totalorder %s25, 1
    %p274 = por %p272, %p273
    %p275 = scmp.ne.s32.totalorder %s266, %s267
    %p276 = scmp.eq.s32.totalorder %s25, 0
    %p277 = por %p275, %p276
    %p278 = scmp.ne.s32.totalorder %s266, %s267
    %p279 = scmp.eq.s32.totalorder %s26, 1
    %p280 = por %p278, %p279
    %p282 = scmp.ne.s32.totalorder %s267, %s281
    %p283 = scmp.eq.s32.totalorder %s26, 0
    %p284 = por %p282, %p283
    %s286 = sadd.s32 %s285, 1
    %p289 = scmp.eq.s32.totalorder %s20, 1
    %p290 = scmp.ne.s32.totalorder %s285, %s287
    %p291 = scmp.eq.s32.totalorder %s20, 0
    %p292 = por %p290, %p291
    %p293 = scmp.ne.s32.totalorder %s285, %s287
    %p294 = scmp.eq.s32.totalorder %s25, 1
    %p295 = por %p293, %p294
    %p296 = scmp.ne.s32.totalorder %s287, %s288
    %p297 = scmp.eq.s32.totalorder %s25, 0
    %p298 = por %p296, %p297
    %p299 = scmp.ne.s32.totalorder %s287, %s288
    %p300 = scmp.eq.s32.totalorder %s26, 1
    %p301 = por %p299, %p300
    %p303 = scmp.ne.s32.totalorder %s288, %s302
    %p304 = scmp.eq.s32.totalorder %s26, 0
    %p305 = por %p303, %p304
    %s307 = sadd.s32 %s306, 1
    %p310 = scmp.eq.s32.totalorder %s20, 1
    %p311 = scmp.ne.s32.totalorder %s306, %s308
    %p312 = scmp.eq.s32.totalorder %s20, 0
    %p313 = por %p311, %p312
    %p314 = scmp.ne.s32.totalorder %s306, %s308
    %p315 = scmp.eq.s32.totalorder %s25, 1
    %p316 = por %p314, %p315
    %p317 = scmp.ne.s32.totalorder %s308, %s309
    %p318 = scmp.eq.s32.totalorder %s25, 0
    %p319 = por %p317, %p318
    %p320 = scmp.ne.s32.totalorder %s308, %s309
    %p321 = scmp.eq.s32.totalorder %s26, 1
    %p322 = por %p320, %p321
    %p324 = scmp.ne.s32.totalorder %s309, %s323
    %p325 = scmp.eq.s32.totalorder %s26, 0
    %p326 = por %p324, %p325
    %s327 = ssub.s32 %s20, %s27
    %p328 = scmp.eq.s32.totalorder %s327, 0
    %s330 = sadd.s32 %s329, 1
    %s331 = scalar_select %p328, %s329, %s330
    %p334 = pneg %p328
    %p335 = scmp.eq.s32.totalorder %s20, 1
    %p336 = por %p334, %p335
    %p337 = scmp.ne.s32.totalorder %s329, %s332
    %p338 = scmp.eq.s32.totalorder %s20, 0
    %p339 = por %p337, %p338
    %p340 = scmp.ne.s32.totalorder %s329, %s332
    %p341 = scmp.eq.s32.totalorder %s25, 1
    %p342 = por %p340, %p341
    %p343 = scmp.ne.s32.totalorder %s332, %s333
    %p344 = scmp.eq.s32.totalorder %s25, 0
    %p345 = por %p343, %p344
    %p346 = scmp.ne.s32.totalorder %s332, %s333
    %p347 = scmp.eq.s32.totalorder %s26, 1
    %p348 = por %p346, %p347
    %p350 = scmp.ne.s32.totalorder %s333, %s349
    %p351 = scmp.eq.s32.totalorder %s26, 0
    %p352 = por %p350, %p351
    %p353 = scmp.le.s32.totalorder 1, %s20
    %p354 = scmp.lt.s32.totalorder %s20, 3
    %p355 = pnand %p353, %p354
    %p356 = pneg %p355
    // Predicated region
    $region9: #{_lambda_.4} parent=5 // pred_check
      _
    $region10: #{_lambda_.4} parent=5 // pred_check_branch
      %358 = sbr.rel (%p355) target = $region12
    $region11: #{_lambda_.4} parent=5 // pred_region
      %s359 = ssub.s32 %s20, 1
      // Predicated region
      $region13: #{_lambda_.4} parent=11 // pred_check
        %p360 = pneg %p67
      $region14: #{_lambda_.4} parent=11 // pred_check_branch
        %362 = sbr.rel (%p360) target = $region16
      $region15: #{_lambda_.4} parent=11 // pred_region
        _
      $region16: #{_lambda_.4} parent=11 // pred_fallthru
        _
      // Predicated region
      $region17: #{_lambda_.4} parent=11 // pred_check
        %p363 = pneg %p88
      $region18: #{_lambda_.4} parent=11 // pred_check_branch
        %365 = sbr.rel (%p363) target = $region20
      $region19: #{_lambda_.4} parent=11 // pred_region
        _
      $region20: #{_lambda_.4} parent=11 // pred_fallthru
        _
      // Predicated region
      $region21: #{_lambda_.4} parent=11 // pred_check
        %p366 = pneg %p109
      $region22: #{_lambda_.4} parent=11 // pred_check_branch
        %368 = sbr.rel (%p366) target = $region24
      $region23: #{_lambda_.4} parent=11 // pred_region
        _
      $region24: #{_lambda_.4} parent=11 // pred_fallthru
        _
      // Predicated region
      $region25: #{_lambda_.4} parent=11 // pred_check
        %p369 = pneg %p130
      $region26: #{_lambda_.4} parent=11 // pred_check_branch
        %371 = sbr.rel (%p369) target = $region28
      $region27: #{_lambda_.4} parent=11 // pred_region
        _
      $region28: #{_lambda_.4} parent=11 // pred_fallthru
        _
      // Predicated region
      $region29: #{_lambda_.4} parent=11 // pred_check
        %p372 = pneg %p151
      $region30: #{_lambda_.4} parent=11 // pred_check_branch
        %374 = sbr.rel (%p372) target = $region32
      $region31: #{_lambda_.4} parent=11 // pred_region
        _
      $region32: #{_lambda_.4} parent=11 // pred_fallthru
        _
      // Predicated region
      $region33: #{_lambda_.4} parent=11 // pred_check
        %p375 = pneg %p172
      $region34: #{_lambda_.4} parent=11 // pred_check_branch
        %377 = sbr.rel (%p375) target = $region36
      $region35: #{_lambda_.4} parent=11 // pred_region
        _
      $region36: #{_lambda_.4} parent=11 // pred_fallthru
        _
      // Predicated region
      $region37: #{_lambda_.4} parent=11 // pred_check
        %p378 = pneg %p193
      $region38: #{_lambda_.4} parent=11 // pred_check_branch
        %380 = sbr.rel (%p378) target = $region40
      $region39: #{_lambda_.4} parent=11 // pred_region
        _
      $region40: #{_lambda_.4} parent=11 // pred_fallthru
        _
      // Predicated region
      $region41: #{_lambda_.4} parent=11 // pred_check
        %p381 = pneg %p214
      $region42: #{_lambda_.4} parent=11 // pred_check_branch
        %383 = sbr.rel (%p381) target = $region44
      $region43: #{_lambda_.4} parent=11 // pred_region
        _
      $region44: #{_lambda_.4} parent=11 // pred_fallthru
        _
      // Predicated region
      $region45: #{_lambda_.4} parent=11 // pred_check
        %p384 = pneg %p235
      $region46: #{_lambda_.4} parent=11 // pred_check_branch
        %386 = sbr.rel (%p384) target = $region48
      $region47: #{_lambda_.4} parent=11 // pred_region
        _
      $region48: #{_lambda_.4} parent=11 // pred_fallthru
        _
      // Predicated region
      $region49: #{_lambda_.4} parent=11 // pred_check
        %p387 = pneg %p256
      $region50: #{_lambda_.4} parent=11 // pred_check_branch
        %389 = sbr.rel (%p387) target = $region52
      $region51: #{_lambda_.4} parent=11 // pred_region
        _
      $region52: #{_lambda_.4} parent=11 // pred_fallthru
        _
      // Predicated region
      $region53: #{_lambda_.4} parent=11 // pred_check
        %p390 = pneg %p277
      $region54: #{_lambda_.4} parent=11 // pred_check_branch
        %392 = sbr.rel (%p390) target = $region56
      $region55: #{_lambda_.4} parent=11 // pred_region
        _
      $region56: #{_lambda_.4} parent=11 // pred_fallthru
        _
      // Predicated region
      $region57: #{_lambda_.4} parent=11 // pred_check
        %p393 = pneg %p298
      $region58: #{_lambda_.4} parent=11 // pred_check_branch
        %395 = sbr.rel (%p393) target = $region60
      $region59: #{_lambda_.4} parent=11 // pred_region
        _
      $region60: #{_lambda_.4} parent=11 // pred_fallthru
        _
      // Predicated region
      $region61: #{_lambda_.4} parent=11 // pred_check
        %p396 = pneg %p319
      $region62: #{_lambda_.4} parent=11 // pred_check_branch
        %398 = sbr.rel (%p396) target = $region64
      $region63: #{_lambda_.4} parent=11 // pred_region
        _
      $region64: #{_lambda_.4} parent=11 // pred_fallthru
        _
    $region12: #{_lambda_.4} parent=5 // pred_fallthru
      _
    %p399 = scmp.lt.s32.totalorder %s20, 2
    // Predicated region
    $region65: #{_lambda_.4} parent=5 // pred_check
      %p400 = pneg %p399
    $region66: #{_lambda_.4} parent=5 // pred_check_branch
      %402 = sbr.rel (%p400) target = $region68
    $region67: #{_lambda_.4} parent=5 // pred_region
      // Predicated region
      $region69: #{_lambda_.4} parent=67 // pred_check
        %p403 = pneg %p40
      $region70: #{_lambda_.4} parent=67 // pred_check_branch
        %405 = sbr.rel (%p403) target = $region72
      $region71: #{_lambda_.4} parent=67 // pred_region
        %p406 = scmp.lt.s32.totalorder %s20, 1
        %s407 = scalar_select %p406, %s20, 1
        %s408 = smul.addr %s407, 8
        %s409 = smul.addr %s408, 8
        %s410 = scalar_lea.vmem %s0, %s409
      $region72: #{_lambda_.4} parent=67 // pred_fallthru
        _
    $region68: #{_lambda_.4} parent=5 // pred_fallthru
      _
    %p411 = scmp.le.s32.totalorder 1, %s20
    %p412 = scmp.lt.s32.totalorder %s20, 3
    %p413 = pnand %p411, %p412
    %p414 = pneg %p413
    // Predicated region
    $region73: #{_lambda_.4} parent=5 // pred_check
      _
    $region74: #{_lambda_.4} parent=5 // pred_check_branch
      %416 = sbr.rel (%p413) target = $region76
    $region75: #{_lambda_.4} parent=5 // pred_region
      %s417 = ssub.s32 %s20, 1
      %p418 = scmp.lt.s32.totalorder %s25, 1
      %s419 = scalar_select %p418, %s25, 1
      %s420 = smul.addr %s419, 8
      %s421 = smul.addr %s420, 8
      %s422 = scalar_lea.vmem %s0, %s421
      %p423 = pneg %p46
      %p424 = pneg %p43
      %p425 = pneg %p67
      %p426 = pneg %p64
      %p427 = pneg %p88
      %p428 = pneg %p85
      %p429 = pneg %p109
      %p430 = pneg %p106
      %p431 = pneg %p130
      %p432 = pneg %p127
      %p433 = pneg %p151
      %p434 = pneg %p148
      %p435 = pneg %p172
      %p436 = pneg %p169
      %p437 = pneg %p193
      %p438 = pneg %p190
      %p439 = pneg %p214
      %p440 = pneg %p211
      %p441 = pneg %p235
      %p442 = pneg %p232
      %p443 = pneg %p256
      %p444 = pneg %p253
      %p445 = pneg %p277
      %p446 = pneg %p274
      %p447 = pneg %p298
      %p448 = pneg %p295
      %p449 = pneg %p319
      %p450 = pneg %p316
      %p451 = pneg %p345
      %p452 = pneg %p342
      %p453 = scmp.lt.s32.totalorder %s25, 1
      %s454 = scalar_select %p453, %s25, 1
      %s455 = smul.addr %s454, 8
      %s456 = smul.addr %s455, 8
      %s457 = scalar_lea.vmem %s14, %s456
      %p458 = scmp.lt.s32.totalorder %s25, 1
      %s459 = scalar_select %p458, %s25, 1
      %s460 = smul.addr %s459, 8
      %s461 = smul.addr %s460, 8
      %s462 = scalar_lea.vmem %s0, %s461
      %p463 = scmp.lt.s32.totalorder %s25, 1
      %s464 = scalar_select %p463, %s25, 1
      %s465 = smul.addr %s464, 8
      %s466 = smul.addr %s465, 8
      %s467 = scalar_lea.vmem %s14, %s466
      %v468 = vld [vmem:[%s462] sm:$0xff]
      %v469 = vld [vmem:[%s462 + $0x8] sm:$0xff]
      %v470 = vld [vmem:[%s462 + $0x10] sm:$0xff]
      %v471 = vld [vmem:[%s462 + $0x18] sm:$0xff]
      %v472 = vld [vmem:[%s462 + $0x20] sm:$0xff]
      %v473 = vld [vmem:[%s462 + $0x28] sm:$0xff]
      %v474 = vld [vmem:[%s462 + $0x30] sm:$0xff]
      %v475 = vld [vmem:[%s462 + $0x38] sm:$0xff]
      %v476 = vld [vmem:[%s1] sm:$0xf]
      %478 = vset.pattern.permute.xlu0 0
      %479 = vperm.xlu0 %478, %v468
      %v480 = vpop.permute.xlu0 %479
      %483 = vset.pattern.permute.xlu0 0
      %484 = vperm.xlu0 %483, %v469
      %v485 = vpop.permute.xlu0 %484
      %488 = vset.pattern.permute.xlu0 0
      %489 = vperm.xlu0 %488, %v470
      %v490 = vpop.permute.xlu0 %489
      %493 = vset.pattern.permute.xlu0 0
      %494 = vperm.xlu0 %493, %v471
      %v495 = vpop.permute.xlu0 %494
      %498 = vset.pattern.permute.xlu0 0
      %499 = vperm.xlu0 %498, %v472
      %v500 = vpop.permute.xlu0 %499
      %503 = vset.pattern.permute.xlu0 0
      %504 = vperm.xlu0 %503, %v473
      %v505 = vpop.permute.xlu0 %504
      %508 = vset.pattern.permute.xlu0 0
      %509 = vperm.xlu0 %508, %v474
      %v510 = vpop.permute.xlu0 %509
      %513 = vset.pattern.permute.xlu0 0
      %514 = vperm.xlu0 %513, %v475
      %v515 = vpop.permute.xlu0 %514
      %v517 = vlaneseq
      %v518 = vshrl.u32 %v517, 7
      %v519 = vsub.s32 0, %v518
      %v520 = vrot.slane %v476, %v519
      %v521 = vmul.f32 %v480, %v520
      %v522 = vmul.f32 %v485, %v520
      %v523 = vmul.f32 %v490, %v520
      %v524 = vmul.f32 %v495, %v520
      %v525 = vmul.f32 %v500, %v520
      %v526 = vmul.f32 %v505, %v520
      %v527 = vmul.f32 %v510, %v520
      %v528 = vmul.f32 %v515, %v520
      %529 = vset.pattern.permute.xlu0 1
      %530 = vperm.xlu0 %529, %v468
      %v531 = vpop.permute.xlu0 %530
      %533 = vset.pattern.permute.xlu0 1
      %534 = vperm.xlu0 %533, %v469
      %v535 = vpop.permute.xlu0 %534
      %537 = vset.pattern.permute.xlu0 1
      %538 = vperm.xlu0 %537, %v470
      %v539 = vpop.permute.xlu0 %538
      %541 = vset.pattern.permute.xlu0 1
      %542 = vperm.xlu0 %541, %v471
      %v543 = vpop.permute.xlu0 %542
      %545 = vset.pattern.permute.xlu0 1
      %546 = vperm.xlu0 %545, %v472
      %v547 = vpop.permute.xlu0 %546
      %549 = vset.pattern.permute.xlu0 1
      %550 = vperm.xlu0 %549, %v473
      %v551 = vpop.permute.xlu0 %550
      %553 = vset.pattern.permute.xlu0 1
      %554 = vperm.xlu0 %553, %v474
      %v555 = vpop.permute.xlu0 %554
      %557 = vset.pattern.permute.xlu0 1
      %558 = vperm.xlu0 %557, %v475
      %v559 = vpop.permute.xlu0 %558
      %v561 = vlaneseq
      %v562 = vshrl.u32 %v561, 7
      %v563 = vsub.s32 1, %v562
      %v564 = vrot.slane %v476, %v563
      %v565 = vmul.f32 %v531, %v564
      %v566 = vmul.f32 %v535, %v564
      %v567 = vmul.f32 %v539, %v564
      %v568 = vmul.f32 %v543, %v564
      %v569 = vmul.f32 %v547, %v564
      %v570 = vmul.f32 %v551, %v564
      %v571 = vmul.f32 %v555, %v564
      %v572 = vmul.f32 %v559, %v564
      %v573 = vadd.f32 %v521, %v565
      %v574 = vadd.f32 %v522, %v566
      %v575 = vadd.f32 %v523, %v567
      %v576 = vadd.f32 %v524, %v568
      %v577 = vadd.f32 %v525, %v569
      %v578 = vadd.f32 %v526, %v570
      %v579 = vadd.f32 %v527, %v571
      %v580 = vadd.f32 %v528, %v572
      %581 = vset.pattern.permute.xlu0 2
      %582 = vperm.xlu0 %581, %v468
      %v583 = vpop.permute.xlu0 %582
      %585 = vset.pattern.permute.xlu0 2
      %586 = vperm.xlu0 %585, %v469
      %v587 = vpop.permute.xlu0 %586
      %589 = vset.pattern.permute.xlu0 2
      %590 = vperm.xlu0 %589, %v470
      %v591 = vpop.permute.xlu0 %590
      %593 = vset.pattern.permute.xlu0 2
      %594 = vperm.xlu0 %593, %v471
      %v595 = vpop.permute.xlu0 %594
      %597 = vset.pattern.permute.xlu0 2
      %598 = vperm.xlu0 %597, %v472
      %v599 = vpop.permute.xlu0 %598
      %601 = vset.pattern.permute.xlu0 2
      %602 = vperm.xlu0 %601, %v473
      %v603 = vpop.permute.xlu0 %602
      %605 = vset.pattern.permute.xlu0 2
      %606 = vperm.xlu0 %605, %v474
      %v607 = vpop.permute.xlu0 %606
      %609 = vset.pattern.permute.xlu0 2
      %610 = vperm.xlu0 %609, %v475
      %v611 = vpop.permute.xlu0 %610
      %v613 = vlaneseq
      %v614 = vshrl.u32 %v613, 7
      %v615 = vsub.s32 2, %v614
      %v616 = vrot.slane %v476, %v615
      %v617 = vmul.f32 %v583, %v616
      %v618 = vmul.f32 %v587, %v616
      %v619 = vmul.f32 %v591, %v616
      %v620 = vmul.f32 %v595, %v616
      %v621 = vmul.f32 %v599, %v616
      %v622 = vmul.f32 %v603, %v616
      %v623 = vmul.f32 %v607, %v616
      %v624 = vmul.f32 %v611, %v616
      %v625 = vadd.f32 %v573, %v617
      %v626 = vadd.f32 %v574, %v618
      %v627 = vadd.f32 %v575, %v619
      %v628 = vadd.f32 %v576, %v620
      %v629 = vadd.f32 %v577, %v621
      %v630 = vadd.f32 %v578, %v622
      %v631 = vadd.f32 %v579, %v623
      %v632 = vadd.f32 %v580, %v624
      %633 = vset.pattern.permute.xlu0 3
      %634 = vperm.xlu0 %633, %v468
      %v635 = vpop.permute.xlu0 %634
      %637 = vset.pattern.permute.xlu0 3
      %638 = vperm.xlu0 %637, %v469
      %v639 = vpop.permute.xlu0 %638
      %641 = vset.pattern.permute.xlu0 3
      %642 = vperm.xlu0 %641, %v470
      %v643 = vpop.permute.xlu0 %642
      %645 = vset.pattern.permute.xlu0 3
      %646 = vperm.xlu0 %645, %v471
      %v647 = vpop.permute.xlu0 %646
      %649 = vset.pattern.permute.xlu0 3
      %650 = vperm.xlu0 %649, %v472
      %v651 = vpop.permute.xlu0 %650
      %653 = vset.pattern.permute.xlu0 3
      %654 = vperm.xlu0 %653, %v473
      %v655 = vpop.permute.xlu0 %654
      %657 = vset.pattern.permute.xlu0 3
      %658 = vperm.xlu0 %657, %v474
      %v659 = vpop.permute.xlu0 %658
      %661 = vset.pattern.permute.xlu0 3
      %662 = vperm.xlu0 %661, %v475
      %v663 = vpop.permute.xlu0 %662
      %v665 = vlaneseq
      %v666 = vshrl.u32 %v665, 7
      %v667 = vsub.s32 3, %v666
      %v668 = vrot.slane %v476, %v667
      %v669 = vmul.f32 %v635, %v668
      %v670 = vmul.f32 %v639, %v668
      %v671 = vmul.f32 %v643, %v668
      %v672 = vmul.f32 %v647, %v668
      %v673 = vmul.f32 %v651, %v668
      %v674 = vmul.f32 %v655, %v668
      %v675 = vmul.f32 %v659, %v668
      %v676 = vmul.f32 %v663, %v668
      %v677 = vadd.f32 %v625, %v669
      %v678 = vadd.f32 %v626, %v670
      %v679 = vadd.f32 %v627, %v671
      %v680 = vadd.f32 %v628, %v672
      %v681 = vadd.f32 %v629, %v673
      %v682 = vadd.f32 %v630, %v674
      %v683 = vadd.f32 %v631, %v675
      %v684 = vadd.f32 %v632, %v676
      %v685 = vld [vmem:[%s2] sm:$0x1]
      %v687 = vlaneseq
      %v688 = vshrl.u32 %v687, 7
      %v689 = vsub.s32 0, %v688
      %v690 = vrot.slane %v685, %v689
      %v692 = vmul.f32 %v677, %v690
      %v693 = vmul.f32 %v678, %v690
      %v694 = vmul.f32 %v679, %v690
      %v695 = vmul.f32 %v680, %v690
      %v696 = vmul.f32 %v681, %v690
      %v697 = vmul.f32 %v682, %v690
      %v698 = vmul.f32 %v683, %v690
      %v699 = vmul.f32 %v684, %v690
      %v700 = vld [vmem:[%s3] sm:$0x1]
      %v702 = vlaneseq
      %v703 = vshrl.u32 %v702, 7
      %v704 = vsub.s32 0, %v703
      %v705 = vrot.slane %v700, %v704
      %v707 = vadd.f32 %v692, %v705
      %v708 = vadd.f32 %v693, %v705
      %v709 = vadd.f32 %v694, %v705
      %v710 = vadd.f32 %v695, %v705
      %v711 = vadd.f32 %v696, %v705
      %v712 = vadd.f32 %v697, %v705
      %v713 = vadd.f32 %v698, %v705
      %v714 = vadd.f32 %v699, %v705
      %v715 = vadd.f32 %v707, 3.0
      %v716 = vadd.f32 %v708, 3.0
      %v717 = vadd.f32 %v709, 3.0
      %v718 = vadd.f32 %v710, 3.0
      %v719 = vadd.f32 %v711, 3.0
      %v720 = vadd.f32 %v712, 3.0
      %v721 = vadd.f32 %v713, 3.0
      %v722 = vadd.f32 %v714, 3.0
      %v723 = vmax.f32 %v715, 0.0
      %v724 = vmax.f32 %v716, 0.0
      %v725 = vmax.f32 %v717, 0.0
      %v726 = vmax.f32 %v718, 0.0
      %v727 = vmax.f32 %v719, 0.0
      %v728 = vmax.f32 %v720, 0.0
      %v729 = vmax.f32 %v721, 0.0
      %v730 = vmax.f32 %v722, 0.0
      %v731 = vmin.f32 %v723, 6.0
      %v732 = vmin.f32 %v724, 6.0
      %v733 = vmin.f32 %v725, 6.0
      %v734 = vmin.f32 %v726, 6.0
      %v735 = vmin.f32 %v727, 6.0
      %v736 = vmin.f32 %v728, 6.0
      %v737 = vmin.f32 %v729, 6.0
      %v738 = vmin.f32 %v730, 6.0
      %v739 = vmul.f32 %v707, %v731
      %v740 = vmul.f32 %v708, %v732
      %v741 = vmul.f32 %v709, %v733
      %v742 = vmul.f32 %v710, %v734
      %v743 = vmul.f32 %v711, %v735
      %v744 = vmul.f32 %v712, %v736
      %v745 = vmul.f32 %v713, %v737
      %v746 = vmul.f32 %v714, %v738
      %v747 = vmul.f32 %v739, 0.16666667
      %v748 = vmul.f32 %v740, 0.16666667
      %v749 = vmul.f32 %v741, 0.16666667
      %v750 = vmul.f32 %v742, 0.16666667
      %v751 = vmul.f32 %v743, 0.16666667
      %v752 = vmul.f32 %v744, 0.16666667
      %v753 = vmul.f32 %v745, 0.16666667
      %v754 = vmul.f32 %v746, 0.16666667
      %vm755 = vcmask 64512
      %756 = vst.msk [vmem:[#allocation2] sm:$0xff] %vm755, 0.0
      %757 = vst.msk [vmem:[#allocation2 + $0x8] sm:$0xff] %vm755, 0.0
      %758 = vst.msk [vmem:[#allocation2 + $0x10] sm:$0xff] %vm755, 0.0
      %759 = vst.msk [vmem:[#allocation2 + $0x18] sm:$0xff] %vm755, 0.0
      %760 = vst.msk [vmem:[#allocation2 + $0x20] sm:$0xff] %vm755, 0.0
      %761 = vst.msk [vmem:[#allocation2 + $0x28] sm:$0xff] %vm755, 0.0
      %762 = vst.msk [vmem:[#allocation2 + $0x30] sm:$0xff] %vm755, 0.0
      %763 = vst.msk [vmem:[#allocation2 + $0x38] sm:$0xff] %vm755, 0.0
      %764 = vst.msk [vmem:[#allocation2 + $0x40] sm:$0xff] %vm755, 0.0
      %765 = vst.msk [vmem:[#allocation2 + $0x48] sm:$0xff] %vm755, 0.0
      %766 = vst.msk [vmem:[#allocation2 + $0x50] sm:$0xff] %vm755, 0.0
      %767 = vst.msk [vmem:[#allocation2 + $0x58] sm:$0xff] %vm755, 0.0
      %768 = vst.msk [vmem:[#allocation2 + $0x60] sm:$0xff] %vm755, 0.0
      %769 = vst.msk [vmem:[#allocation2 + $0x68] sm:$0xff] %vm755, 0.0
      %770 = vst.msk [vmem:[#allocation2 + $0x70] sm:$0xff] %vm755, 0.0
      %771 = vst.msk [vmem:[#allocation2 + $0x78] sm:$0xff] %vm755, 0.0
      %772 = vst.msk [vmem:[#allocation2 + $0x80] sm:$0xff] %vm755, 0.0
      %773 = vst.msk [vmem:[#allocation2 + $0x88] sm:$0xff] %vm755, 0.0
      %774 = vst.msk [vmem:[#allocation2 + $0x90] sm:$0xff] %vm755, 0.0
      %775 = vst.msk [vmem:[#allocation2 + $0x98] sm:$0xff] %vm755, 0.0
      %776 = vst.msk [vmem:[#allocation2 + $0xa0] sm:$0xff] %vm755, 0.0
      %777 = vst.msk [vmem:[#allocation2 + $0xa8] sm:$0xff] %vm755, 0.0
      %778 = vst.msk [vmem:[#allocation2 + $0xb0] sm:$0xff] %vm755, 0.0
      %779 = vst.msk [vmem:[#allocation2 + $0xb8] sm:$0xff] %vm755, 0.0
      %780 = vst.msk [vmem:[#allocation2 + $0xc0] sm:$0xff] %vm755, 0.0
      %781 = vst.msk [vmem:[#allocation2 + $0xc8] sm:$0xff] %vm755, 0.0
      %782 = vst.msk [vmem:[#allocation2 + $0xd0] sm:$0xff] %vm755, 0.0
      %783 = vst.msk [vmem:[#allocation2 + $0xd8] sm:$0xff] %vm755, 0.0
      %784 = vst.msk [vmem:[#allocation2 + $0xe0] sm:$0xff] %vm755, 0.0
      %785 = vst.msk [vmem:[#allocation2 + $0xe8] sm:$0xff] %vm755, 0.0
      %s786 = scalar_lea.vmem [#allocation2], 24
      %787 = vst.msk [vmem:[%s786 + $0x8] sm:$0xff] %vm755, %v747
      %788 = vst.msk [vmem:[%s786 + $0x20] sm:$0xff] %vm755, %v748
      %789 = vst.msk [vmem:[%s786 + $0x38] sm:$0xff] %vm755, %v749
      %790 = vst.msk [vmem:[%s786 + $0x50] sm:$0xff] %vm755, %v750
      %791 = vst.msk [vmem:[%s786 + $0x68] sm:$0xff] %vm755, %v751
      %792 = vst.msk [vmem:[%s786 + $0x80] sm:$0xff] %vm755, %v752
      %793 = vst.msk [vmem:[%s786 + $0x98] sm:$0xff] %vm755, %v753
      %794 = vst.msk [vmem:[%s786 + $0xb0] sm:$0xff] %vm755, %v754
      %v795 = vld [vmem:[#allocation2 + $0x7] sm:$0xff]
      %v796 = vld [vmem:[#allocation2 + $0x1f] sm:$0xff]
      %v797 = vld [vmem:[#allocation2 + $0x37] sm:$0xff]
      %v798 = vld [vmem:[#allocation2 + $0x4f] sm:$0xff]
      %v799 = vld [vmem:[#allocation2 + $0x67] sm:$0xff]
      %v800 = vld [vmem:[#allocation2 + $0x7f] sm:$0xff]
      %v801 = vld [vmem:[#allocation2 + $0x97] sm:$0xff]
      %v802 = vld [vmem:[#allocation2 + $0xaf] sm:$0xff]
      %v803 = vld [vmem:[%s4] sm:$0x1]
      %v804 = vlaneseq
      %v805 = vshrl.u32 %v804, 7
      %v806 = vsub.s32 0, %v805
      %v807 = vrot.slane %v803, %v806
      %v808 = vmul.f32 %v795, %v807
      %v809 = vmul.f32 %v796, %v807
      %v810 = vmul.f32 %v797, %v807
      %v811 = vmul.f32 %v798, %v807
      %v812 = vmul.f32 %v799, %v807
      %v813 = vmul.f32 %v800, %v807
      %v814 = vmul.f32 %v801, %v807
      %v815 = vmul.f32 %v802, %v807
      %v816 = vadd.f32 %v808, 0.0
      %v817 = vadd.f32 %v809, 0.0
      %v818 = vadd.f32 %v810, 0.0
      %v819 = vadd.f32 %v811, 0.0
      %v820 = vadd.f32 %v812, 0.0
      %v821 = vadd.f32 %v813, 0.0
      %v822 = vadd.f32 %v814, 0.0
      %v823 = vadd.f32 %v815, 0.0
      %v824 = vld [vmem:[#allocation2 + $0x8] sm:$0xff]
      %v825 = vld [vmem:[#allocation2 + $0x20] sm:$0xff]
      %v826 = vld [vmem:[#allocation2 + $0x38] sm:$0xff]
      %v827 = vld [vmem:[#allocation2 + $0x50] sm:$0xff]
      %v828 = vld [vmem:[#allocation2 + $0x68] sm:$0xff]
      %v829 = vld [vmem:[#allocation2 + $0x80] sm:$0xff]
      %v830 = vld [vmem:[#allocation2 + $0x98] sm:$0xff]
      %v831 = vld [vmem:[#allocation2 + $0xb0] sm:$0xff]
      %v832 = vld [vmem:[%s4 + $0x1] sm:$0x1]
      %v833 = vlaneseq
      %v834 = vshrl.u32 %v833, 7
      %v835 = vsub.s32 0, %v834
      %v836 = vrot.slane %v832, %v835
      %v837 = vmul.f32 %v824, %v836
      %v838 = vmul.f32 %v825, %v836
      %v839 = vmul.f32 %v826, %v836
      %v840 = vmul.f32 %v827, %v836
      %v841 = vmul.f32 %v828, %v836
      %v842 = vmul.f32 %v829, %v836
      %v843 = vmul.f32 %v830, %v836
      %v844 = vmul.f32 %v831, %v836
      %v845 = vadd.f32 %v816, %v837
      %v846 = vadd.f32 %v817, %v838
      %v847 = vadd.f32 %v818, %v839
      %v848 = vadd.f32 %v819, %v840
      %v849 = vadd.f32 %v820, %v841
      %v850 = vadd.f32 %v821, %v842
      %v851 = vadd.f32 %v822, %v843
      %v852 = vadd.f32 %v823, %v844
      %v853 = vld [vmem:[#allocation2 + $0x9] sm:$0xff]
      %v854 = vld [vmem:[#allocation2 + $0x21] sm:$0xff]
      %v855 = vld [vmem:[#allocation2 + $0x39] sm:$0xff]
      %v856 = vld [vmem:[#allocation2 + $0x51] sm:$0xff]
      %v857 = vld [vmem:[#allocation2 + $0x69] sm:$0xff]
      %v858 = vld [vmem:[#allocation2 + $0x81] sm:$0xff]
      %v859 = vld [vmem:[#allocation2 + $0x99] sm:$0xff]
      %v860 = vld [vmem:[#allocation2 + $0xb1] sm:$0xff]
      %v861 = vld [vmem:[%s4 + $0x2] sm:$0x1]
      %v862 = vlaneseq
      %v863 = vshrl.u32 %v862, 7
      %v864 = vsub.s32 0, %v863
      %v865 = vrot.slane %v861, %v864
      %v866 = vmul.f32 %v853, %v865
      %v867 = vmul.f32 %v854, %v865
      %v868 = vmul.f32 %v855, %v865
      %v869 = vmul.f32 %v856, %v865
      %v870 = vmul.f32 %v857, %v865
      %v871 = vmul.f32 %v858, %v865
      %v872 = vmul.f32 %v859, %v865
      %v873 = vmul.f32 %v860, %v865
      %v874 = vadd.f32 %v845, %v866
      %v875 = vadd.f32 %v846, %v867
      %v876 = vadd.f32 %v847, %v868
      %v877 = vadd.f32 %v848, %v869
      %v878 = vadd.f32 %v849, %v870
      %v879 = vadd.f32 %v850, %v871
      %v880 = vadd.f32 %v851, %v872
      %v881 = vadd.f32 %v852, %v873
      %v882 = vld [vmem:[%s786 + $0x7] sm:$0xff]
      %v883 = vld [vmem:[%s786 + $0x1f] sm:$0xff]
      %v884 = vld [vmem:[%s786 + $0x37] sm:$0xff]
      %v885 = vld [vmem:[%s786 + $0x4f] sm:$0xff]
      %v886 = vld [vmem:[%s786 + $0x67] sm:$0xff]
      %v887 = vld [vmem:[%s786 + $0x7f] sm:$0xff]
      %v888 = vld [vmem:[%s786 + $0x97] sm:$0xff]
      %v889 = vld [vmem:[%s786 + $0xaf] sm:$0xff]
      %s890 = scalar_lea.vmem %s4, 4
      %v891 = vld [vmem:[%s890] sm:$0x1]
      %v892 = vlaneseq
      %v893 = vshrl.u32 %v892, 7
      %v894 = vsub.s32 0, %v893
      %v895 = vrot.slane %v891, %v894
      %v896 = vmul.f32 %v882, %v895
      %v897 = vmul.f32 %v883, %v895
      %v898 = vmul.f32 %v884, %v895
      %v899 = vmul.f32 %v885, %v895
      %v900 = vmul.f32 %v886, %v895
      %v901 = vmul.f32 %v887, %v895
      %v902 = vmul.f32 %v888, %v895
      %v903 = vmul.f32 %v889, %v895
      %v904 = vadd.f32 %v874, %v896
      %v905 = vadd.f32 %v875, %v897
      %v906 = vadd.f32 %v876, %v898
      %v907 = vadd.f32 %v877, %v899
      %v908 = vadd.f32 %v878, %v900
      %v909 = vadd.f32 %v879, %v901
      %v910 = vadd.f32 %v880, %v902
      %v911 = vadd.f32 %v881, %v903
      %v912 = vld [vmem:[%s786 + $0x8] sm:$0xff]
      %v913 = vld [vmem:[%s786 + $0x20] sm:$0xff]
      %v914 = vld [vmem:[%s786 + $0x38] sm:$0xff]
      %v915 = vld [vmem:[%s786 + $0x50] sm:$0xff]
      %v916 = vld [vmem:[%s786 + $0x68] sm:$0xff]
      %v917 = vld [vmem:[%s786 + $0x80] sm:$0xff]
      %v918 = vld [vmem:[%s786 + $0x98] sm:$0xff]
      %v919 = vld [vmem:[%s786 + $0xb0] sm:$0xff]
      %v920 = vld [vmem:[%s890 + $0x1] sm:$0x1]
      %v921 = vlaneseq
      %v922 = vshrl.u32 %v921, 7
      %v923 = vsub.s32 0, %v922
      %v924 = vrot.slane %v920, %v923
      %v925 = vmul.f32 %v912, %v924
      %v926 = vmul.f32 %v913, %v924
      %v927 = vmul.f32 %v914, %v924
      %v928 = vmul.f32 %v915, %v924
      %v929 = vmul.f32 %v916, %v924
      %v930 = vmul.f32 %v917, %v924
      %v931 = vmul.f32 %v918, %v924
      %v932 = vmul.f32 %v919, %v924
      %v933 = vadd.f32 %v904, %v925
      %v934 = vadd.f32 %v905, %v926
      %v935 = vadd.f32 %v906, %v927
      %v936 = vadd.f32 %v907, %v928
      %v937 = vadd.f32 %v908, %v929
      %v938 = vadd.f32 %v909, %v930
      %v939 = vadd.f32 %v910, %v931
      %v940 = vadd.f32 %v911, %v932
      %v941 = vld [vmem:[%s786 + $0x9] sm:$0xff]
      %v942 = vld [vmem:[%s786 + $0x21] sm:$0xff]
      %v943 = vld [vmem:[%s786 + $0x39] sm:$0xff]
      %v944 = vld [vmem:[%s786 + $0x51] sm:$0xff]
      %v945 = vld [vmem:[%s786 + $0x69] sm:$0xff]
      %v946 = vld [vmem:[%s786 + $0x81] sm:$0xff]
      %v947 = vld [vmem:[%s786 + $0x99] sm:$0xff]
      %v948 = vld [vmem:[%s786 + $0xb1] sm:$0xff]
      %v949 = vld [vmem:[%s890 + $0x2] sm:$0x1]
      %v950 = vlaneseq
      %v951 = vshrl.u32 %v950, 7
      %v952 = vsub.s32 0, %v951
      %v953 = vrot.slane %v949, %v952
      %v954 = vmul.f32 %v941, %v953
      %v955 = vmul.f32 %v942, %v953
      %v956 = vmul.f32 %v943, %v953
      %v957 = vmul.f32 %v944, %v953
      %v958 = vmul.f32 %v945, %v953
      %v959 = vmul.f32 %v946, %v953
      %v960 = vmul.f32 %v947, %v953
      %v961 = vmul.f32 %v948, %v953
      %v962 = vadd.f32 %v933, %v954
      %v963 = vadd.f32 %v934, %v955
      %v964 = vadd.f32 %v935, %v956
      %v965 = vadd.f32 %v936, %v957
      %v966 = vadd.f32 %v937, %v958
      %v967 = vadd.f32 %v938, %v959
      %v968 = vadd.f32 %v939, %v960
      %v969 = vadd.f32 %v940, %v961
      %s970 = scalar_lea.vmem [#allocation2], 48
      %v971 = vld [vmem:[%s970 + $0x7] sm:$0xff]
      %v972 = vld [vmem:[%s970 + $0x1f] sm:$0xff]
      %v973 = vld [vmem:[%s970 + $0x37] sm:$0xff]
      %v974 = vld [vmem:[%s970 + $0x4f] sm:$0xff]
      %v975 = vld [vmem:[%s970 + $0x67] sm:$0xff]
      %v976 = vld [vmem:[%s970 + $0x7f] sm:$0xff]
      %v977 = vld [vmem:[%s970 + $0x97] sm:$0xff]
      %v978 = vld [vmem:[%s970 + $0xaf] sm:$0xff]
      %s979 = scalar_lea.vmem %s4, 8
      %v980 = vld [vmem:[%s979] sm:$0x1]
      %v981 = vlaneseq
      %v982 = vshrl.u32 %v981, 7
      %v983 = vsub.s32 0, %v982
      %v984 = vrot.slane %v980, %v983
      %v985 = vmul.f32 %v971, %v984
      %v986 = vmul.f32 %v972, %v984
      %v987 = vmul.f32 %v973, %v984
      %v988 = vmul.f32 %v974, %v984
      %v989 = vmul.f32 %v975, %v984
      %v990 = vmul.f32 %v976, %v984
      %v991 = vmul.f32 %v977, %v984
      %v992 = vmul.f32 %v978, %v984
      %v993 = vadd.f32 %v962, %v985
      %v994 = vadd.f32 %v963, %v986
      %v995 = vadd.f32 %v964, %v987
      %v996 = vadd.f32 %v965, %v988
      %v997 = vadd.f32 %v966, %v989
      %v998 = vadd.f32 %v967, %v990
      %v999 = vadd.f32 %v968, %v991
      %v1000 = vadd.f32 %v969, %v992
      %v1001 = vld [vmem:[%s970 + $0x8] sm:$0xff]
      %v1002 = vld [vmem:[%s970 + $0x20] sm:$0xff]
      %v1003 = vld [vmem:[%s970 + $0x38] sm:$0xff]
      %v1004 = vld [vmem:[%s970 + $0x50] sm:$0xff]
      %v1005 = vld [vmem:[%s970 + $0x68] sm:$0xff]
      %v1006 = vld [vmem:[%s970 + $0x80] sm:$0xff]
      %v1007 = vld [vmem:[%s970 + $0x98] sm:$0xff]
      %v1008 = vld [vmem:[%s970 + $0xb0] sm:$0xff]
      %v1009 = vld [vmem:[%s979 + $0x1] sm:$0x1]
      %v1010 = vlaneseq
      %v1011 = vshrl.u32 %v1010, 7
      %v1012 = vsub.s32 0, %v1011
      %v1013 = vrot.slane %v1009, %v1012
      %v1014 = vmul.f32 %v1001, %v1013
      %v1015 = vmul.f32 %v1002, %v1013
      %v1016 = vmul.f32 %v1003, %v1013
      %v1017 = vmul.f32 %v1004, %v1013
      %v1018 = vmul.f32 %v1005, %v1013
      %v1019 = vmul.f32 %v1006, %v1013
      %v1020 = vmul.f32 %v1007, %v1013
      %v1021 = vmul.f32 %v1008, %v1013
      %v1022 = vadd.f32 %v993, %v1014
      %v1023 = vadd.f32 %v994, %v1015
      %v1024 = vadd.f32 %v995, %v1016
      %v1025 = vadd.f32 %v996, %v1017
      %v1026 = vadd.f32 %v997, %v1018
      %v1027 = vadd.f32 %v998, %v1019
      %v1028 = vadd.f32 %v999, %v1020
      %v1029 = vadd.f32 %v1000, %v1021
      %v1030 = vld [vmem:[%s970 + $0x9] sm:$0xff]
      %v1031 = vld [vmem:[%s970 + $0x21] sm:$0xff]
      %v1032 = vld [vmem:[%s970 + $0x39] sm:$0xff]
      %v1033 = vld [vmem:[%s970 + $0x51] sm:$0xff]
      %v1034 = vld [vmem:[%s970 + $0x69] sm:$0xff]
      %v1035 = vld [vmem:[%s970 + $0x81] sm:$0xff]
      %v1036 = vld [vmem:[%s970 + $0x99] sm:$0xff]
      %v1037 = vld [vmem:[%s970 + $0xb1] sm:$0xff]
      %v1038 = vld [vmem:[%s979 + $0x2] sm:$0x1]
      %v1039 = vlaneseq
      %v1040 = vshrl.u32 %v1039, 7
      %v1041 = vsub.s32 0, %v1040
      %v1042 = vrot.slane %v1038, %v1041
      %v1043 = vmul.f32 %v1030, %v1042
      %v1044 = vmul.f32 %v1031, %v1042
      %v1045 = vmul.f32 %v1032, %v1042
      %v1046 = vmul.f32 %v1033, %v1042
      %v1047 = vmul.f32 %v1034, %v1042
      %v1048 = vmul.f32 %v1035, %v1042
      %v1049 = vmul.f32 %v1036, %v1042
      %v1050 = vmul.f32 %v1037, %v1042
      %v1051 = vadd.f32 %v1022, %v1043
      %v1052 = vadd.f32 %v1023, %v1044
      %v1053 = vadd.f32 %v1024, %v1045
      %v1054 = vadd.f32 %v1025, %v1046
      %v1055 = vadd.f32 %v1026, %v1047
      %v1056 = vadd.f32 %v1027, %v1048
      %v1057 = vadd.f32 %v1028, %v1049
      %v1058 = vadd.f32 %v1029, %v1050
      %v1059 = vld [vmem:[%s5] sm:$0x1]
      %v1061 = vlaneseq
      %v1062 = vshrl.u32 %v1061, 7
      %v1063 = vsub.s32 0, %v1062
      %v1064 = vrot.slane %v1059, %v1063
      %v1066 = vmul.f32 %v1051, %v1064
      %v1067 = vmul.f32 %v1052, %v1064
      %v1068 = vmul.f32 %v1053, %v1064
      %v1069 = vmul.f32 %v1054, %v1064
      %v1070 = vmul.f32 %v1055, %v1064
      %v1071 = vmul.f32 %v1056, %v1064
      %v1072 = vmul.f32 %v1057, %v1064
      %v1073 = vmul.f32 %v1058, %v1064
      %v1074 = vld [vmem:[%s6] sm:$0x1]
      %v1076 = vlaneseq
      %v1077 = vshrl.u32 %v1076, 7
      %v1078 = vsub.s32 0, %v1077
      %v1079 = vrot.slane %v1074, %v1078
      %v1081 = vadd.f32 %v1066, %v1079
      %v1082 = vadd.f32 %v1067, %v1079
      %v1083 = vadd.f32 %v1068, %v1079
      %v1084 = vadd.f32 %v1069, %v1079
      %v1085 = vadd.f32 %v1070, %v1079
      %v1086 = vadd.f32 %v1071, %v1079
      %v1087 = vadd.f32 %v1072, %v1079
      %v1088 = vadd.f32 %v1073, %v1079
      %v1089 = vadd.f32 %v1081, 3.0
      %v1090 = vadd.f32 %v1082, 3.0
      %v1091 = vadd.f32 %v1083, 3.0
      %v1092 = vadd.f32 %v1084, 3.0
      %v1093 = vadd.f32 %v1085, 3.0
      %v1094 = vadd.f32 %v1086, 3.0
      %v1095 = vadd.f32 %v1087, 3.0
      %v1096 = vadd.f32 %v1088, 3.0
      %v1097 = vmax.f32 %v1089, 0.0
      %v1098 = vmax.f32 %v1090, 0.0
      %v1099 = vmax.f32 %v1091, 0.0
      %v1100 = vmax.f32 %v1092, 0.0
      %v1101 = vmax.f32 %v1093, 0.0
      %v1102 = vmax.f32 %v1094, 0.0
      %v1103 = vmax.f32 %v1095, 0.0
      %v1104 = vmax.f32 %v1096, 0.0
      %v1105 = vmin.f32 %v1097, 6.0
      %v1106 = vmin.f32 %v1098, 6.0
      %v1107 = vmin.f32 %v1099, 6.0
      %v1108 = vmin.f32 %v1100, 6.0
      %v1109 = vmin.f32 %v1101, 6.0
      %v1110 = vmin.f32 %v1102, 6.0
      %v1111 = vmin.f32 %v1103, 6.0
      %v1112 = vmin.f32 %v1104, 6.0
      %v1113 = vmul.f32 %v1081, %v1105
      %v1114 = vmul.f32 %v1082, %v1106
      %v1115 = vmul.f32 %v1083, %v1107
      %v1116 = vmul.f32 %v1084, %v1108
      %v1117 = vmul.f32 %v1085, %v1109
      %v1118 = vmul.f32 %v1086, %v1110
      %v1119 = vmul.f32 %v1087, %v1111
      %v1120 = vmul.f32 %v1088, %v1112
      %v1121 = vmul.f32 %v1113, 0.16666667
      %v1122 = vmul.f32 %v1114, 0.16666667
      %v1123 = vmul.f32 %v1115, 0.16666667
      %v1124 = vmul.f32 %v1116, 0.16666667
      %v1125 = vmul.f32 %v1117, 0.16666667
      %v1126 = vmul.f32 %v1118, 0.16666667
      %v1127 = vmul.f32 %v1119, 0.16666667
      %v1128 = vmul.f32 %v1120, 0.16666667
      %v1129 = vsel %vm755, %v1121, 0.0
      %v1130 = vsel %vm755, %v1122, 0.0
      %v1131 = vadd.f32 %v1129, %v1130
      %v1132 = vsel %vm755, %v1123, 0.0
      %v1133 = vadd.f32 %v1131, %v1132
      %v1134 = vsel %vm755, %v1124, 0.0
      %v1135 = vadd.f32 %v1133, %v1134
      %v1136 = vsel %vm755, %v1125, 0.0
      %v1137 = vadd.f32 %v1135, %v1136
      %v1138 = vsel %vm755, %v1126, 0.0
      %v1139 = vadd.f32 %v1137, %v1138
      %v1140 = vsel %vm755, %v1127, 0.0
      %v1141 = vadd.f32 %v1139, %v1140
      %v1142 = vsel %vm755, %v1128, 0.0
      %v1143 = vadd.f32 %v1141, %v1142
      %v1144 = vrot.slane %v1143, 4
      %v1145 = vadd.f32 %v1143, %v1144
      %v1146 = vrot.slane %v1145, 2
      %v1147 = vadd.f32 %v1145, %v1146
      %v1148 = vrot.slane %v1147, 1
      %v1149 = vadd.f32 %v1147, %v1148
      %v1150 = vrcp.pop 64.0
      %v1151 = vmul.f32 %v1149, %v1150
      %v1152 = vld [vmem:[%s7] sm:$0xf]
      %v1153 = vmul.f32 %v1152, %v1151
      %vm1154 = vcmask 60416
      %v1155 = vsel %vm1154, %v1153, 0.0
      %1156 = vadd.xlane.f32.xlu0 %v1155
      %v1157 = vpop.xlane.xlu0 %1156
      %v1158 = vld [vmem:[%s8] sm:$0xf]
      %v1159 = vadd.f32 %v1157, %v1158
      %v1160 = vmax.f32 %v1159, 0.0
      %v1161 = vld [vmem:[%s9] sm:$0xf]
      %1163 = vset.pattern.permute.xlu0 0
      %1164 = vperm.xlu0 %1163, %v1160
      %v1165 = vpop.permute.xlu0 %1164
      %v1167 = vmul.f32 %v1161, %v1165
      %v1168 = vsel %vm1154, %v1167, 0.0
      %v1169 = vrot.slane %v1168, 4
      %v1170 = vadd.f32 %v1168, %v1169
      %v1171 = vrot.slane %v1170, 2
      %v1172 = vadd.f32 %v1170, %v1171
      %v1173 = vrot.slane %v1172, 1
      %v1174 = vadd.f32 %v1172, %v1173
      %v1175 = vld [vmem:[%s10] sm:$0x1]
      %v1176 = vadd.f32 %v1174, %v1175
      %v1177 = vadd.f32 %v1176, 3.0
      %v1178 = vmax.f32 %v1177, 0.0
      %v1179 = vmin.f32 %v1178, 6.0
      %v1180 = vmul.f32 %v1179, 0.16666667
      %v1181 = vlaneseq
      %v1182 = vshrl.u32 %v1181, 7
      %v1183 = vsub.s32 0, %v1182
      %v1184 = vrot.slane %v1180, %v1183
      %v1185 = vmul.f32 %v1121, %v1184
      %v1186 = vmul.f32 %v1122, %v1184
      %v1187 = vmul.f32 %v1123, %v1184
      %v1188 = vmul.f32 %v1124, %v1184
      %v1189 = vmul.f32 %v1125, %v1184
      %v1190 = vmul.f32 %v1126, %v1184
      %v1191 = vmul.f32 %v1127, %v1184
      %v1192 = vmul.f32 %v1128, %v1184
      %v1193 = vld [vmem:[%s11] sm:$0xff]
      %1195 = vset.pattern.permute.xlu0 0
      %1196 = vperm.xlu0 %1195, %v1185
      %v1197 = vpop.permute.xlu0 %1196
      %1200 = vset.pattern.permute.xlu0 0
      %1201 = vperm.xlu0 %1200, %v1186
      %v1202 = vpop.permute.xlu0 %1201
      %1205 = vset.pattern.permute.xlu0 0
      %1206 = vperm.xlu0 %1205, %v1187
      %v1207 = vpop.permute.xlu0 %1206
      %1210 = vset.pattern.permute.xlu0 0
      %1211 = vperm.xlu0 %1210, %v1188
      %v1212 = vpop.permute.xlu0 %1211
      %1215 = vset.pattern.permute.xlu0 0
      %1216 = vperm.xlu0 %1215, %v1189
      %v1217 = vpop.permute.xlu0 %1216
      %1220 = vset.pattern.permute.xlu0 0
      %1221 = vperm.xlu0 %1220, %v1190
      %v1222 = vpop.permute.xlu0 %1221
      %1225 = vset.pattern.permute.xlu0 0
      %1226 = vperm.xlu0 %1225, %v1191
      %v1227 = vpop.permute.xlu0 %1226
      %1230 = vset.pattern.permute.xlu0 0
      %1231 = vperm.xlu0 %1230, %v1192
      %v1232 = vpop.permute.xlu0 %1231
      %v1234 = vlaneseq
      %v1235 = vshrl.u32 %v1234, 7
      %v1236 = vsub.s32 0, %v1235
      %v1237 = vrot.slane %v1193, %v1236
      %v1238 = vmul.f32 %v1197, %v1237
      %v1239 = vmul.f32 %v1202, %v1237
      %v1240 = vmul.f32 %v1207, %v1237
      %v1241 = vmul.f32 %v1212, %v1237
      %v1242 = vmul.f32 %v1217, %v1237
      %v1243 = vmul.f32 %v1222, %v1237
      %v1244 = vmul.f32 %v1227, %v1237
      %v1245 = vmul.f32 %v1232, %v1237
      %1246 = vset.pattern.permute.xlu0 1
      %1247 = vperm.xlu0 %1246, %v1185
      %v1248 = vpop.permute.xlu0 %1247
      %1250 = vset.pattern.permute.xlu0 1
      %1251 = vperm.xlu0 %1250, %v1186
      %v1252 = vpop.permute.xlu0 %1251
      %1254 = vset.pattern.permute.xlu0 1
      %1255 = vperm.xlu0 %1254, %v1187
      %v1256 = vpop.permute.xlu0 %1255
      %1258 = vset.pattern.permute.xlu0 1
      %1259 = vperm.xlu0 %1258, %v1188
      %v1260 = vpop.permute.xlu0 %1259
      %1262 = vset.pattern.permute.xlu0 1
      %1263 = vperm.xlu0 %1262, %v1189
      %v1264 = vpop.permute.xlu0 %1263
      %1266 = vset.pattern.permute.xlu0 1
      %1267 = vperm.xlu0 %1266, %v1190
      %v1268 = vpop.permute.xlu0 %1267
      %1270 = vset.pattern.permute.xlu0 1
      %1271 = vperm.xlu0 %1270, %v1191
      %v1272 = vpop.permute.xlu0 %1271
      %1274 = vset.pattern.permute.xlu0 1
      %1275 = vperm.xlu0 %1274, %v1192
      %v1276 = vpop.permute.xlu0 %1275
      %v1278 = vlaneseq
      %v1279 = vshrl.u32 %v1278, 7
      %v1280 = vsub.s32 1, %v1279
      %v1281 = vrot.slane %v1193, %v1280
      %v1282 = vmul.f32 %v1248, %v1281
      %v1283 = vmul.f32 %v1252, %v1281
      %v1284 = vmul.f32 %v1256, %v1281
      %v1285 = vmul.f32 %v1260, %v1281
      %v1286 = vmul.f32 %v1264, %v1281
      %v1287 = vmul.f32 %v1268, %v1281
      %v1288 = vmul.f32 %v1272, %v1281
      %v1289 = vmul.f32 %v1276, %v1281
      %v1290 = vadd.f32 %v1238, %v1282
      %v1291 = vadd.f32 %v1239, %v1283
      %v1292 = vadd.f32 %v1240, %v1284
      %v1293 = vadd.f32 %v1241, %v1285
      %v1294 = vadd.f32 %v1242, %v1286
      %v1295 = vadd.f32 %v1243, %v1287
      %v1296 = vadd.f32 %v1244, %v1288
      %v1297 = vadd.f32 %v1245, %v1289
      %1298 = vset.pattern.permute.xlu0 2
      %1299 = vperm.xlu0 %1298, %v1185
      %v1300 = vpop.permute.xlu0 %1299
      %1302 = vset.pattern.permute.xlu0 2
      %1303 = vperm.xlu0 %1302, %v1186
      %v1304 = vpop.permute.xlu0 %1303
      %1306 = vset.pattern.permute.xlu0 2
      %1307 = vperm.xlu0 %1306, %v1187
      %v1308 = vpop.permute.xlu0 %1307
      %1310 = vset.pattern.permute.xlu0 2
      %1311 = vperm.xlu0 %1310, %v1188
      %v1312 = vpop.permute.xlu0 %1311
      %1314 = vset.pattern.permute.xlu0 2
      %1315 = vperm.xlu0 %1314, %v1189
      %v1316 = vpop.permute.xlu0 %1315
      %1318 = vset.pattern.permute.xlu0 2
      %1319 = vperm.xlu0 %1318, %v1190
      %v1320 = vpop.permute.xlu0 %1319
      %1322 = vset.pattern.permute.xlu0 2
      %1323 = vperm.xlu0 %1322, %v1191
      %v1324 = vpop.permute.xlu0 %1323
      %1326 = vset.pattern.permute.xlu0 2
      %1327 = vperm.xlu0 %1326, %v1192
      %v1328 = vpop.permute.xlu0 %1327
      %v1330 = vlaneseq
      %v1331 = vshrl.u32 %v1330, 7
      %v1332 = vsub.s32 2, %v1331
      %v1333 = vrot.slane %v1193, %v1332
      %v1334 = vmul.f32 %v1300, %v1333
      %v1335 = vmul.f32 %v1304, %v1333
      %v1336 = vmul.f32 %v1308, %v1333
      %v1337 = vmul.f32 %v1312, %v1333
      %v1338 = vmul.f32 %v1316, %v1333
      %v1339 = vmul.f32 %v1320, %v1333
      %v1340 = vmul.f32 %v1324, %v1333
      %v1341 = vmul.f32 %v1328, %v1333
      %v1342 = vadd.f32 %v1290, %v1334
      %v1343 = vadd.f32 %v1291, %v1335
      %v1344 = vadd.f32 %v1292, %v1336
      %v1345 = vadd.f32 %v1293, %v1337
      %v1346 = vadd.f32 %v1294, %v1338
      %v1347 = vadd.f32 %v1295, %v1339
      %v1348 = vadd.f32 %v1296, %v1340
      %v1349 = vadd.f32 %v1297, %v1341
      %1350 = vset.pattern.permute.xlu0 3
      %1351 = vperm.xlu0 %1350, %v1185
      %v1352 = vpop.permute.xlu0 %1351
      %1354 = vset.pattern.permute.xlu0 3
      %1355 = vperm.xlu0 %1354, %v1186
      %v1356 = vpop.permute.xlu0 %1355
      %1358 = vset.pattern.permute.xlu0 3
      %1359 = vperm.xlu0 %1358, %v1187
      %v1360 = vpop.permute.xlu0 %1359
      %1362 = vset.pattern.permute.xlu0 3
      %1363 = vperm.xlu0 %1362, %v1188
      %v1364 = vpop.permute.xlu0 %1363
      %1366 = vset.pattern.permute.xlu0 3
      %1367 = vperm.xlu0 %1366, %v1189
      %v1368 = vpop.permute.xlu0 %1367
      %1370 = vset.pattern.permute.xlu0 3
      %1371 = vperm.xlu0 %1370, %v1190
      %v1372 = vpop.permute.xlu0 %1371
      %1374 = vset.pattern.permute.xlu0 3
      %1375 = vperm.xlu0 %1374, %v1191
      %v1376 = vpop.permute.xlu0 %1375
      %1378 = vset.pattern.permute.xlu0 3
      %1379 = vperm.xlu0 %1378, %v1192
      %v1380 = vpop.permute.xlu0 %1379
      %v1382 = vlaneseq
      %v1383 = vshrl.u32 %v1382, 7
      %v1384 = vsub.s32 3, %v1383
      %v1385 = vrot.slane %v1193, %v1384
      %v1386 = vmul.f32 %v1352, %v1385
      %v1387 = vmul.f32 %v1356, %v1385
      %v1388 = vmul.f32 %v1360, %v1385
      %v1389 = vmul.f32 %v1364, %v1385
      %v1390 = vmul.f32 %v1368, %v1385
      %v1391 = vmul.f32 %v1372, %v1385
      %v1392 = vmul.f32 %v1376, %v1385
      %v1393 = vmul.f32 %v1380, %v1385
      %v1394 = vadd.f32 %v1342, %v1386
      %v1395 = vadd.f32 %v1343, %v1387
      %v1396 = vadd.f32 %v1344, %v1388
      %v1397 = vadd.f32 %v1345, %v1389
      %v1398 = vadd.f32 %v1346, %v1390
      %v1399 = vadd.f32 %v1347, %v1391
      %v1400 = vadd.f32 %v1348, %v1392
      %v1401 = vadd.f32 %v1349, %v1393
      %1402 = vset.pattern.permute.xlu0 4
      %1403 = vperm.xlu0 %1402, %v1185
      %v1404 = vpop.permute.xlu0 %1403
      %1406 = vset.pattern.permute.xlu0 4
      %1407 = vperm.xlu0 %1406, %v1186
      %v1408 = vpop.permute.xlu0 %1407
      %1410 = vset.pattern.permute.xlu0 4
      %1411 = vperm.xlu0 %1410, %v1187
      %v1412 = vpop.permute.xlu0 %1411
      %1414 = vset.pattern.permute.xlu0 4
      %1415 = vperm.xlu0 %1414, %v1188
      %v1416 = vpop.permute.xlu0 %1415
      %1418 = vset.pattern.permute.xlu0 4
      %1419 = vperm.xlu0 %1418, %v1189
      %v1420 = vpop.permute.xlu0 %1419
      %1422 = vset.pattern.permute.xlu0 4
      %1423 = vperm.xlu0 %1422, %v1190
      %v1424 = vpop.permute.xlu0 %1423
      %1426 = vset.pattern.permute.xlu0 4
      %1427 = vperm.xlu0 %1426, %v1191
      %v1428 = vpop.permute.xlu0 %1427
      %1430 = vset.pattern.permute.xlu0 4
      %1431 = vperm.xlu0 %1430, %v1192
      %v1432 = vpop.permute.xlu0 %1431
      %v1434 = vlaneseq
      %v1435 = vshrl.u32 %v1434, 7
      %v1436 = vsub.s32 4, %v1435
      %v1437 = vrot.slane %v1193, %v1436
      %v1438 = vmul.f32 %v1404, %v1437
      %v1439 = vmul.f32 %v1408, %v1437
      %v1440 = vmul.f32 %v1412, %v1437
      %v1441 = vmul.f32 %v1416, %v1437
      %v1442 = vmul.f32 %v1420, %v1437
      %v1443 = vmul.f32 %v1424, %v1437
      %v1444 = vmul.f32 %v1428, %v1437
      %v1445 = vmul.f32 %v1432, %v1437
      %v1446 = vadd.f32 %v1394, %v1438
      %v1447 = vadd.f32 %v1395, %v1439
      %v1448 = vadd.f32 %v1396, %v1440
      %v1449 = vadd.f32 %v1397, %v1441
      %v1450 = vadd.f32 %v1398, %v1442
      %v1451 = vadd.f32 %v1399, %v1443
      %v1452 = vadd.f32 %v1400, %v1444
      %v1453 = vadd.f32 %v1401, %v1445
      %1454 = vset.pattern.permute.xlu0 5
      %1455 = vperm.xlu0 %1454, %v1185
      %v1456 = vpop.permute.xlu0 %1455
      %1458 = vset.pattern.permute.xlu0 5
      %1459 = vperm.xlu0 %1458, %v1186
      %v1460 = vpop.permute.xlu0 %1459
      %1462 = vset.pattern.permute.xlu0 5
      %1463 = vperm.xlu0 %1462, %v1187
      %v1464 = vpop.permute.xlu0 %1463
      %1466 = vset.pattern.permute.xlu0 5
      %1467 = vperm.xlu0 %1466, %v1188
      %v1468 = vpop.permute.xlu0 %1467
      %1470 = vset.pattern.permute.xlu0 5
      %1471 = vperm.xlu0 %1470, %v1189
      %v1472 = vpop.permute.xlu0 %1471
      %1474 = vset.pattern.permute.xlu0 5
      %1475 = vperm.xlu0 %1474, %v1190
      %v1476 = vpop.permute.xlu0 %1475
      %1478 = vset.pattern.permute.xlu0 5
      %1479 = vperm.xlu0 %1478, %v1191
      %v1480 = vpop.permute.xlu0 %1479
      %1482 = vset.pattern.permute.xlu0 5
      %1483 = vperm.xlu0 %1482, %v1192
      %v1484 = vpop.permute.xlu0 %1483
      %v1486 = vlaneseq
      %v1487 = vshrl.u32 %v1486, 7
      %v1488 = vsub.s32 5, %v1487
      %v1489 = vrot.slane %v1193, %v1488
      %v1490 = vmul.f32 %v1456, %v1489
      %v1491 = vmul.f32 %v1460, %v1489
      %v1492 = vmul.f32 %v1464, %v1489
      %v1493 = vmul.f32 %v1468, %v1489
      %v1494 = vmul.f32 %v1472, %v1489
      %v1495 = vmul.f32 %v1476, %v1489
      %v1496 = vmul.f32 %v1480, %v1489
      %v1497 = vmul.f32 %v1484, %v1489
      %v1498 = vadd.f32 %v1446, %v1490
      %v1499 = vadd.f32 %v1447, %v1491
      %v1500 = vadd.f32 %v1448, %v1492
      %v1501 = vadd.f32 %v1449, %v1493
      %v1502 = vadd.f32 %v1450, %v1494
      %v1503 = vadd.f32 %v1451, %v1495
      %v1504 = vadd.f32 %v1452, %v1496
      %v1505 = vadd.f32 %v1453, %v1497
      %1506 = vset.pattern.permute.xlu0 6
      %1507 = vperm.xlu0 %1506, %v1185
      %v1508 = vpop.permute.xlu0 %1507
      %1510 = vset.pattern.permute.xlu0 6
      %1511 = vperm.xlu0 %1510, %v1186
      %v1512 = vpop.permute.xlu0 %1511
      %1514 = vset.pattern.permute.xlu0 6
      %1515 = vperm.xlu0 %1514, %v1187
      %v1516 = vpop.permute.xlu0 %1515
      %1518 = vset.pattern.permute.xlu0 6
      %1519 = vperm.xlu0 %1518, %v1188
      %v1520 = vpop.permute.xlu0 %1519
      %1522 = vset.pattern.permute.xlu0 6
      %1523 = vperm.xlu0 %1522, %v1189
      %v1524 = vpop.permute.xlu0 %1523
      %1526 = vset.pattern.permute.xlu0 6
      %1527 = vperm.xlu0 %1526, %v1190
      %v1528 = vpop.permute.xlu0 %1527
      %1530 = vset.pattern.permute.xlu0 6
      %1531 = vperm.xlu0 %1530, %v1191
      %v1532 = vpop.permute.xlu0 %1531
      %1534 = vset.pattern.permute.xlu0 6
      %1535 = vperm.xlu0 %1534, %v1192
      %v1536 = vpop.permute.xlu0 %1535
      %v1538 = vlaneseq
      %v1539 = vshrl.u32 %v1538, 7
      %v1540 = vsub.s32 6, %v1539
      %v1541 = vrot.slane %v1193, %v1540
      %v1542 = vmul.f32 %v1508, %v1541
      %v1543 = vmul.f32 %v1512, %v1541
      %v1544 = vmul.f32 %v1516, %v1541
      %v1545 = vmul.f32 %v1520, %v1541
      %v1546 = vmul.f32 %v1524, %v1541
      %v1547 = vmul.f32 %v1528, %v1541
      %v1548 = vmul.f32 %v1532, %v1541
      %v1549 = vmul.f32 %v1536, %v1541
      %v1550 = vadd.f32 %v1498, %v1542
      %v1551 = vadd.f32 %v1499, %v1543
      %v1552 = vadd.f32 %v1500, %v1544
      %v1553 = vadd.f32 %v1501, %v1545
      %v1554 = vadd.f32 %v1502, %v1546
      %v1555 = vadd.f32 %v1503, %v1547
      %v1556 = vadd.f32 %v1504, %v1548
      %v1557 = vadd.f32 %v1505, %v1549
      %1558 = vset.pattern.permute.xlu0 7
      %1559 = vperm.xlu0 %1558, %v1185
      %v1560 = vpop.permute.xlu0 %1559
      %1562 = vset.pattern.permute.xlu0 7
      %1563 = vperm.xlu0 %1562, %v1186
      %v1564 = vpop.permute.xlu0 %1563
      %1566 = vset.pattern.permute.xlu0 7
      %1567 = vperm.xlu0 %1566, %v1187
      %v1568 = vpop.permute.xlu0 %1567
      %1570 = vset.pattern.permute.xlu0 7
      %1571 = vperm.xlu0 %1570, %v1188
      %v1572 = vpop.permute.xlu0 %1571
      %1574 = vset.pattern.permute.xlu0 7
      %1575 = vperm.xlu0 %1574, %v1189
      %v1576 = vpop.permute.xlu0 %1575
      %1578 = vset.pattern.permute.xlu0 7
      %1579 = vperm.xlu0 %1578, %v1190
      %v1580 = vpop.permute.xlu0 %1579
      %1582 = vset.pattern.permute.xlu0 7
      %1583 = vperm.xlu0 %1582, %v1191
      %v1584 = vpop.permute.xlu0 %1583
      %1586 = vset.pattern.permute.xlu0 7
      %1587 = vperm.xlu0 %1586, %v1192
      %v1588 = vpop.permute.xlu0 %1587
      %v1590 = vlaneseq
      %v1591 = vshrl.u32 %v1590, 7
      %v1592 = vsub.s32 7, %v1591
      %v1593 = vrot.slane %v1193, %v1592
      %v1594 = vmul.f32 %v1560, %v1593
      %v1595 = vmul.f32 %v1564, %v1593
      %v1596 = vmul.f32 %v1568, %v1593
      %v1597 = vmul.f32 %v1572, %v1593
      %v1598 = vmul.f32 %v1576, %v1593
      %v1599 = vmul.f32 %v1580, %v1593
      %v1600 = vmul.f32 %v1584, %v1593
      %v1601 = vmul.f32 %v1588, %v1593
      %v1602 = vadd.f32 %v1550, %v1594
      %v1603 = vadd.f32 %v1551, %v1595
      %v1604 = vadd.f32 %v1552, %v1596
      %v1605 = vadd.f32 %v1553, %v1597
      %v1606 = vadd.f32 %v1554, %v1598
      %v1607 = vadd.f32 %v1555, %v1599
      %v1608 = vadd.f32 %v1556, %v1600
      %v1609 = vadd.f32 %v1557, %v1601
      %v1610 = vld [vmem:[%s12] sm:$0x1]
      %v1612 = vlaneseq
      %v1613 = vshrl.u32 %v1612, 7
      %v1614 = vsub.s32 0, %v1613
      %v1615 = vrot.slane %v1610, %v1614
      %v1617 = vmul.f32 %v1602, %v1615
      %v1618 = vmul.f32 %v1603, %v1615
      %v1619 = vmul.f32 %v1604, %v1615
      %v1620 = vmul.f32 %v1605, %v1615
      %v1621 = vmul.f32 %v1606, %v1615
      %v1622 = vmul.f32 %v1607, %v1615
      %v1623 = vmul.f32 %v1608, %v1615
      %v1624 = vmul.f32 %v1609, %v1615
      %v1625 = vld [vmem:[%s13] sm:$0x1]
      %v1627 = vlaneseq
      %v1628 = vshrl.u32 %v1627, 7
      %v1629 = vsub.s32 0, %v1628
      %v1630 = vrot.slane %v1625, %v1629
      %v1632 = vadd.f32 %v1617, %v1630
      %v1633 = vadd.f32 %v1618, %v1630
      %v1634 = vadd.f32 %v1619, %v1630
      %v1635 = vadd.f32 %v1620, %v1630
      %v1636 = vadd.f32 %v1621, %v1630
      %v1637 = vadd.f32 %v1622, %v1630
      %v1638 = vadd.f32 %v1623, %v1630
      %v1639 = vadd.f32 %v1624, %v1630
      %1640 = vst.msk [vmem:[%s467] sm:$0xff] %vm755, %v1632
      %1641 = vst.msk [vmem:[%s467 + $0x8] sm:$0xff] %vm755, %v1633
      %1642 = vst.msk [vmem:[%s467 + $0x10] sm:$0xff] %vm755, %v1634
      %1643 = vst.msk [vmem:[%s467 + $0x18] sm:$0xff] %vm755, %v1635
      %1644 = vst.msk [vmem:[%s467 + $0x20] sm:$0xff] %vm755, %v1636
      %1645 = vst.msk [vmem:[%s467 + $0x28] sm:$0xff] %vm755, %v1637
      %1646 = vst.msk [vmem:[%s467 + $0x30] sm:$0xff] %vm755, %v1638
      %1647 = vst.msk [vmem:[%s467 + $0x38] sm:$0xff] %vm755, %v1639
      %p1648 = scmp.lt.s32.totalorder %s25, 1
      %s1649 = scalar_select %p1648, %s25, 1
      %s1650 = smul.addr %s1649, 8
      %s1651 = smul.addr %s1650, 8
      %s1652 = scalar_lea.vmem %s14, %s1651
      // Predicated region
      $region77: #{_lambda_.4} parent=75 // pred_check
        %p1653 = pneg %p342
      $region78: #{_lambda_.4} parent=75 // pred_check_branch
        %1655 = sbr.rel (%p1653) target = $region80
      $region79: #{_lambda_.4} parent=75 // pred_region
        _
      $region80: #{_lambda_.4} parent=75 // pred_fallthru
        _
    $region76: #{_lambda_.4} parent=5 // pred_fallthru
      _
    %p1656 = scmp.le.s32.totalorder 2, %s20
    // Predicated region
    $region81: #{_lambda_.4} parent=5 // pred_check
      %p1657 = pneg %p1656
    $region82: #{_lambda_.4} parent=5 // pred_check_branch
      %1659 = sbr.rel (%p1657) target = $region84
    $region83: #{_lambda_.4} parent=5 // pred_region
      %s1660 = ssub.s32 %s20, 2
      // Predicated region
      $region85: #{_lambda_.4} parent=83 // pred_check
        %p1661 = pneg %p348
      $region86: #{_lambda_.4} parent=83 // pred_check_branch
        %1663 = sbr.rel (%p1661) target = $region88
      $region87: #{_lambda_.4} parent=83 // pred_region
        %p1664 = scmp.lt.s32.totalorder %s26, 1
        %s1665 = scalar_select %p1664, %s26, 1
        %s1666 = smul.addr %s1665, 8
        %s1667 = smul.addr %s1666, 8
        %s1668 = scalar_lea.vmem %s14, %s1667
      $region88: #{_lambda_.4} parent=83 // pred_fallthru
        _
    $region84: #{_lambda_.4} parent=5 // pred_fallthru
      _
  $region6: #{_lambda_.4} parent=0 // loop_footer
    %s24 = sadd.s32 1, %s20
  $region7: #{_lambda_.4} parent=0 // loop_footer_branch
    %19 = sbr.rel target = $region3
  $region8: #{_lambda_.4} parent=0 // loop_exit
    _

// kernel: _lambda_.5
$region0: #{_lambda_.5}
  #allocation0 [shape = 'u32[]', space=smem, size = 0x4, offset = 0x4, fixed_abs, tag = 'smem constant byte address 0x4 - core index']
  #allocation1 [shape = 'u32[144,128]{1,0:T(1,128)}', space=vmem, size = 0x12000, scoped, tag = 'internal scratch']
  #allocation2 [shape = 'f32[10,24,16]{2,1,0:T(8,128)}', space=vmem, size = 0x1e000, scoped, tag = 'scratch operand']
  %s0 = inlined_call_operand.vmem [shape: f32[2,64,8], index: 0, kind: input, shape index: {}]
  %s1 = inlined_call_operand.vmem [shape: f32[8,16], index: 1, kind: input, shape index: {}]
  %s2 = inlined_call_operand.vmem [shape: f32[1,16], index: 2, kind: input, shape index: {}]
  %s3 = inlined_call_operand.vmem [shape: f32[1,16], index: 3, kind: input, shape index: {}]
  %s4 = inlined_call_operand.vmem [shape: f32[3,3,16], index: 4, kind: input, shape index: {}]
  %s5 = inlined_call_operand.vmem [shape: f32[1,16], index: 5, kind: input, shape index: {}]
  %s6 = inlined_call_operand.vmem [shape: f32[1,16], index: 6, kind: input, shape index: {}]
  %s7 = inlined_call_operand.vmem [shape: f32[4,16], index: 7, kind: input, shape index: {}]
  %s8 = inlined_call_operand.vmem [shape: f32[4,1], index: 8, kind: input, shape index: {}]
  %s9 = inlined_call_operand.vmem [shape: f32[4,16], index: 9, kind: input, shape index: {}]
  %s10 = inlined_call_operand.vmem [shape: f32[1,16], index: 10, kind: input, shape index: {}]
  %s11 = inlined_call_operand.vmem [shape: f32[16,8], index: 11, kind: input, shape index: {}]
  %s12 = inlined_call_operand.vmem [shape: f32[1,8], index: 12, kind: input, shape index: {}]
  %s13 = inlined_call_operand.vmem [shape: f32[1,8], index: 13, kind: input, shape index: {}]
  %s14 = inlined_call_operand.vmem [shape: f32[2,64,8], index: 14, kind: output, shape index: {}]
  %s15 = sld [smem:[#allocation0]]
  $region89: #{_lambda_.5} parent=0
    _
  %s17 = ssub.s32 1, %s15
  %s18 = scalar_select 0, %s17, %s15
  loop: start=0, step=1, limit=4
  $region2: #{_lambda_.5} parent=0 // loop_pre_header
    _
  $region3: #{_lambda_.5} parent=0 // loop_header
    %s20 = sphi 0, %s24
    %p21 = scmp.ge.s32.totalorder %s20, 4
    %s30 = sphi 0, %s32
    %s33 = sphi 0, %s30
    %s34 = sphi 0, %s33
    %s50 = sphi 0, %s34
    %s54 = sphi 0, %s54
    %s56 = sphi 0, %s54
    %s57 = sphi 0, %s56
    %s71 = sphi 0, %s57
    %s75 = sphi 0, %s75
    %s77 = sphi 0, %s75
    %s78 = sphi 0, %s77
    %s92 = sphi 0, %s78
    %s96 = sphi 0, %s96
    %s98 = sphi 0, %s96
    %s99 = sphi 0, %s98
    %s113 = sphi 0, %s99
    %s117 = sphi 0, %s117
    %s119 = sphi 0, %s117
    %s120 = sphi 0, %s119
    %s134 = sphi 0, %s120
    %s138 = sphi 0, %s138
    %s140 = sphi 0, %s138
    %s141 = sphi 0, %s140
    %s155 = sphi 0, %s141
    %s159 = sphi 0, %s159
    %s161 = sphi 0, %s159
    %s162 = sphi 0, %s161
    %s176 = sphi 0, %s162
    %s180 = sphi 0, %s180
    %s182 = sphi 0, %s180
    %s183 = sphi 0, %s182
    %s197 = sphi 0, %s183
    %s201 = sphi 0, %s201
    %s203 = sphi 0, %s201
    %s204 = sphi 0, %s203
    %s218 = sphi 0, %s204
    %s222 = sphi 0, %s222
    %s224 = sphi 0, %s222
    %s225 = sphi 0, %s224
    %s239 = sphi 0, %s225
    %s243 = sphi 0, %s243
    %s245 = sphi 0, %s243
    %s246 = sphi 0, %s245
    %s260 = sphi 0, %s246
    %s264 = sphi 0, %s264
    %s266 = sphi 0, %s264
    %s267 = sphi 0, %s266
    %s281 = sphi 0, %s267
    %s285 = sphi 0, %s285
    %s287 = sphi 0, %s285
    %s288 = sphi 0, %s287
    %s302 = sphi 0, %s288
    %s306 = sphi 0, %s306
    %s308 = sphi 0, %s306
    %s309 = sphi 0, %s308
    %s323 = sphi 0, %s309
    %s329 = sphi 0, %s331
    %s332 = sphi 0, %s329
    %s333 = sphi 0, %s332
    %s349 = sphi 0, %s333
  $region4: #{_lambda_.5} parent=0 // loop_header_branch
    %23 = sbr.rel (%p21) target = $region8
  $region5: #{_lambda_.5} parent=0 // loop_body
    %s25 = ssub.s32 %s20, 1
    %s26 = ssub.s32 %s20, 2
    %s27 = sadd.s32 %s20, 1
    %s28 = ssub.s32 %s20, %s27
    %p29 = scmp.eq.s32.totalorder %s28, 0
    %s31 = sadd.s32 %s30, 1
    %s32 = scalar_select %p29, %s30, %s31
    %p35 = pneg %p29
    %p36 = scmp.eq.s32.totalorder %s20, 1
    %p37 = por %p35, %p36
    %p38 = scmp.ne.s32.totalorder %s30, %s33
    %p39 = scmp.eq.s32.totalorder %s20, 0
    %p40 = por %p38, %p39
    %p41 = scmp.ne.s32.totalorder %s30, %s33
    %p42 = scmp.eq.s32.totalorder %s25, 1
    %p43 = por %p41, %p42
    %p44 = scmp.ne.s32.totalorder %s33, %s34
    %p45 = scmp.eq.s32.totalorder %s25, 0
    %p46 = por %p44, %p45
    %p47 = scmp.ne.s32.totalorder %s33, %s34
    %p48 = scmp.eq.s32.totalorder %s26, 1
    %p49 = por %p47, %p48
    %p51 = scmp.ne.s32.totalorder %s34, %s50
    %p52 = scmp.eq.s32.totalorder %s26, 0
    %p53 = por %p51, %p52
    %s55 = sadd.s32 %s54, 1
    %p58 = scmp.eq.s32.totalorder %s20, 1
    %p59 = scmp.ne.s32.totalorder %s54, %s56
    %p60 = scmp.eq.s32.totalorder %s20, 0
    %p61 = por %p59, %p60
    %p62 = scmp.ne.s32.totalorder %s54, %s56
    %p63 = scmp.eq.s32.totalorder %s25, 1
    %p64 = por %p62, %p63
    %p65 = scmp.ne.s32.totalorder %s56, %s57
    %p66 = scmp.eq.s32.totalorder %s25, 0
    %p67 = por %p65, %p66
    %p68 = scmp.ne.s32.totalorder %s56, %s57
    %p69 = scmp.eq.s32.totalorder %s26, 1
    %p70 = por %p68, %p69
    %p72 = scmp.ne.s32.totalorder %s57, %s71
    %p73 = scmp.eq.s32.totalorder %s26, 0
    %p74 = por %p72, %p73
    %s76 = sadd.s32 %s75, 1
    %p79 = scmp.eq.s32.totalorder %s20, 1
    %p80 = scmp.ne.s32.totalorder %s75, %s77
    %p81 = scmp.eq.s32.totalorder %s20, 0
    %p82 = por %p80, %p81
    %p83 = scmp.ne.s32.totalorder %s75, %s77
    %p84 = scmp.eq.s32.totalorder %s25, 1
    %p85 = por %p83, %p84
    %p86 = scmp.ne.s32.totalorder %s77, %s78
    %p87 = scmp.eq.s32.totalorder %s25, 0
    %p88 = por %p86, %p87
    %p89 = scmp.ne.s32.totalorder %s77, %s78
    %p90 = scmp.eq.s32.totalorder %s26, 1
    %p91 = por %p89, %p90
    %p93 = scmp.ne.s32.totalorder %s78, %s92
    %p94 = scmp.eq.s32.totalorder %s26, 0
    %p95 = por %p93, %p94
    %s97 = sadd.s32 %s96, 1
    %p100 = scmp.eq.s32.totalorder %s20, 1
    %p101 = scmp.ne.s32.totalorder %s96, %s98
    %p102 = scmp.eq.s32.totalorder %s20, 0
    %p103 = por %p101, %p102
    %p104 = scmp.ne.s32.totalorder %s96, %s98
    %p105 = scmp.eq.s32.totalorder %s25, 1
    %p106 = por %p104, %p105
    %p107 = scmp.ne.s32.totalorder %s98, %s99
    %p108 = scmp.eq.s32.totalorder %s25, 0
    %p109 = por %p107, %p108
    %p110 = scmp.ne.s32.totalorder %s98, %s99
    %p111 = scmp.eq.s32.totalorder %s26, 1
    %p112 = por %p110, %p111
    %p114 = scmp.ne.s32.totalorder %s99, %s113
    %p115 = scmp.eq.s32.totalorder %s26, 0
    %p116 = por %p114, %p115
    %s118 = sadd.s32 %s117, 1
    %p121 = scmp.eq.s32.totalorder %s20, 1
    %p122 = scmp.ne.s32.totalorder %s117, %s119
    %p123 = scmp.eq.s32.totalorder %s20, 0
    %p124 = por %p122, %p123
    %p125 = scmp.ne.s32.totalorder %s117, %s119
    %p126 = scmp.eq.s32.totalorder %s25, 1
    %p127 = por %p125, %p126
    %p128 = scmp.ne.s32.totalorder %s119, %s120
    %p129 = scmp.eq.s32.totalorder %s25, 0
    %p130 = por %p128, %p129
    %p131 = scmp.ne.s32.totalorder %s119, %s120
    %p132 = scmp.eq.s32.totalorder %s26, 1
    %p133 = por %p131, %p132
    %p135 = scmp.ne.s32.totalorder %s120, %s134
    %p136 = scmp.eq.s32.totalorder %s26, 0
    %p137 = por %p135, %p136
    %s139 = sadd.s32 %s138, 1
    %p142 = scmp.eq.s32.totalorder %s20, 1
    %p143 = scmp.ne.s32.totalorder %s138, %s140
    %p144 = scmp.eq.s32.totalorder %s20, 0
    %p145 = por %p143, %p144
    %p146 = scmp.ne.s32.totalorder %s138, %s140
    %p147 = scmp.eq.s32.totalorder %s25, 1
    %p148 = por %p146, %p147
    %p149 = scmp.ne.s32.totalorder %s140, %s141
    %p150 = scmp.eq.s32.totalorder %s25, 0
    %p151 = por %p149, %p150
    %p152 = scmp.ne.s32.totalorder %s140, %s141
    %p153 = scmp.eq.s32.totalorder %s26, 1
    %p154 = por %p152, %p153
    %p156 = scmp.ne.s32.totalorder %s141, %s155
    %p157 = scmp.eq.s32.totalorder %s26, 0
    %p158 = por %p156, %p157
    %s160 = sadd.s32 %s159, 1
    %p163 = scmp.eq.s32.totalorder %s20, 1
    %p164 = scmp.ne.s32.totalorder %s159, %s161
    %p165 = scmp.eq.s32.totalorder %s20, 0
    %p166 = por %p164, %p165
    %p167 = scmp.ne.s32.totalorder %s159, %s161
    %p168 = scmp.eq.s32.totalorder %s25, 1
    %p169 = por %p167, %p168
    %p170 = scmp.ne.s32.totalorder %s161, %s162
    %p171 = scmp.eq.s32.totalorder %s25, 0
    %p172 = por %p170, %p171
    %p173 = scmp.ne.s32.totalorder %s161, %s162
    %p174 = scmp.eq.s32.totalorder %s26, 1
    %p175 = por %p173, %p174
    %p177 = scmp.ne.s32.totalorder %s162, %s176
    %p178 = scmp.eq.s32.totalorder %s26, 0
    %p179 = por %p177, %p178
    %s181 = sadd.s32 %s180, 1
    %p184 = scmp.eq.s32.totalorder %s20, 1
    %p185 = scmp.ne.s32.totalorder %s180, %s182
    %p186 = scmp.eq.s32.totalorder %s20, 0
    %p187 = por %p185, %p186
    %p188 = scmp.ne.s32.totalorder %s180, %s182
    %p189 = scmp.eq.s32.totalorder %s25, 1
    %p190 = por %p188, %p189
    %p191 = scmp.ne.s32.totalorder %s182, %s183
    %p192 = scmp.eq.s32.totalorder %s25, 0
    %p193 = por %p191, %p192
    %p194 = scmp.ne.s32.totalorder %s182, %s183
    %p195 = scmp.eq.s32.totalorder %s26, 1
    %p196 = por %p194, %p195
    %p198 = scmp.ne.s32.totalorder %s183, %s197
    %p199 = scmp.eq.s32.totalorder %s26, 0
    %p200 = por %p198, %p199
    %s202 = sadd.s32 %s201, 1
    %p205 = scmp.eq.s32.totalorder %s20, 1
    %p206 = scmp.ne.s32.totalorder %s201, %s203
    %p207 = scmp.eq.s32.totalorder %s20, 0
    %p208 = por %p206, %p207
    %p209 = scmp.ne.s32.totalorder %s201, %s203
    %p210 = scmp.eq.s32.totalorder %s25, 1
    %p211 = por %p209, %p210
    %p212 = scmp.ne.s32.totalorder %s203, %s204
    %p213 = scmp.eq.s32.totalorder %s25, 0
    %p214 = por %p212, %p213
    %p215 = scmp.ne.s32.totalorder %s203, %s204
    %p216 = scmp.eq.s32.totalorder %s26, 1
    %p217 = por %p215, %p216
    %p219 = scmp.ne.s32.totalorder %s204, %s218
    %p220 = scmp.eq.s32.totalorder %s26, 0
    %p221 = por %p219, %p220
    %s223 = sadd.s32 %s222, 1
    %p226 = scmp.eq.s32.totalorder %s20, 1
    %p227 = scmp.ne.s32.totalorder %s222, %s224
    %p228 = scmp.eq.s32.totalorder %s20, 0
    %p229 = por %p227, %p228
    %p230 = scmp.ne.s32.totalorder %s222, %s224
    %p231 = scmp.eq.s32.totalorder %s25, 1
    %p232 = por %p230, %p231
    %p233 = scmp.ne.s32.totalorder %s224, %s225
    %p234 = scmp.eq.s32.totalorder %s25, 0
    %p235 = por %p233, %p234
    %p236 = scmp.ne.s32.totalorder %s224, %s225
    %p237 = scmp.eq.s32.totalorder %s26, 1
    %p238 = por %p236, %p237
    %p240 = scmp.ne.s32.totalorder %s225, %s239
    %p241 = scmp.eq.s32.totalorder %s26, 0
    %p242 = por %p240, %p241
    %s244 = sadd.s32 %s243, 1
    %p247 = scmp.eq.s32.totalorder %s20, 1
    %p248 = scmp.ne.s32.totalorder %s243, %s245
    %p249 = scmp.eq.s32.totalorder %s20, 0
    %p250 = por %p248, %p249
    %p251 = scmp.ne.s32.totalorder %s243, %s245
    %p252 = scmp.eq.s32.totalorder %s25, 1
    %p253 = por %p251, %p252
    %p254 = scmp.ne.s32.totalorder %s245, %s246
    %p255 = scmp.eq.s32.totalorder %s25, 0
    %p256 = por %p254, %p255
    %p257 = scmp.ne.s32.totalorder %s245, %s246
    %p258 = scmp.eq.s32.totalorder %s26, 1
    %p259 = por %p257, %p258
    %p261 = scmp.ne.s32.totalorder %s246, %s260
    %p262 = scmp.eq.s32.totalorder %s26, 0
    %p263 = por %p261, %p262
    %s265 = sadd.s32 %s264, 1
    %p268 = scmp.eq.s32.totalorder %s20, 1
    %p269 = scmp.ne.s32.totalorder %s264, %s266
    %p270 = scmp.eq.s32.totalorder %s20, 0
    %p271 = por %p269, %p270
    %p272 = scmp.ne.s32.totalorder %s264, %s266
    %p273 = scmp.eq.s32.totalorder %s25, 1
    %p274 = por %p272, %p273
    %p275 = scmp.ne.s32.totalorder %s266, %s267
    %p276 = scmp.eq.s32.totalorder %s25, 0
    %p277 = por %p275, %p276
    %p278 = scmp.ne.s32.totalorder %s266, %s267
    %p279 = scmp.eq.s32.totalorder %s26, 1
    %p280 = por %p278, %p279
    %p282 = scmp.ne.s32.totalorder %s267, %s281
    %p283 = scmp.eq.s32.totalorder %s26, 0
    %p284 = por %p282, %p283
    %s286 = sadd.s32 %s285, 1
    %p289 = scmp.eq.s32.totalorder %s20, 1
    %p290 = scmp.ne.s32.totalorder %s285, %s287
    %p291 = scmp.eq.s32.totalorder %s20, 0
    %p292 = por %p290, %p291
    %p293 = scmp.ne.s32.totalorder %s285, %s287
    %p294 = scmp.eq.s32.totalorder %s25, 1
    %p295 = por %p293, %p294
    %p296 = scmp.ne.s32.totalorder %s287, %s288
    %p297 = scmp.eq.s32.totalorder %s25, 0
    %p298 = por %p296, %p297
    %p299 = scmp.ne.s32.totalorder %s287, %s288
    %p300 = scmp.eq.s32.totalorder %s26, 1
    %p301 = por %p299, %p300
    %p303 = scmp.ne.s32.totalorder %s288, %s302
    %p304 = scmp.eq.s32.totalorder %s26, 0
    %p305 = por %p303, %p304
    %s307 = sadd.s32 %s306, 1
    %p310 = scmp.eq.s32.totalorder %s20, 1
    %p311 = scmp.ne.s32.totalorder %s306, %s308
    %p312 = scmp.eq.s32.totalorder %s20, 0
    %p313 = por %p311, %p312
    %p314 = scmp.ne.s32.totalorder %s306, %s308
    %p315 = scmp.eq.s32.totalorder %s25, 1
    %p316 = por %p314, %p315
    %p317 = scmp.ne.s32.totalorder %s308, %s309
    %p318 = scmp.eq.s32.totalorder %s25, 0
    %p319 = por %p317, %p318
    %p320 = scmp.ne.s32.totalorder %s308, %s309
    %p321 = scmp.eq.s32.totalorder %s26, 1
    %p322 = por %p320, %p321
    %p324 = scmp.ne.s32.totalorder %s309, %s323
    %p325 = scmp.eq.s32.totalorder %s26, 0
    %p326 = por %p324, %p325
    %s327 = ssub.s32 %s20, %s27
    %p328 = scmp.eq.s32.totalorder %s327, 0
    %s330 = sadd.s32 %s329, 1
    %s331 = scalar_select %p328, %s329, %s330
    %p334 = pneg %p328
    %p335 = scmp.eq.s32.totalorder %s20, 1
    %p336 = por %p334, %p335
    %p337 = scmp.ne.s32.totalorder %s329, %s332
    %p338 = scmp.eq.s32.totalorder %s20, 0
    %p339 = por %p337, %p338
    %p340 = scmp.ne.s32.totalorder %s329, %s332
    %p341 = scmp.eq.s32.totalorder %s25, 1
    %p342 = por %p340, %p341
    %p343 = scmp.ne.s32.totalorder %s332, %s333
    %p344 = scmp.eq.s32.totalorder %s25, 0
    %p345 = por %p343, %p344
    %p346 = scmp.ne.s32.totalorder %s332, %s333
    %p347 = scmp.eq.s32.totalorder %s26, 1
    %p348 = por %p346, %p347
    %p350 = scmp.ne.s32.totalorder %s333, %s349
    %p351 = scmp.eq.s32.totalorder %s26, 0
    %p352 = por %p350, %p351
    %p353 = scmp.le.s32.totalorder 1, %s20
    %p354 = scmp.lt.s32.totalorder %s20, 3
    %p355 = pnand %p353, %p354
    %p356 = pneg %p355
    // Predicated region
    $region9: #{_lambda_.5} parent=5 // pred_check
      _
    $region10: #{_lambda_.5} parent=5 // pred_check_branch
      %358 = sbr.rel (%p355) target = $region12
    $region11: #{_lambda_.5} parent=5 // pred_region
      %s359 = ssub.s32 %s20, 1
      // Predicated region
      $region13: #{_lambda_.5} parent=11 // pred_check
        %p360 = pneg %p67
      $region14: #{_lambda_.5} parent=11 // pred_check_branch
        %362 = sbr.rel (%p360) target = $region16
      $region15: #{_lambda_.5} parent=11 // pred_region
        _
      $region16: #{_lambda_.5} parent=11 // pred_fallthru
        _
      // Predicated region
      $region17: #{_lambda_.5} parent=11 // pred_check
        %p363 = pneg %p88
      $region18: #{_lambda_.5} parent=11 // pred_check_branch
        %365 = sbr.rel (%p363) target = $region20
      $region19: #{_lambda_.5} parent=11 // pred_region
        _
      $region20: #{_lambda_.5} parent=11 // pred_fallthru
        _
      // Predicated region
      $region21: #{_lambda_.5} parent=11 // pred_check
        %p366 = pneg %p109
      $region22: #{_lambda_.5} parent=11 // pred_check_branch
        %368 = sbr.rel (%p366) target = $region24
      $region23: #{_lambda_.5} parent=11 // pred_region
        _
      $region24: #{_lambda_.5} parent=11 // pred_fallthru
        _
      // Predicated region
      $region25: #{_lambda_.5} parent=11 // pred_check
        %p369 = pneg %p130
      $region26: #{_lambda_.5} parent=11 // pred_check_branch
        %371 = sbr.rel (%p369) target = $region28
      $region27: #{_lambda_.5} parent=11 // pred_region
        _
      $region28: #{_lambda_.5} parent=11 // pred_fallthru
        _
      // Predicated region
      $region29: #{_lambda_.5} parent=11 // pred_check
        %p372 = pneg %p151
      $region30: #{_lambda_.5} parent=11 // pred_check_branch
        %374 = sbr.rel (%p372) target = $region32
      $region31: #{_lambda_.5} parent=11 // pred_region
        _
      $region32: #{_lambda_.5} parent=11 // pred_fallthru
        _
      // Predicated region
      $region33: #{_lambda_.5} parent=11 // pred_check
        %p375 = pneg %p172
      $region34: #{_lambda_.5} parent=11 // pred_check_branch
        %377 = sbr.rel (%p375) target = $region36
      $region35: #{_lambda_.5} parent=11 // pred_region
        _
      $region36: #{_lambda_.5} parent=11 // pred_fallthru
        _
      // Predicated region
      $region37: #{_lambda_.5} parent=11 // pred_check
        %p378 = pneg %p193
      $region38: #{_lambda_.5} parent=11 // pred_check_branch
        %380 = sbr.rel (%p378) target = $region40
      $region39: #{_lambda_.5} parent=11 // pred_region
        _
      $region40: #{_lambda_.5} parent=11 // pred_fallthru
        _
      // Predicated region
      $region41: #{_lambda_.5} parent=11 // pred_check
        %p381 = pneg %p214
      $region42: #{_lambda_.5} parent=11 // pred_check_branch
        %383 = sbr.rel (%p381) target = $region44
      $region43: #{_lambda_.5} parent=11 // pred_region
        _
      $region44: #{_lambda_.5} parent=11 // pred_fallthru
        _
      // Predicated region
      $region45: #{_lambda_.5} parent=11 // pred_check
        %p384 = pneg %p235
      $region46: #{_lambda_.5} parent=11 // pred_check_branch
        %386 = sbr.rel (%p384) target = $region48
      $region47: #{_lambda_.5} parent=11 // pred_region
        _
      $region48: #{_lambda_.5} parent=11 // pred_fallthru
        _
      // Predicated region
      $region49: #{_lambda_.5} parent=11 // pred_check
        %p387 = pneg %p256
      $region50: #{_lambda_.5} parent=11 // pred_check_branch
        %389 = sbr.rel (%p387) target = $region52
      $region51: #{_lambda_.5} parent=11 // pred_region
        _
      $region52: #{_lambda_.5} parent=11 // pred_fallthru
        _
      // Predicated region
      $region53: #{_lambda_.5} parent=11 // pred_check
        %p390 = pneg %p277
      $region54: #{_lambda_.5} parent=11 // pred_check_branch
        %392 = sbr.rel (%p390) target = $region56
      $region55: #{_lambda_.5} parent=11 // pred_region
        _
      $region56: #{_lambda_.5} parent=11 // pred_fallthru
        _
      // Predicated region
      $region57: #{_lambda_.5} parent=11 // pred_check
        %p393 = pneg %p298
      $region58: #{_lambda_.5} parent=11 // pred_check_branch
        %395 = sbr.rel (%p393) target = $region60
      $region59: #{_lambda_.5} parent=11 // pred_region
        _
      $region60: #{_lambda_.5} parent=11 // pred_fallthru
        _
      // Predicated region
      $region61: #{_lambda_.5} parent=11 // pred_check
        %p396 = pneg %p319
      $region62: #{_lambda_.5} parent=11 // pred_check_branch
        %398 = sbr.rel (%p396) target = $region64
      $region63: #{_lambda_.5} parent=11 // pred_region
        _
      $region64: #{_lambda_.5} parent=11 // pred_fallthru
        _
    $region12: #{_lambda_.5} parent=5 // pred_fallthru
      _
    %p399 = scmp.lt.s32.totalorder %s20, 2
    // Predicated region
    $region65: #{_lambda_.5} parent=5 // pred_check
      %p400 = pneg %p399
    $region66: #{_lambda_.5} parent=5 // pred_check_branch
      %402 = sbr.rel (%p400) target = $region68
    $region67: #{_lambda_.5} parent=5 // pred_region
      // Predicated region
      $region69: #{_lambda_.5} parent=67 // pred_check
        %p403 = pneg %p40
      $region70: #{_lambda_.5} parent=67 // pred_check_branch
        %405 = sbr.rel (%p403) target = $region72
      $region71: #{_lambda_.5} parent=67 // pred_region
        %p406 = scmp.lt.s32.totalorder %s20, 1
        %s407 = scalar_select %p406, %s20, 1
        %s408 = smul.addr %s407, 8
        %s409 = smul.addr %s408, 8
        %s410 = scalar_lea.vmem %s0, %s409
      $region72: #{_lambda_.5} parent=67 // pred_fallthru
        _
    $region68: #{_lambda_.5} parent=5 // pred_fallthru
      _
    %p411 = scmp.le.s32.totalorder 1, %s20
    %p412 = scmp.lt.s32.totalorder %s20, 3
    %p413 = pnand %p411, %p412
    %p414 = pneg %p413
    // Predicated region
    $region73: #{_lambda_.5} parent=5 // pred_check
      _
    $region74: #{_lambda_.5} parent=5 // pred_check_branch
      %416 = sbr.rel (%p413) target = $region76
    $region75: #{_lambda_.5} parent=5 // pred_region
      %s417 = ssub.s32 %s20, 1
      %p418 = scmp.lt.s32.totalorder %s25, 1
      %s419 = scalar_select %p418, %s25, 1
      %s420 = smul.addr %s419, 8
      %s421 = smul.addr %s420, 8
      %s422 = scalar_lea.vmem %s0, %s421
      %p423 = pneg %p46
      %p424 = pneg %p43
      %p425 = pneg %p67
      %p426 = pneg %p64
      %p427 = pneg %p88
      %p428 = pneg %p85
      %p429 = pneg %p109
      %p430 = pneg %p106
      %p431 = pneg %p130
      %p432 = pneg %p127
      %p433 = pneg %p151
      %p434 = pneg %p148
      %p435 = pneg %p172
      %p436 = pneg %p169
      %p437 = pneg %p193
      %p438 = pneg %p190
      %p439 = pneg %p214
      %p440 = pneg %p211
      %p441 = pneg %p235
      %p442 = pneg %p232
      %p443 = pneg %p256
      %p444 = pneg %p253
      %p445 = pneg %p277
      %p446 = pneg %p274
      %p447 = pneg %p298
      %p448 = pneg %p295
      %p449 = pneg %p319
      %p450 = pneg %p316
      %p451 = pneg %p345
      %p452 = pneg %p342
      %p453 = scmp.lt.s32.totalorder %s25, 1
      %s454 = scalar_select %p453, %s25, 1
      %s455 = smul.addr %s454, 8
      %s456 = smul.addr %s455, 8
      %s457 = scalar_lea.vmem %s14, %s456
      %p458 = scmp.lt.s32.totalorder %s25, 1
      %s459 = scalar_select %p458, %s25, 1
      %s460 = smul.addr %s459, 8
      %s461 = smul.addr %s460, 8
      %s462 = scalar_lea.vmem %s0, %s461
      %p463 = scmp.lt.s32.totalorder %s25, 1
      %s464 = scalar_select %p463, %s25, 1
      %s465 = smul.addr %s464, 8
      %s466 = smul.addr %s465, 8
      %s467 = scalar_lea.vmem %s14, %s466
      %v468 = vld [vmem:[%s462] sm:$0xff]
      %v469 = vld [vmem:[%s462 + $0x8] sm:$0xff]
      %v470 = vld [vmem:[%s462 + $0x10] sm:$0xff]
      %v471 = vld [vmem:[%s462 + $0x18] sm:$0xff]
      %v472 = vld [vmem:[%s462 + $0x20] sm:$0xff]
      %v473 = vld [vmem:[%s462 + $0x28] sm:$0xff]
      %v474 = vld [vmem:[%s462 + $0x30] sm:$0xff]
      %v475 = vld [vmem:[%s462 + $0x38] sm:$0xff]
      %v476 = vld [vmem:[%s1] sm:$0xff]
      %478 = vset.pattern.permute.xlu0 0
      %479 = vperm.xlu0 %478, %v468
      %v480 = vpop.permute.xlu0 %479
      %483 = vset.pattern.permute.xlu0 0
      %484 = vperm.xlu0 %483, %v469
      %v485 = vpop.permute.xlu0 %484
      %488 = vset.pattern.permute.xlu0 0
      %489 = vperm.xlu0 %488, %v470
      %v490 = vpop.permute.xlu0 %489
      %493 = vset.pattern.permute.xlu0 0
      %494 = vperm.xlu0 %493, %v471
      %v495 = vpop.permute.xlu0 %494
      %498 = vset.pattern.permute.xlu0 0
      %499 = vperm.xlu0 %498, %v472
      %v500 = vpop.permute.xlu0 %499
      %503 = vset.pattern.permute.xlu0 0
      %504 = vperm.xlu0 %503, %v473
      %v505 = vpop.permute.xlu0 %504
      %508 = vset.pattern.permute.xlu0 0
      %509 = vperm.xlu0 %508, %v474
      %v510 = vpop.permute.xlu0 %509
      %513 = vset.pattern.permute.xlu0 0
      %514 = vperm.xlu0 %513, %v475
      %v515 = vpop.permute.xlu0 %514
      %v517 = vlaneseq
      %v518 = vshrl.u32 %v517, 7
      %v519 = vsub.s32 0, %v518
      %v520 = vrot.slane %v476, %v519
      %v521 = vmul.f32 %v480, %v520
      %v522 = vmul.f32 %v485, %v520
      %v523 = vmul.f32 %v490, %v520
      %v524 = vmul.f32 %v495, %v520
      %v525 = vmul.f32 %v500, %v520
      %v526 = vmul.f32 %v505, %v520
      %v527 = vmul.f32 %v510, %v520
      %v528 = vmul.f32 %v515, %v520
      %529 = vset.pattern.permute.xlu0 1
      %530 = vperm.xlu0 %529, %v468
      %v531 = vpop.permute.xlu0 %530
      %533 = vset.pattern.permute.xlu0 1
      %534 = vperm.xlu0 %533, %v469
      %v535 = vpop.permute.xlu0 %534
      %537 = vset.pattern.permute.xlu0 1
      %538 = vperm.xlu0 %537, %v470
      %v539 = vpop.permute.xlu0 %538
      %541 = vset.pattern.permute.xlu0 1
      %542 = vperm.xlu0 %541, %v471
      %v543 = vpop.permute.xlu0 %542
      %545 = vset.pattern.permute.xlu0 1
      %546 = vperm.xlu0 %545, %v472
      %v547 = vpop.permute.xlu0 %546
      %549 = vset.pattern.permute.xlu0 1
      %550 = vperm.xlu0 %549, %v473
      %v551 = vpop.permute.xlu0 %550
      %553 = vset.pattern.permute.xlu0 1
      %554 = vperm.xlu0 %553, %v474
      %v555 = vpop.permute.xlu0 %554
      %557 = vset.pattern.permute.xlu0 1
      %558 = vperm.xlu0 %557, %v475
      %v559 = vpop.permute.xlu0 %558
      %v561 = vlaneseq
      %v562 = vshrl.u32 %v561, 7
      %v563 = vsub.s32 1, %v562
      %v564 = vrot.slane %v476, %v563
      %v565 = vmul.f32 %v531, %v564
      %v566 = vmul.f32 %v535, %v564
      %v567 = vmul.f32 %v539, %v564
      %v568 = vmul.f32 %v543, %v564
      %v569 = vmul.f32 %v547, %v564
      %v570 = vmul.f32 %v551, %v564
      %v571 = vmul.f32 %v555, %v564
      %v572 = vmul.f32 %v559, %v564
      %v573 = vadd.f32 %v521, %v565
      %v574 = vadd.f32 %v522, %v566
      %v575 = vadd.f32 %v523, %v567
      %v576 = vadd.f32 %v524, %v568
      %v577 = vadd.f32 %v525, %v569
      %v578 = vadd.f32 %v526, %v570
      %v579 = vadd.f32 %v527, %v571
      %v580 = vadd.f32 %v528, %v572
      %581 = vset.pattern.permute.xlu0 2
      %582 = vperm.xlu0 %581, %v468
      %v583 = vpop.permute.xlu0 %582
      %585 = vset.pattern.permute.xlu0 2
      %586 = vperm.xlu0 %585, %v469
      %v587 = vpop.permute.xlu0 %586
      %589 = vset.pattern.permute.xlu0 2
      %590 = vperm.xlu0 %589, %v470
      %v591 = vpop.permute.xlu0 %590
      %593 = vset.pattern.permute.xlu0 2
      %594 = vperm.xlu0 %593, %v471
      %v595 = vpop.permute.xlu0 %594
      %597 = vset.pattern.permute.xlu0 2
      %598 = vperm.xlu0 %597, %v472
      %v599 = vpop.permute.xlu0 %598
      %601 = vset.pattern.permute.xlu0 2
      %602 = vperm.xlu0 %601, %v473
      %v603 = vpop.permute.xlu0 %602
      %605 = vset.pattern.permute.xlu0 2
      %606 = vperm.xlu0 %605, %v474
      %v607 = vpop.permute.xlu0 %606
      %609 = vset.pattern.permute.xlu0 2
      %610 = vperm.xlu0 %609, %v475
      %v611 = vpop.permute.xlu0 %610
      %v613 = vlaneseq
      %v614 = vshrl.u32 %v613, 7
      %v615 = vsub.s32 2, %v614
      %v616 = vrot.slane %v476, %v615
      %v617 = vmul.f32 %v583, %v616
      %v618 = vmul.f32 %v587, %v616
      %v619 = vmul.f32 %v591, %v616
      %v620 = vmul.f32 %v595, %v616
      %v621 = vmul.f32 %v599, %v616
      %v622 = vmul.f32 %v603, %v616
      %v623 = vmul.f32 %v607, %v616
      %v624 = vmul.f32 %v611, %v616
      %v625 = vadd.f32 %v573, %v617
      %v626 = vadd.f32 %v574, %v618
      %v627 = vadd.f32 %v575, %v619
      %v628 = vadd.f32 %v576, %v620
      %v629 = vadd.f32 %v577, %v621
      %v630 = vadd.f32 %v578, %v622
      %v631 = vadd.f32 %v579, %v623
      %v632 = vadd.f32 %v580, %v624
      %633 = vset.pattern.permute.xlu0 3
      %634 = vperm.xlu0 %633, %v468
      %v635 = vpop.permute.xlu0 %634
      %637 = vset.pattern.permute.xlu0 3
      %638 = vperm.xlu0 %637, %v469
      %v639 = vpop.permute.xlu0 %638
      %641 = vset.pattern.permute.xlu0 3
      %642 = vperm.xlu0 %641, %v470
      %v643 = vpop.permute.xlu0 %642
      %645 = vset.pattern.permute.xlu0 3
      %646 = vperm.xlu0 %645, %v471
      %v647 = vpop.permute.xlu0 %646
      %649 = vset.pattern.permute.xlu0 3
      %650 = vperm.xlu0 %649, %v472
      %v651 = vpop.permute.xlu0 %650
      %653 = vset.pattern.permute.xlu0 3
      %654 = vperm.xlu0 %653, %v473
      %v655 = vpop.permute.xlu0 %654
      %657 = vset.pattern.permute.xlu0 3
      %658 = vperm.xlu0 %657, %v474
      %v659 = vpop.permute.xlu0 %658
      %661 = vset.pattern.permute.xlu0 3
      %662 = vperm.xlu0 %661, %v475
      %v663 = vpop.permute.xlu0 %662
      %v665 = vlaneseq
      %v666 = vshrl.u32 %v665, 7
      %v667 = vsub.s32 3, %v666
      %v668 = vrot.slane %v476, %v667
      %v669 = vmul.f32 %v635, %v668
      %v670 = vmul.f32 %v639, %v668
      %v671 = vmul.f32 %v643, %v668
      %v672 = vmul.f32 %v647, %v668
      %v673 = vmul.f32 %v651, %v668
      %v674 = vmul.f32 %v655, %v668
      %v675 = vmul.f32 %v659, %v668
      %v676 = vmul.f32 %v663, %v668
      %v677 = vadd.f32 %v625, %v669
      %v678 = vadd.f32 %v626, %v670
      %v679 = vadd.f32 %v627, %v671
      %v680 = vadd.f32 %v628, %v672
      %v681 = vadd.f32 %v629, %v673
      %v682 = vadd.f32 %v630, %v674
      %v683 = vadd.f32 %v631, %v675
      %v684 = vadd.f32 %v632, %v676
      %685 = vset.pattern.permute.xlu0 4
      %686 = vperm.xlu0 %685, %v468
      %v687 = vpop.permute.xlu0 %686
      %689 = vset.pattern.permute.xlu0 4
      %690 = vperm.xlu0 %689, %v469
      %v691 = vpop.permute.xlu0 %690
      %693 = vset.pattern.permute.xlu0 4
      %694 = vperm.xlu0 %693, %v470
      %v695 = vpop.permute.xlu0 %694
      %697 = vset.pattern.permute.xlu0 4
      %698 = vperm.xlu0 %697, %v471
      %v699 = vpop.permute.xlu0 %698
      %701 = vset.pattern.permute.xlu0 4
      %702 = vperm.xlu0 %701, %v472
      %v703 = vpop.permute.xlu0 %702
      %705 = vset.pattern.permute.xlu0 4
      %706 = vperm.xlu0 %705, %v473
      %v707 = vpop.permute.xlu0 %706
      %709 = vset.pattern.permute.xlu0 4
      %710 = vperm.xlu0 %709, %v474
      %v711 = vpop.permute.xlu0 %710
      %713 = vset.pattern.permute.xlu0 4
      %714 = vperm.xlu0 %713, %v475
      %v715 = vpop.permute.xlu0 %714
      %v717 = vlaneseq
      %v718 = vshrl.u32 %v717, 7
      %v719 = vsub.s32 4, %v718
      %v720 = vrot.slane %v476, %v719
      %v721 = vmul.f32 %v687, %v720
      %v722 = vmul.f32 %v691, %v720
      %v723 = vmul.f32 %v695, %v720
      %v724 = vmul.f32 %v699, %v720
      %v725 = vmul.f32 %v703, %v720
      %v726 = vmul.f32 %v707, %v720
      %v727 = vmul.f32 %v711, %v720
      %v728 = vmul.f32 %v715, %v720
      %v729 = vadd.f32 %v677, %v721
      %v730 = vadd.f32 %v678, %v722
      %v731 = vadd.f32 %v679, %v723
      %v732 = vadd.f32 %v680, %v724
      %v733 = vadd.f32 %v681, %v725
      %v734 = vadd.f32 %v682, %v726
      %v735 = vadd.f32 %v683, %v727
      %v736 = vadd.f32 %v684, %v728
      %737 = vset.pattern.permute.xlu0 5
      %738 = vperm.xlu0 %737, %v468
      %v739 = vpop.permute.xlu0 %738
      %741 = vset.pattern.permute.xlu0 5
      %742 = vperm.xlu0 %741, %v469
      %v743 = vpop.permute.xlu0 %742
      %745 = vset.pattern.permute.xlu0 5
      %746 = vperm.xlu0 %745, %v470
      %v747 = vpop.permute.xlu0 %746
      %749 = vset.pattern.permute.xlu0 5
      %750 = vperm.xlu0 %749, %v471
      %v751 = vpop.permute.xlu0 %750
      %753 = vset.pattern.permute.xlu0 5
      %754 = vperm.xlu0 %753, %v472
      %v755 = vpop.permute.xlu0 %754
      %757 = vset.pattern.permute.xlu0 5
      %758 = vperm.xlu0 %757, %v473
      %v759 = vpop.permute.xlu0 %758
      %761 = vset.pattern.permute.xlu0 5
      %762 = vperm.xlu0 %761, %v474
      %v763 = vpop.permute.xlu0 %762
      %765 = vset.pattern.permute.xlu0 5
      %766 = vperm.xlu0 %765, %v475
      %v767 = vpop.permute.xlu0 %766
      %v769 = vlaneseq
      %v770 = vshrl.u32 %v769, 7
      %v771 = vsub.s32 5, %v770
      %v772 = vrot.slane %v476, %v771
      %v773 = vmul.f32 %v739, %v772
      %v774 = vmul.f32 %v743, %v772
      %v775 = vmul.f32 %v747, %v772
      %v776 = vmul.f32 %v751, %v772
      %v777 = vmul.f32 %v755, %v772
      %v778 = vmul.f32 %v759, %v772
      %v779 = vmul.f32 %v763, %v772
      %v780 = vmul.f32 %v767, %v772
      %v781 = vadd.f32 %v729, %v773
      %v782 = vadd.f32 %v730, %v774
      %v783 = vadd.f32 %v731, %v775
      %v784 = vadd.f32 %v732, %v776
      %v785 = vadd.f32 %v733, %v777
      %v786 = vadd.f32 %v734, %v778
      %v787 = vadd.f32 %v735, %v779
      %v788 = vadd.f32 %v736, %v780
      %789 = vset.pattern.permute.xlu0 6
      %790 = vperm.xlu0 %789, %v468
      %v791 = vpop.permute.xlu0 %790
      %793 = vset.pattern.permute.xlu0 6
      %794 = vperm.xlu0 %793, %v469
      %v795 = vpop.permute.xlu0 %794
      %797 = vset.pattern.permute.xlu0 6
      %798 = vperm.xlu0 %797, %v470
      %v799 = vpop.permute.xlu0 %798
      %801 = vset.pattern.permute.xlu0 6
      %802 = vperm.xlu0 %801, %v471
      %v803 = vpop.permute.xlu0 %802
      %805 = vset.pattern.permute.xlu0 6
      %806 = vperm.xlu0 %805, %v472
      %v807 = vpop.permute.xlu0 %806
      %809 = vset.pattern.permute.xlu0 6
      %810 = vperm.xlu0 %809, %v473
      %v811 = vpop.permute.xlu0 %810
      %813 = vset.pattern.permute.xlu0 6
      %814 = vperm.xlu0 %813, %v474
      %v815 = vpop.permute.xlu0 %814
      %817 = vset.pattern.permute.xlu0 6
      %818 = vperm.xlu0 %817, %v475
      %v819 = vpop.permute.xlu0 %818
      %v821 = vlaneseq
      %v822 = vshrl.u32 %v821, 7
      %v823 = vsub.s32 6, %v822
      %v824 = vrot.slane %v476, %v823
      %v825 = vmul.f32 %v791, %v824
      %v826 = vmul.f32 %v795, %v824
      %v827 = vmul.f32 %v799, %v824
      %v828 = vmul.f32 %v803, %v824
      %v829 = vmul.f32 %v807, %v824
      %v830 = vmul.f32 %v811, %v824
      %v831 = vmul.f32 %v815, %v824
      %v832 = vmul.f32 %v819, %v824
      %v833 = vadd.f32 %v781, %v825
      %v834 = vadd.f32 %v782, %v826
      %v835 = vadd.f32 %v783, %v827
      %v836 = vadd.f32 %v784, %v828
      %v837 = vadd.f32 %v785, %v829
      %v838 = vadd.f32 %v786, %v830
      %v839 = vadd.f32 %v787, %v831
      %v840 = vadd.f32 %v788, %v832
      %841 = vset.pattern.permute.xlu0 7
      %842 = vperm.xlu0 %841, %v468
      %v843 = vpop.permute.xlu0 %842
      %845 = vset.pattern.permute.xlu0 7
      %846 = vperm.xlu0 %845, %v469
      %v847 = vpop.permute.xlu0 %846
      %849 = vset.pattern.permute.xlu0 7
      %850 = vperm.xlu0 %849, %v470
      %v851 = vpop.permute.xlu0 %850
      %853 = vset.pattern.permute.xlu0 7
      %854 = vperm.xlu0 %853, %v471
      %v855 = vpop.permute.xlu0 %854
      %857 = vset.pattern.permute.xlu0 7
      %858 = vperm.xlu0 %857, %v472
      %v859 = vpop.permute.xlu0 %858
      %861 = vset.pattern.permute.xlu0 7
      %862 = vperm.xlu0 %861, %v473
      %v863 = vpop.permute.xlu0 %862
      %865 = vset.pattern.permute.xlu0 7
      %866 = vperm.xlu0 %865, %v474
      %v867 = vpop.permute.xlu0 %866
      %869 = vset.pattern.permute.xlu0 7
      %870 = vperm.xlu0 %869, %v475
      %v871 = vpop.permute.xlu0 %870
      %v873 = vlaneseq
      %v874 = vshrl.u32 %v873, 7
      %v875 = vsub.s32 7, %v874
      %v876 = vrot.slane %v476, %v875
      %v877 = vmul.f32 %v843, %v876
      %v878 = vmul.f32 %v847, %v876
      %v879 = vmul.f32 %v851, %v876
      %v880 = vmul.f32 %v855, %v876
      %v881 = vmul.f32 %v859, %v876
      %v882 = vmul.f32 %v863, %v876
      %v883 = vmul.f32 %v867, %v876
      %v884 = vmul.f32 %v871, %v876
      %v885 = vadd.f32 %v833, %v877
      %v886 = vadd.f32 %v834, %v878
      %v887 = vadd.f32 %v835, %v879
      %v888 = vadd.f32 %v836, %v880
      %v889 = vadd.f32 %v837, %v881
      %v890 = vadd.f32 %v838, %v882
      %v891 = vadd.f32 %v839, %v883
      %v892 = vadd.f32 %v840, %v884
      %v893 = vld [vmem:[%s2] sm:$0x1]
      %v895 = vlaneseq
      %v896 = vshrl.u32 %v895, 7
      %v897 = vsub.s32 0, %v896
      %v898 = vrot.slane %v893, %v897
      %v900 = vmul.f32 %v885, %v898
      %v901 = vmul.f32 %v886, %v898
      %v902 = vmul.f32 %v887, %v898
      %v903 = vmul.f32 %v888, %v898
      %v904 = vmul.f32 %v889, %v898
      %v905 = vmul.f32 %v890, %v898
      %v906 = vmul.f32 %v891, %v898
      %v907 = vmul.f32 %v892, %v898
      %v908 = vld [vmem:[%s3] sm:$0x1]
      %v910 = vlaneseq
      %v911 = vshrl.u32 %v910, 7
      %v912 = vsub.s32 0, %v911
      %v913 = vrot.slane %v908, %v912
      %v915 = vadd.f32 %v900, %v913
      %v916 = vadd.f32 %v901, %v913
      %v917 = vadd.f32 %v902, %v913
      %v918 = vadd.f32 %v903, %v913
      %v919 = vadd.f32 %v904, %v913
      %v920 = vadd.f32 %v905, %v913
      %v921 = vadd.f32 %v906, %v913
      %v922 = vadd.f32 %v907, %v913
      %v923 = vadd.f32 %v915, 3.0
      %v924 = vadd.f32 %v916, 3.0
      %v925 = vadd.f32 %v917, 3.0
      %v926 = vadd.f32 %v918, 3.0
      %v927 = vadd.f32 %v919, 3.0
      %v928 = vadd.f32 %v920, 3.0
      %v929 = vadd.f32 %v921, 3.0
      %v930 = vadd.f32 %v922, 3.0
      %v931 = vmax.f32 %v923, 0.0
      %v932 = vmax.f32 %v924, 0.0
      %v933 = vmax.f32 %v925, 0.0
      %v934 = vmax.f32 %v926, 0.0
      %v935 = vmax.f32 %v927, 0.0
      %v936 = vmax.f32 %v928, 0.0
      %v937 = vmax.f32 %v929, 0.0
      %v938 = vmax.f32 %v930, 0.0
      %v939 = vmin.f32 %v931, 6.0
      %v940 = vmin.f32 %v932, 6.0
      %v941 = vmin.f32 %v933, 6.0
      %v942 = vmin.f32 %v934, 6.0
      %v943 = vmin.f32 %v935, 6.0
      %v944 = vmin.f32 %v936, 6.0
      %v945 = vmin.f32 %v937, 6.0
      %v946 = vmin.f32 %v938, 6.0
      %v947 = vmul.f32 %v915, %v939
      %v948 = vmul.f32 %v916, %v940
      %v949 = vmul.f32 %v917, %v941
      %v950 = vmul.f32 %v918, %v942
      %v951 = vmul.f32 %v919, %v943
      %v952 = vmul.f32 %v920, %v944
      %v953 = vmul.f32 %v921, %v945
      %v954 = vmul.f32 %v922, %v946
      %v955 = vmul.f32 %v947, 0.16666667
      %v956 = vmul.f32 %v948, 0.16666667
      %v957 = vmul.f32 %v949, 0.16666667
      %v958 = vmul.f32 %v950, 0.16666667
      %v959 = vmul.f32 %v951, 0.16666667
      %v960 = vmul.f32 %v952, 0.16666667
      %v961 = vmul.f32 %v953, 0.16666667
      %v962 = vmul.f32 %v954, 0.16666667
      %vm963 = vcmask 130048
      %964 = vst.msk [vmem:[#allocation2] sm:$0xff] %vm963, 0.0
      %965 = vst.msk [vmem:[#allocation2 + $0x8] sm:$0xff] %vm963, 0.0
      %966 = vst.msk [vmem:[#allocation2 + $0x10] sm:$0xff] %vm963, 0.0
      %967 = vst.msk [vmem:[#allocation2 + $0x18] sm:$0xff] %vm963, 0.0
      %968 = vst.msk [vmem:[#allocation2 + $0x20] sm:$0xff] %vm963, 0.0
      %969 = vst.msk [vmem:[#allocation2 + $0x28] sm:$0xff] %vm963, 0.0
      %970 = vst.msk [vmem:[#allocation2 + $0x30] sm:$0xff] %vm963, 0.0
      %971 = vst.msk [vmem:[#allocation2 + $0x38] sm:$0xff] %vm963, 0.0
      %972 = vst.msk [vmem:[#allocation2 + $0x40] sm:$0xff] %vm963, 0.0
      %973 = vst.msk [vmem:[#allocation2 + $0x48] sm:$0xff] %vm963, 0.0
      %974 = vst.msk [vmem:[#allocation2 + $0x50] sm:$0xff] %vm963, 0.0
      %975 = vst.msk [vmem:[#allocation2 + $0x58] sm:$0xff] %vm963, 0.0
      %976 = vst.msk [vmem:[#allocation2 + $0x60] sm:$0xff] %vm963, 0.0
      %977 = vst.msk [vmem:[#allocation2 + $0x68] sm:$0xff] %vm963, 0.0
      %978 = vst.msk [vmem:[#allocation2 + $0x70] sm:$0xff] %vm963, 0.0
      %979 = vst.msk [vmem:[#allocation2 + $0x78] sm:$0xff] %vm963, 0.0
      %980 = vst.msk [vmem:[#allocation2 + $0x80] sm:$0xff] %vm963, 0.0
      %981 = vst.msk [vmem:[#allocation2 + $0x88] sm:$0xff] %vm963, 0.0
      %982 = vst.msk [vmem:[#allocation2 + $0x90] sm:$0xff] %vm963, 0.0
      %983 = vst.msk [vmem:[#allocation2 + $0x98] sm:$0xff] %vm963, 0.0
      %984 = vst.msk [vmem:[#allocation2 + $0xa0] sm:$0xff] %vm963, 0.0
      %985 = vst.msk [vmem:[#allocation2 + $0xa8] sm:$0xff] %vm963, 0.0
      %986 = vst.msk [vmem:[#allocation2 + $0xb0] sm:$0xff] %vm963, 0.0
      %987 = vst.msk [vmem:[#allocation2 + $0xb8] sm:$0xff] %vm963, 0.0
      %988 = vst.msk [vmem:[#allocation2 + $0xc0] sm:$0xff] %vm963, 0.0
      %989 = vst.msk [vmem:[#allocation2 + $0xc8] sm:$0xff] %vm963, 0.0
      %990 = vst.msk [vmem:[#allocation2 + $0xd0] sm:$0xff] %vm963, 0.0
      %991 = vst.msk [vmem:[#allocation2 + $0xd8] sm:$0xff] %vm963, 0.0
      %992 = vst.msk [vmem:[#allocation2 + $0xe0] sm:$0xff] %vm963, 0.0
      %993 = vst.msk [vmem:[#allocation2 + $0xe8] sm:$0xff] %vm963, 0.0
      %s994 = scalar_lea.vmem [#allocation2], 24
      %995 = vst.msk [vmem:[%s994 + $0x8] sm:$0xff] %vm963, %v955
      %996 = vst.msk [vmem:[%s994 + $0x20] sm:$0xff] %vm963, %v956
      %997 = vst.msk [vmem:[%s994 + $0x38] sm:$0xff] %vm963, %v957
      %998 = vst.msk [vmem:[%s994 + $0x50] sm:$0xff] %vm963, %v958
      %999 = vst.msk [vmem:[%s994 + $0x68] sm:$0xff] %vm963, %v959
      %1000 = vst.msk [vmem:[%s994 + $0x80] sm:$0xff] %vm963, %v960
      %1001 = vst.msk [vmem:[%s994 + $0x98] sm:$0xff] %vm963, %v961
      %1002 = vst.msk [vmem:[%s994 + $0xb0] sm:$0xff] %vm963, %v962
      %v1003 = vld [vmem:[#allocation2 + $0x7] sm:$0xff]
      %v1004 = vld [vmem:[#allocation2 + $0x1f] sm:$0xff]
      %v1005 = vld [vmem:[#allocation2 + $0x37] sm:$0xff]
      %v1006 = vld [vmem:[#allocation2 + $0x4f] sm:$0xff]
      %v1007 = vld [vmem:[#allocation2 + $0x67] sm:$0xff]
      %v1008 = vld [vmem:[#allocation2 + $0x7f] sm:$0xff]
      %v1009 = vld [vmem:[#allocation2 + $0x97] sm:$0xff]
      %v1010 = vld [vmem:[#allocation2 + $0xaf] sm:$0xff]
      %v1011 = vld [vmem:[%s4] sm:$0x1]
      %v1012 = vlaneseq
      %v1013 = vshrl.u32 %v1012, 7
      %v1014 = vsub.s32 0, %v1013
      %v1015 = vrot.slane %v1011, %v1014
      %v1016 = vmul.f32 %v1003, %v1015
      %v1017 = vmul.f32 %v1004, %v1015
      %v1018 = vmul.f32 %v1005, %v1015
      %v1019 = vmul.f32 %v1006, %v1015
      %v1020 = vmul.f32 %v1007, %v1015
      %v1021 = vmul.f32 %v1008, %v1015
      %v1022 = vmul.f32 %v1009, %v1015
      %v1023 = vmul.f32 %v1010, %v1015
      %v1024 = vadd.f32 %v1016, 0.0
      %v1025 = vadd.f32 %v1017, 0.0
      %v1026 = vadd.f32 %v1018, 0.0
      %v1027 = vadd.f32 %v1019, 0.0
      %v1028 = vadd.f32 %v1020, 0.0
      %v1029 = vadd.f32 %v1021, 0.0
      %v1030 = vadd.f32 %v1022, 0.0
      %v1031 = vadd.f32 %v1023, 0.0
      %v1032 = vld [vmem:[#allocation2 + $0x8] sm:$0xff]
      %v1033 = vld [vmem:[#allocation2 + $0x20] sm:$0xff]
      %v1034 = vld [vmem:[#allocation2 + $0x38] sm:$0xff]
      %v1035 = vld [vmem:[#allocation2 + $0x50] sm:$0xff]
      %v1036 = vld [vmem:[#allocation2 + $0x68] sm:$0xff]
      %v1037 = vld [vmem:[#allocation2 + $0x80] sm:$0xff]
      %v1038 = vld [vmem:[#allocation2 + $0x98] sm:$0xff]
      %v1039 = vld [vmem:[#allocation2 + $0xb0] sm:$0xff]
      %v1040 = vld [vmem:[%s4 + $0x1] sm:$0x1]
      %v1041 = vlaneseq
      %v1042 = vshrl.u32 %v1041, 7
      %v1043 = vsub.s32 0, %v1042
      %v1044 = vrot.slane %v1040, %v1043
      %v1045 = vmul.f32 %v1032, %v1044
      %v1046 = vmul.f32 %v1033, %v1044
      %v1047 = vmul.f32 %v1034, %v1044
      %v1048 = vmul.f32 %v1035, %v1044
      %v1049 = vmul.f32 %v1036, %v1044
      %v1050 = vmul.f32 %v1037, %v1044
      %v1051 = vmul.f32 %v1038, %v1044
      %v1052 = vmul.f32 %v1039, %v1044
      %v1053 = vadd.f32 %v1024, %v1045
      %v1054 = vadd.f32 %v1025, %v1046
      %v1055 = vadd.f32 %v1026, %v1047
      %v1056 = vadd.f32 %v1027, %v1048
      %v1057 = vadd.f32 %v1028, %v1049
      %v1058 = vadd.f32 %v1029, %v1050
      %v1059 = vadd.f32 %v1030, %v1051
      %v1060 = vadd.f32 %v1031, %v1052
      %v1061 = vld [vmem:[#allocation2 + $0x9] sm:$0xff]
      %v1062 = vld [vmem:[#allocation2 + $0x21] sm:$0xff]
      %v1063 = vld [vmem:[#allocation2 + $0x39] sm:$0xff]
      %v1064 = vld [vmem:[#allocation2 + $0x51] sm:$0xff]
      %v1065 = vld [vmem:[#allocation2 + $0x69] sm:$0xff]
      %v1066 = vld [vmem:[#allocation2 + $0x81] sm:$0xff]
      %v1067 = vld [vmem:[#allocation2 + $0x99] sm:$0xff]
      %v1068 = vld [vmem:[#allocation2 + $0xb1] sm:$0xff]
      %v1069 = vld [vmem:[%s4 + $0x2] sm:$0x1]
      %v1070 = vlaneseq
      %v1071 = vshrl.u32 %v1070, 7
      %v1072 = vsub.s32 0, %v1071
      %v1073 = vrot.slane %v1069, %v1072
      %v1074 = vmul.f32 %v1061, %v1073
      %v1075 = vmul.f32 %v1062, %v1073
      %v1076 = vmul.f32 %v1063, %v1073
      %v1077 = vmul.f32 %v1064, %v1073
      %v1078 = vmul.f32 %v1065, %v1073
      %v1079 = vmul.f32 %v1066, %v1073
      %v1080 = vmul.f32 %v1067, %v1073
      %v1081 = vmul.f32 %v1068, %v1073
      %v1082 = vadd.f32 %v1053, %v1074
      %v1083 = vadd.f32 %v1054, %v1075
      %v1084 = vadd.f32 %v1055, %v1076
      %v1085 = vadd.f32 %v1056, %v1077
      %v1086 = vadd.f32 %v1057, %v1078
      %v1087 = vadd.f32 %v1058, %v1079
      %v1088 = vadd.f32 %v1059, %v1080
      %v1089 = vadd.f32 %v1060, %v1081
      %v1090 = vld [vmem:[%s994 + $0x7] sm:$0xff]
      %v1091 = vld [vmem:[%s994 + $0x1f] sm:$0xff]
      %v1092 = vld [vmem:[%s994 + $0x37] sm:$0xff]
      %v1093 = vld [vmem:[%s994 + $0x4f] sm:$0xff]
      %v1094 = vld [vmem:[%s994 + $0x67] sm:$0xff]
      %v1095 = vld [vmem:[%s994 + $0x7f] sm:$0xff]
      %v1096 = vld [vmem:[%s994 + $0x97] sm:$0xff]
      %v1097 = vld [vmem:[%s994 + $0xaf] sm:$0xff]
      %s1098 = scalar_lea.vmem %s4, 4
      %v1099 = vld [vmem:[%s1098] sm:$0x1]
      %v1100 = vlaneseq
      %v1101 = vshrl.u32 %v1100, 7
      %v1102 = vsub.s32 0, %v1101
      %v1103 = vrot.slane %v1099, %v1102
      %v1104 = vmul.f32 %v1090, %v1103
      %v1105 = vmul.f32 %v1091, %v1103
      %v1106 = vmul.f32 %v1092, %v1103
      %v1107 = vmul.f32 %v1093, %v1103
      %v1108 = vmul.f32 %v1094, %v1103
      %v1109 = vmul.f32 %v1095, %v1103
      %v1110 = vmul.f32 %v1096, %v1103
      %v1111 = vmul.f32 %v1097, %v1103
      %v1112 = vadd.f32 %v1082, %v1104
      %v1113 = vadd.f32 %v1083, %v1105
      %v1114 = vadd.f32 %v1084, %v1106
      %v1115 = vadd.f32 %v1085, %v1107
      %v1116 = vadd.f32 %v1086, %v1108
      %v1117 = vadd.f32 %v1087, %v1109
      %v1118 = vadd.f32 %v1088, %v1110
      %v1119 = vadd.f32 %v1089, %v1111
      %v1120 = vld [vmem:[%s994 + $0x8] sm:$0xff]
      %v1121 = vld [vmem:[%s994 + $0x20] sm:$0xff]
      %v1122 = vld [vmem:[%s994 + $0x38] sm:$0xff]
      %v1123 = vld [vmem:[%s994 + $0x50] sm:$0xff]
      %v1124 = vld [vmem:[%s994 + $0x68] sm:$0xff]
      %v1125 = vld [vmem:[%s994 + $0x80] sm:$0xff]
      %v1126 = vld [vmem:[%s994 + $0x98] sm:$0xff]
      %v1127 = vld [vmem:[%s994 + $0xb0] sm:$0xff]
      %v1128 = vld [vmem:[%s1098 + $0x1] sm:$0x1]
      %v1129 = vlaneseq
      %v1130 = vshrl.u32 %v1129, 7
      %v1131 = vsub.s32 0, %v1130
      %v1132 = vrot.slane %v1128, %v1131
      %v1133 = vmul.f32 %v1120, %v1132
      %v1134 = vmul.f32 %v1121, %v1132
      %v1135 = vmul.f32 %v1122, %v1132
      %v1136 = vmul.f32 %v1123, %v1132
      %v1137 = vmul.f32 %v1124, %v1132
      %v1138 = vmul.f32 %v1125, %v1132
      %v1139 = vmul.f32 %v1126, %v1132
      %v1140 = vmul.f32 %v1127, %v1132
      %v1141 = vadd.f32 %v1112, %v1133
      %v1142 = vadd.f32 %v1113, %v1134
      %v1143 = vadd.f32 %v1114, %v1135
      %v1144 = vadd.f32 %v1115, %v1136
      %v1145 = vadd.f32 %v1116, %v1137
      %v1146 = vadd.f32 %v1117, %v1138
      %v1147 = vadd.f32 %v1118, %v1139
      %v1148 = vadd.f32 %v1119, %v1140
      %v1149 = vld [vmem:[%s994 + $0x9] sm:$0xff]
      %v1150 = vld [vmem:[%s994 + $0x21] sm:$0xff]
      %v1151 = vld [vmem:[%s994 + $0x39] sm:$0xff]
      %v1152 = vld [vmem:[%s994 + $0x51] sm:$0xff]
      %v1153 = vld [vmem:[%s994 + $0x69] sm:$0xff]
      %v1154 = vld [vmem:[%s994 + $0x81] sm:$0xff]
      %v1155 = vld [vmem:[%s994 + $0x99] sm:$0xff]
      %v1156 = vld [vmem:[%s994 + $0xb1] sm:$0xff]
      %v1157 = vld [vmem:[%s1098 + $0x2] sm:$0x1]
      %v1158 = vlaneseq
      %v1159 = vshrl.u32 %v1158, 7
      %v1160 = vsub.s32 0, %v1159
      %v1161 = vrot.slane %v1157, %v1160
      %v1162 = vmul.f32 %v1149, %v1161
      %v1163 = vmul.f32 %v1150, %v1161
      %v1164 = vmul.f32 %v1151, %v1161
      %v1165 = vmul.f32 %v1152, %v1161
      %v1166 = vmul.f32 %v1153, %v1161
      %v1167 = vmul.f32 %v1154, %v1161
      %v1168 = vmul.f32 %v1155, %v1161
      %v1169 = vmul.f32 %v1156, %v1161
      %v1170 = vadd.f32 %v1141, %v1162
      %v1171 = vadd.f32 %v1142, %v1163
      %v1172 = vadd.f32 %v1143, %v1164
      %v1173 = vadd.f32 %v1144, %v1165
      %v1174 = vadd.f32 %v1145, %v1166
      %v1175 = vadd.f32 %v1146, %v1167
      %v1176 = vadd.f32 %v1147, %v1168
      %v1177 = vadd.f32 %v1148, %v1169
      %s1178 = scalar_lea.vmem [#allocation2], 48
      %v1179 = vld [vmem:[%s1178 + $0x7] sm:$0xff]
      %v1180 = vld [vmem:[%s1178 + $0x1f] sm:$0xff]
      %v1181 = vld [vmem:[%s1178 + $0x37] sm:$0xff]
      %v1182 = vld [vmem:[%s1178 + $0x4f] sm:$0xff]
      %v1183 = vld [vmem:[%s1178 + $0x67] sm:$0xff]
      %v1184 = vld [vmem:[%s1178 + $0x7f] sm:$0xff]
      %v1185 = vld [vmem:[%s1178 + $0x97] sm:$0xff]
      %v1186 = vld [vmem:[%s1178 + $0xaf] sm:$0xff]
      %s1187 = scalar_lea.vmem %s4, 8
      %v1188 = vld [vmem:[%s1187] sm:$0x1]
      %v1189 = vlaneseq
      %v1190 = vshrl.u32 %v1189, 7
      %v1191 = vsub.s32 0, %v1190
      %v1192 = vrot.slane %v1188, %v1191
      %v1193 = vmul.f32 %v1179, %v1192
      %v1194 = vmul.f32 %v1180, %v1192
      %v1195 = vmul.f32 %v1181, %v1192
      %v1196 = vmul.f32 %v1182, %v1192
      %v1197 = vmul.f32 %v1183, %v1192
      %v1198 = vmul.f32 %v1184, %v1192
      %v1199 = vmul.f32 %v1185, %v1192
      %v1200 = vmul.f32 %v1186, %v1192
      %v1201 = vadd.f32 %v1170, %v1193
      %v1202 = vadd.f32 %v1171, %v1194
      %v1203 = vadd.f32 %v1172, %v1195
      %v1204 = vadd.f32 %v1173, %v1196
      %v1205 = vadd.f32 %v1174, %v1197
      %v1206 = vadd.f32 %v1175, %v1198
      %v1207 = vadd.f32 %v1176, %v1199
      %v1208 = vadd.f32 %v1177, %v1200
      %v1209 = vld [vmem:[%s1178 + $0x8] sm:$0xff]
      %v1210 = vld [vmem:[%s1178 + $0x20] sm:$0xff]
      %v1211 = vld [vmem:[%s1178 + $0x38] sm:$0xff]
      %v1212 = vld [vmem:[%s1178 + $0x50] sm:$0xff]
      %v1213 = vld [vmem:[%s1178 + $0x68] sm:$0xff]
      %v1214 = vld [vmem:[%s1178 + $0x80] sm:$0xff]
      %v1215 = vld [vmem:[%s1178 + $0x98] sm:$0xff]
      %v1216 = vld [vmem:[%s1178 + $0xb0] sm:$0xff]
      %v1217 = vld [vmem:[%s1187 + $0x1] sm:$0x1]
      %v1218 = vlaneseq
      %v1219 = vshrl.u32 %v1218, 7
      %v1220 = vsub.s32 0, %v1219
      %v1221 = vrot.slane %v1217, %v1220
      %v1222 = vmul.f32 %v1209, %v1221
      %v1223 = vmul.f32 %v1210, %v1221
      %v1224 = vmul.f32 %v1211, %v1221
      %v1225 = vmul.f32 %v1212, %v1221
      %v1226 = vmul.f32 %v1213, %v1221
      %v1227 = vmul.f32 %v1214, %v1221
      %v1228 = vmul.f32 %v1215, %v1221
      %v1229 = vmul.f32 %v1216, %v1221
      %v1230 = vadd.f32 %v1201, %v1222
      %v1231 = vadd.f32 %v1202, %v1223
      %v1232 = vadd.f32 %v1203, %v1224
      %v1233 = vadd.f32 %v1204, %v1225
      %v1234 = vadd.f32 %v1205, %v1226
      %v1235 = vadd.f32 %v1206, %v1227
      %v1236 = vadd.f32 %v1207, %v1228
      %v1237 = vadd.f32 %v1208, %v1229
      %v1238 = vld [vmem:[%s1178 + $0x9] sm:$0xff]
      %v1239 = vld [vmem:[%s1178 + $0x21] sm:$0xff]
      %v1240 = vld [vmem:[%s1178 + $0x39] sm:$0xff]
      %v1241 = vld [vmem:[%s1178 + $0x51] sm:$0xff]
      %v1242 = vld [vmem:[%s1178 + $0x69] sm:$0xff]
      %v1243 = vld [vmem:[%s1178 + $0x81] sm:$0xff]
      %v1244 = vld [vmem:[%s1178 + $0x99] sm:$0xff]
      %v1245 = vld [vmem:[%s1178 + $0xb1] sm:$0xff]
      %v1246 = vld [vmem:[%s1187 + $0x2] sm:$0x1]
      %v1247 = vlaneseq
      %v1248 = vshrl.u32 %v1247, 7
      %v1249 = vsub.s32 0, %v1248
      %v1250 = vrot.slane %v1246, %v1249
      %v1251 = vmul.f32 %v1238, %v1250
      %v1252 = vmul.f32 %v1239, %v1250
      %v1253 = vmul.f32 %v1240, %v1250
      %v1254 = vmul.f32 %v1241, %v1250
      %v1255 = vmul.f32 %v1242, %v1250
      %v1256 = vmul.f32 %v1243, %v1250
      %v1257 = vmul.f32 %v1244, %v1250
      %v1258 = vmul.f32 %v1245, %v1250
      %v1259 = vadd.f32 %v1230, %v1251
      %v1260 = vadd.f32 %v1231, %v1252
      %v1261 = vadd.f32 %v1232, %v1253
      %v1262 = vadd.f32 %v1233, %v1254
      %v1263 = vadd.f32 %v1234, %v1255
      %v1264 = vadd.f32 %v1235, %v1256
      %v1265 = vadd.f32 %v1236, %v1257
      %v1266 = vadd.f32 %v1237, %v1258
      %v1267 = vld [vmem:[%s5] sm:$0x1]
      %v1269 = vlaneseq
      %v1270 = vshrl.u32 %v1269, 7
      %v1271 = vsub.s32 0, %v1270
      %v1272 = vrot.slane %v1267, %v1271
      %v1274 = vmul.f32 %v1259, %v1272
      %v1275 = vmul.f32 %v1260, %v1272
      %v1276 = vmul.f32 %v1261, %v1272
      %v1277 = vmul.f32 %v1262, %v1272
      %v1278 = vmul.f32 %v1263, %v1272
      %v1279 = vmul.f32 %v1264, %v1272
      %v1280 = vmul.f32 %v1265, %v1272
      %v1281 = vmul.f32 %v1266, %v1272
      %v1282 = vld [vmem:[%s6] sm:$0x1]
      %v1284 = vlaneseq
      %v1285 = vshrl.u32 %v1284, 7
      %v1286 = vsub.s32 0, %v1285
      %v1287 = vrot.slane %v1282, %v1286
      %v1289 = vadd.f32 %v1274, %v1287
      %v1290 = vadd.f32 %v1275, %v1287
      %v1291 = vadd.f32 %v1276, %v1287
      %v1292 = vadd.f32 %v1277, %v1287
      %v1293 = vadd.f32 %v1278, %v1287
      %v1294 = vadd.f32 %v1279, %v1287
      %v1295 = vadd.f32 %v1280, %v1287
      %v1296 = vadd.f32 %v1281, %v1287
      %v1297 = vadd.f32 %v1289, 3.0
      %v1298 = vadd.f32 %v1290, 3.0
      %v1299 = vadd.f32 %v1291, 3.0
      %v1300 = vadd.f32 %v1292, 3.0
      %v1301 = vadd.f32 %v1293, 3.0
      %v1302 = vadd.f32 %v1294, 3.0
      %v1303 = vadd.f32 %v1295, 3.0
      %v1304 = vadd.f32 %v1296, 3.0
      %v1305 = vmax.f32 %v1297, 0.0
      %v1306 = vmax.f32 %v1298, 0.0
      %v1307 = vmax.f32 %v1299, 0.0
      %v1308 = vmax.f32 %v1300, 0.0
      %v1309 = vmax.f32 %v1301, 0.0
      %v1310 = vmax.f32 %v1302, 0.0
      %v1311 = vmax.f32 %v1303, 0.0
      %v1312 = vmax.f32 %v1304, 0.0
      %v1313 = vmin.f32 %v1305, 6.0
      %v1314 = vmin.f32 %v1306, 6.0
      %v1315 = vmin.f32 %v1307, 6.0
      %v1316 = vmin.f32 %v1308, 6.0
      %v1317 = vmin.f32 %v1309, 6.0
      %v1318 = vmin.f32 %v1310, 6.0
      %v1319 = vmin.f32 %v1311, 6.0
      %v1320 = vmin.f32 %v1312, 6.0
      %v1321 = vmul.f32 %v1289, %v1313
      %v1322 = vmul.f32 %v1290, %v1314
      %v1323 = vmul.f32 %v1291, %v1315
      %v1324 = vmul.f32 %v1292, %v1316
      %v1325 = vmul.f32 %v1293, %v1317
      %v1326 = vmul.f32 %v1294, %v1318
      %v1327 = vmul.f32 %v1295, %v1319
      %v1328 = vmul.f32 %v1296, %v1320
      %v1329 = vmul.f32 %v1321, 0.16666667
      %v1330 = vmul.f32 %v1322, 0.16666667
      %v1331 = vmul.f32 %v1323, 0.16666667
      %v1332 = vmul.f32 %v1324, 0.16666667
      %v1333 = vmul.f32 %v1325, 0.16666667
      %v1334 = vmul.f32 %v1326, 0.16666667
      %v1335 = vmul.f32 %v1327, 0.16666667
      %v1336 = vmul.f32 %v1328, 0.16666667
      %v1337 = vsel %vm963, %v1329, 0.0
      %v1338 = vsel %vm963, %v1330, 0.0
      %v1339 = vadd.f32 %v1337, %v1338
      %v1340 = vsel %vm963, %v1331, 0.0
      %v1341 = vadd.f32 %v1339, %v1340
      %v1342 = vsel %vm963, %v1332, 0.0
      %v1343 = vadd.f32 %v1341, %v1342
      %v1344 = vsel %vm963, %v1333, 0.0
      %v1345 = vadd.f32 %v1343, %v1344
      %v1346 = vsel %vm963, %v1334, 0.0
      %v1347 = vadd.f32 %v1345, %v1346
      %v1348 = vsel %vm963, %v1335, 0.0
      %v1349 = vadd.f32 %v1347, %v1348
      %v1350 = vsel %vm963, %v1336, 0.0
      %v1351 = vadd.f32 %v1349, %v1350
      %v1352 = vrot.slane %v1351, 4
      %v1353 = vadd.f32 %v1351, %v1352
      %v1354 = vrot.slane %v1353, 2
      %v1355 = vadd.f32 %v1353, %v1354
      %v1356 = vrot.slane %v1355, 1
      %v1357 = vadd.f32 %v1355, %v1356
      %v1358 = vrcp.pop 64.0
      %v1359 = vmul.f32 %v1357, %v1358
      %v1360 = vld [vmem:[%s7] sm:$0xf]
      %v1361 = vmul.f32 %v1360, %v1359
      %vm1362 = vcmask 125952
      %v1363 = vsel %vm1362, %v1361, 0.0
      %1364 = vadd.xlane.f32.xlu0 %v1363
      %v1365 = vpop.xlane.xlu0 %1364
      %v1366 = vld [vmem:[%s8] sm:$0xf]
      %v1367 = vadd.f32 %v1365, %v1366
      %v1368 = vmax.f32 %v1367, 0.0
      %v1369 = vld [vmem:[%s9] sm:$0xf]
      %1371 = vset.pattern.permute.xlu0 0
      %1372 = vperm.xlu0 %1371, %v1368
      %v1373 = vpop.permute.xlu0 %1372
      %v1375 = vmul.f32 %v1369, %v1373
      %v1376 = vsel %vm1362, %v1375, 0.0
      %v1377 = vrot.slane %v1376, 4
      %v1378 = vadd.f32 %v1376, %v1377
      %v1379 = vrot.slane %v1378, 2
      %v1380 = vadd.f32 %v1378, %v1379
      %v1381 = vrot.slane %v1380, 1
      %v1382 = vadd.f32 %v1380, %v1381
      %v1383 = vld [vmem:[%s10] sm:$0x1]
      %v1384 = vadd.f32 %v1382, %v1383
      %v1385 = vadd.f32 %v1384, 3.0
      %v1386 = vmax.f32 %v1385, 0.0
      %v1387 = vmin.f32 %v1386, 6.0
      %v1388 = vmul.f32 %v1387, 0.16666667
      %v1389 = vlaneseq
      %v1390 = vshrl.u32 %v1389, 7
      %v1391 = vsub.s32 0, %v1390
      %v1392 = vrot.slane %v1388, %v1391
      %v1393 = vmul.f32 %v1329, %v1392
      %v1394 = vmul.f32 %v1330, %v1392
      %v1395 = vmul.f32 %v1331, %v1392
      %v1396 = vmul.f32 %v1332, %v1392
      %v1397 = vmul.f32 %v1333, %v1392
      %v1398 = vmul.f32 %v1334, %v1392
      %v1399 = vmul.f32 %v1335, %v1392
      %v1400 = vmul.f32 %v1336, %v1392
      %v1401 = vld [vmem:[%s11] sm:$0xff]
      %v1402 = vld [vmem:[%s11 + $0x8] sm:$0xff]
      %1404 = vset.pattern.permute.xlu0 0
      %1405 = vperm.xlu0 %1404, %v1393
      %v1406 = vpop.permute.xlu0 %1405
      %1409 = vset.pattern.permute.xlu0 0
      %1410 = vperm.xlu0 %1409, %v1394
      %v1411 = vpop.permute.xlu0 %1410
      %1414 = vset.pattern.permute.xlu0 0
      %1415 = vperm.xlu0 %1414, %v1395
      %v1416 = vpop.permute.xlu0 %1415
      %1419 = vset.pattern.permute.xlu0 0
      %1420 = vperm.xlu0 %1419, %v1396
      %v1421 = vpop.permute.xlu0 %1420
      %1424 = vset.pattern.permute.xlu0 0
      %1425 = vperm.xlu0 %1424, %v1397
      %v1426 = vpop.permute.xlu0 %1425
      %1429 = vset.pattern.permute.xlu0 0
      %1430 = vperm.xlu0 %1429, %v1398
      %v1431 = vpop.permute.xlu0 %1430
      %1434 = vset.pattern.permute.xlu0 0
      %1435 = vperm.xlu0 %1434, %v1399
      %v1436 = vpop.permute.xlu0 %1435
      %1439 = vset.pattern.permute.xlu0 0
      %1440 = vperm.xlu0 %1439, %v1400
      %v1441 = vpop.permute.xlu0 %1440
      %v1443 = vlaneseq
      %v1444 = vshrl.u32 %v1443, 7
      %v1445 = vsub.s32 0, %v1444
      %v1446 = vrot.slane %v1401, %v1445
      %v1447 = vmul.f32 %v1406, %v1446
      %v1448 = vmul.f32 %v1411, %v1446
      %v1449 = vmul.f32 %v1416, %v1446
      %v1450 = vmul.f32 %v1421, %v1446
      %v1451 = vmul.f32 %v1426, %v1446
      %v1452 = vmul.f32 %v1431, %v1446
      %v1453 = vmul.f32 %v1436, %v1446
      %v1454 = vmul.f32 %v1441, %v1446
      %1455 = vset.pattern.permute.xlu0 1
      %1456 = vperm.xlu0 %1455, %v1393
      %v1457 = vpop.permute.xlu0 %1456
      %1459 = vset.pattern.permute.xlu0 1
      %1460 = vperm.xlu0 %1459, %v1394
      %v1461 = vpop.permute.xlu0 %1460
      %1463 = vset.pattern.permute.xlu0 1
      %1464 = vperm.xlu0 %1463, %v1395
      %v1465 = vpop.permute.xlu0 %1464
      %1467 = vset.pattern.permute.xlu0 1
      %1468 = vperm.xlu0 %1467, %v1396
      %v1469 = vpop.permute.xlu0 %1468
      %1471 = vset.pattern.permute.xlu0 1
      %1472 = vperm.xlu0 %1471, %v1397
      %v1473 = vpop.permute.xlu0 %1472
      %1475 = vset.pattern.permute.xlu0 1
      %1476 = vperm.xlu0 %1475, %v1398
      %v1477 = vpop.permute.xlu0 %1476
      %1479 = vset.pattern.permute.xlu0 1
      %1480 = vperm.xlu0 %1479, %v1399
      %v1481 = vpop.permute.xlu0 %1480
      %1483 = vset.pattern.permute.xlu0 1
      %1484 = vperm.xlu0 %1483, %v1400
      %v1485 = vpop.permute.xlu0 %1484
      %v1487 = vlaneseq
      %v1488 = vshrl.u32 %v1487, 7
      %v1489 = vsub.s32 1, %v1488
      %v1490 = vrot.slane %v1401, %v1489
      %v1491 = vmul.f32 %v1457, %v1490
      %v1492 = vmul.f32 %v1461, %v1490
      %v1493 = vmul.f32 %v1465, %v1490
      %v1494 = vmul.f32 %v1469, %v1490
      %v1495 = vmul.f32 %v1473, %v1490
      %v1496 = vmul.f32 %v1477, %v1490
      %v1497 = vmul.f32 %v1481, %v1490
      %v1498 = vmul.f32 %v1485, %v1490
      %v1499 = vadd.f32 %v1447, %v1491
      %v1500 = vadd.f32 %v1448, %v1492
      %v1501 = vadd.f32 %v1449, %v1493
      %v1502 = vadd.f32 %v1450, %v1494
      %v1503 = vadd.f32 %v1451, %v1495
      %v1504 = vadd.f32 %v1452, %v1496
      %v1505 = vadd.f32 %v1453, %v1497
      %v1506 = vadd.f32 %v1454, %v1498
      %1507 = vset.pattern.permute.xlu0 2
      %1508 = vperm.xlu0 %1507, %v1393
      %v1509 = vpop.permute.xlu0 %1508
      %1511 = vset.pattern.permute.xlu0 2
      %1512 = vperm.xlu0 %1511, %v1394
      %v1513 = vpop.permute.xlu0 %1512
      %1515 = vset.pattern.permute.xlu0 2
      %1516 = vperm.xlu0 %1515, %v1395
      %v1517 = vpop.permute.xlu0 %1516
      %1519 = vset.pattern.permute.xlu0 2
      %1520 = vperm.xlu0 %1519, %v1396
      %v1521 = vpop.permute.xlu0 %1520
      %1523 = vset.pattern.permute.xlu0 2
      %1524 = vperm.xlu0 %1523, %v1397
      %v1525 = vpop.permute.xlu0 %1524
      %1527 = vset.pattern.permute.xlu0 2
      %1528 = vperm.xlu0 %1527, %v1398
      %v1529 = vpop.permute.xlu0 %1528
      %1531 = vset.pattern.permute.xlu0 2
      %1532 = vperm.xlu0 %1531, %v1399
      %v1533 = vpop.permute.xlu0 %1532
      %1535 = vset.pattern.permute.xlu0 2
      %1536 = vperm.xlu0 %1535, %v1400
      %v1537 = vpop.permute.xlu0 %1536
      %v1539 = vlaneseq
      %v1540 = vshrl.u32 %v1539, 7
      %v1541 = vsub.s32 2, %v1540
      %v1542 = vrot.slane %v1401, %v1541
      %v1543 = vmul.f32 %v1509, %v1542
      %v1544 = vmul.f32 %v1513, %v1542
      %v1545 = vmul.f32 %v1517, %v1542
      %v1546 = vmul.f32 %v1521, %v1542
      %v1547 = vmul.f32 %v1525, %v1542
      %v1548 = vmul.f32 %v1529, %v1542
      %v1549 = vmul.f32 %v1533, %v1542
      %v1550 = vmul.f32 %v1537, %v1542
      %v1551 = vadd.f32 %v1499, %v1543
      %v1552 = vadd.f32 %v1500, %v1544
      %v1553 = vadd.f32 %v1501, %v1545
      %v1554 = vadd.f32 %v1502, %v1546
      %v1555 = vadd.f32 %v1503, %v1547
      %v1556 = vadd.f32 %v1504, %v1548
      %v1557 = vadd.f32 %v1505, %v1549
      %v1558 = vadd.f32 %v1506, %v1550
      %1559 = vset.pattern.permute.xlu0 3
      %1560 = vperm.xlu0 %1559, %v1393
      %v1561 = vpop.permute.xlu0 %1560
      %1563 = vset.pattern.permute.xlu0 3
      %1564 = vperm.xlu0 %1563, %v1394
      %v1565 = vpop.permute.xlu0 %1564
      %1567 = vset.pattern.permute.xlu0 3
      %1568 = vperm.xlu0 %1567, %v1395
      %v1569 = vpop.permute.xlu0 %1568
      %1571 = vset.pattern.permute.xlu0 3
      %1572 = vperm.xlu0 %1571, %v1396
      %v1573 = vpop.permute.xlu0 %1572
      %1575 = vset.pattern.permute.xlu0 3
      %1576 = vperm.xlu0 %1575, %v1397
      %v1577 = vpop.permute.xlu0 %1576
      %1579 = vset.pattern.permute.xlu0 3
      %1580 = vperm.xlu0 %1579, %v1398
      %v1581 = vpop.permute.xlu0 %1580
      %1583 = vset.pattern.permute.xlu0 3
      %1584 = vperm.xlu0 %1583, %v1399
      %v1585 = vpop.permute.xlu0 %1584
      %1587 = vset.pattern.permute.xlu0 3
      %1588 = vperm.xlu0 %1587, %v1400
      %v1589 = vpop.permute.xlu0 %1588
      %v1591 = vlaneseq
      %v1592 = vshrl.u32 %v1591, 7
      %v1593 = vsub.s32 3, %v1592
      %v1594 = vrot.slane %v1401, %v1593
      %v1595 = vmul.f32 %v1561, %v1594
      %v1596 = vmul.f32 %v1565, %v1594
      %v1597 = vmul.f32 %v1569, %v1594
      %v1598 = vmul.f32 %v1573, %v1594
      %v1599 = vmul.f32 %v1577, %v1594
      %v1600 = vmul.f32 %v1581, %v1594
      %v1601 = vmul.f32 %v1585, %v1594
      %v1602 = vmul.f32 %v1589, %v1594
      %v1603 = vadd.f32 %v1551, %v1595
      %v1604 = vadd.f32 %v1552, %v1596
      %v1605 = vadd.f32 %v1553, %v1597
      %v1606 = vadd.f32 %v1554, %v1598
      %v1607 = vadd.f32 %v1555, %v1599
      %v1608 = vadd.f32 %v1556, %v1600
      %v1609 = vadd.f32 %v1557, %v1601
      %v1610 = vadd.f32 %v1558, %v1602
      %1611 = vset.pattern.permute.xlu0 4
      %1612 = vperm.xlu0 %1611, %v1393
      %v1613 = vpop.permute.xlu0 %1612
      %1615 = vset.pattern.permute.xlu0 4
      %1616 = vperm.xlu0 %1615, %v1394
      %v1617 = vpop.permute.xlu0 %1616
      %1619 = vset.pattern.permute.xlu0 4
      %1620 = vperm.xlu0 %1619, %v1395
      %v1621 = vpop.permute.xlu0 %1620
      %1623 = vset.pattern.permute.xlu0 4
      %1624 = vperm.xlu0 %1623, %v1396
      %v1625 = vpop.permute.xlu0 %1624
      %1627 = vset.pattern.permute.xlu0 4
      %1628 = vperm.xlu0 %1627, %v1397
      %v1629 = vpop.permute.xlu0 %1628
      %1631 = vset.pattern.permute.xlu0 4
      %1632 = vperm.xlu0 %1631, %v1398
      %v1633 = vpop.permute.xlu0 %1632
      %1635 = vset.pattern.permute.xlu0 4
      %1636 = vperm.xlu0 %1635, %v1399
      %v1637 = vpop.permute.xlu0 %1636
      %1639 = vset.pattern.permute.xlu0 4
      %1640 = vperm.xlu0 %1639, %v1400
      %v1641 = vpop.permute.xlu0 %1640
      %v1643 = vlaneseq
      %v1644 = vshrl.u32 %v1643, 7
      %v1645 = vsub.s32 4, %v1644
      %v1646 = vrot.slane %v1401, %v1645
      %v1647 = vmul.f32 %v1613, %v1646
      %v1648 = vmul.f32 %v1617, %v1646
      %v1649 = vmul.f32 %v1621, %v1646
      %v1650 = vmul.f32 %v1625, %v1646
      %v1651 = vmul.f32 %v1629, %v1646
      %v1652 = vmul.f32 %v1633, %v1646
      %v1653 = vmul.f32 %v1637, %v1646
      %v1654 = vmul.f32 %v1641, %v1646
      %v1655 = vadd.f32 %v1603, %v1647
      %v1656 = vadd.f32 %v1604, %v1648
      %v1657 = vadd.f32 %v1605, %v1649
      %v1658 = vadd.f32 %v1606, %v1650
      %v1659 = vadd.f32 %v1607, %v1651
      %v1660 = vadd.f32 %v1608, %v1652
      %v1661 = vadd.f32 %v1609, %v1653
      %v1662 = vadd.f32 %v1610, %v1654
      %1663 = vset.pattern.permute.xlu0 5
      %1664 = vperm.xlu0 %1663, %v1393
      %v1665 = vpop.permute.xlu0 %1664
      %1667 = vset.pattern.permute.xlu0 5
      %1668 = vperm.xlu0 %1667, %v1394
      %v1669 = vpop.permute.xlu0 %1668
      %1671 = vset.pattern.permute.xlu0 5
      %1672 = vperm.xlu0 %1671, %v1395
      %v1673 = vpop.permute.xlu0 %1672
      %1675 = vset.pattern.permute.xlu0 5
      %1676 = vperm.xlu0 %1675, %v1396
      %v1677 = vpop.permute.xlu0 %1676
      %1679 = vset.pattern.permute.xlu0 5
      %1680 = vperm.xlu0 %1679, %v1397
      %v1681 = vpop.permute.xlu0 %1680
      %1683 = vset.pattern.permute.xlu0 5
      %1684 = vperm.xlu0 %1683, %v1398
      %v1685 = vpop.permute.xlu0 %1684
      %1687 = vset.pattern.permute.xlu0 5
      %1688 = vperm.xlu0 %1687, %v1399
      %v1689 = vpop.permute.xlu0 %1688
      %1691 = vset.pattern.permute.xlu0 5
      %1692 = vperm.xlu0 %1691, %v1400
      %v1693 = vpop.permute.xlu0 %1692
      %v1695 = vlaneseq
      %v1696 = vshrl.u32 %v1695, 7
      %v1697 = vsub.s32 5, %v1696
      %v1698 = vrot.slane %v1401, %v1697
      %v1699 = vmul.f32 %v1665, %v1698
      %v1700 = vmul.f32 %v1669, %v1698
      %v1701 = vmul.f32 %v1673, %v1698
      %v1702 = vmul.f32 %v1677, %v1698
      %v1703 = vmul.f32 %v1681, %v1698
      %v1704 = vmul.f32 %v1685, %v1698
      %v1705 = vmul.f32 %v1689, %v1698
      %v1706 = vmul.f32 %v1693, %v1698
      %v1707 = vadd.f32 %v1655, %v1699
      %v1708 = vadd.f32 %v1656, %v1700
      %v1709 = vadd.f32 %v1657, %v1701
      %v1710 = vadd.f32 %v1658, %v1702
      %v1711 = vadd.f32 %v1659, %v1703
      %v1712 = vadd.f32 %v1660, %v1704
      %v1713 = vadd.f32 %v1661, %v1705
      %v1714 = vadd.f32 %v1662, %v1706
      %1715 = vset.pattern.permute.xlu0 6
      %1716 = vperm.xlu0 %1715, %v1393
      %v1717 = vpop.permute.xlu0 %1716
      %1719 = vset.pattern.permute.xlu0 6
      %1720 = vperm.xlu0 %1719, %v1394
      %v1721 = vpop.permute.xlu0 %1720
      %1723 = vset.pattern.permute.xlu0 6
      %1724 = vperm.xlu0 %1723, %v1395
      %v1725 = vpop.permute.xlu0 %1724
      %1727 = vset.pattern.permute.xlu0 6
      %1728 = vperm.xlu0 %1727, %v1396
      %v1729 = vpop.permute.xlu0 %1728
      %1731 = vset.pattern.permute.xlu0 6
      %1732 = vperm.xlu0 %1731, %v1397
      %v1733 = vpop.permute.xlu0 %1732
      %1735 = vset.pattern.permute.xlu0 6
      %1736 = vperm.xlu0 %1735, %v1398
      %v1737 = vpop.permute.xlu0 %1736
      %1739 = vset.pattern.permute.xlu0 6
      %1740 = vperm.xlu0 %1739, %v1399
      %v1741 = vpop.permute.xlu0 %1740
      %1743 = vset.pattern.permute.xlu0 6
      %1744 = vperm.xlu0 %1743, %v1400
      %v1745 = vpop.permute.xlu0 %1744
      %v1747 = vlaneseq
      %v1748 = vshrl.u32 %v1747, 7
      %v1749 = vsub.s32 6, %v1748
      %v1750 = vrot.slane %v1401, %v1749
      %v1751 = vmul.f32 %v1717, %v1750
      %v1752 = vmul.f32 %v1721, %v1750
      %v1753 = vmul.f32 %v1725, %v1750
      %v1754 = vmul.f32 %v1729, %v1750
      %v1755 = vmul.f32 %v1733, %v1750
      %v1756 = vmul.f32 %v1737, %v1750
      %v1757 = vmul.f32 %v1741, %v1750
      %v1758 = vmul.f32 %v1745, %v1750
      %v1759 = vadd.f32 %v1707, %v1751
      %v1760 = vadd.f32 %v1708, %v1752
      %v1761 = vadd.f32 %v1709, %v1753
      %v1762 = vadd.f32 %v1710, %v1754
      %v1763 = vadd.f32 %v1711, %v1755
      %v1764 = vadd.f32 %v1712, %v1756
      %v1765 = vadd.f32 %v1713, %v1757
      %v1766 = vadd.f32 %v1714, %v1758
      %1767 = vset.pattern.permute.xlu0 7
      %1768 = vperm.xlu0 %1767, %v1393
      %v1769 = vpop.permute.xlu0 %1768
      %1771 = vset.pattern.permute.xlu0 7
      %1772 = vperm.xlu0 %1771, %v1394
      %v1773 = vpop.permute.xlu0 %1772
      %1775 = vset.pattern.permute.xlu0 7
      %1776 = vperm.xlu0 %1775, %v1395
      %v1777 = vpop.permute.xlu0 %1776
      %1779 = vset.pattern.permute.xlu0 7
      %1780 = vperm.xlu0 %1779, %v1396
      %v1781 = vpop.permute.xlu0 %1780
      %1783 = vset.pattern.permute.xlu0 7
      %1784 = vperm.xlu0 %1783, %v1397
      %v1785 = vpop.permute.xlu0 %1784
      %1787 = vset.pattern.permute.xlu0 7
      %1788 = vperm.xlu0 %1787, %v1398
      %v1789 = vpop.permute.xlu0 %1788
      %1791 = vset.pattern.permute.xlu0 7
      %1792 = vperm.xlu0 %1791, %v1399
      %v1793 = vpop.permute.xlu0 %1792
      %1795 = vset.pattern.permute.xlu0 7
      %1796 = vperm.xlu0 %1795, %v1400
      %v1797 = vpop.permute.xlu0 %1796
      %v1799 = vlaneseq
      %v1800 = vshrl.u32 %v1799, 7
      %v1801 = vsub.s32 7, %v1800
      %v1802 = vrot.slane %v1401, %v1801
      %v1803 = vmul.f32 %v1769, %v1802
      %v1804 = vmul.f32 %v1773, %v1802
      %v1805 = vmul.f32 %v1777, %v1802
      %v1806 = vmul.f32 %v1781, %v1802
      %v1807 = vmul.f32 %v1785, %v1802
      %v1808 = vmul.f32 %v1789, %v1802
      %v1809 = vmul.f32 %v1793, %v1802
      %v1810 = vmul.f32 %v1797, %v1802
      %v1811 = vadd.f32 %v1759, %v1803
      %v1812 = vadd.f32 %v1760, %v1804
      %v1813 = vadd.f32 %v1761, %v1805
      %v1814 = vadd.f32 %v1762, %v1806
      %v1815 = vadd.f32 %v1763, %v1807
      %v1816 = vadd.f32 %v1764, %v1808
      %v1817 = vadd.f32 %v1765, %v1809
      %v1818 = vadd.f32 %v1766, %v1810
      %1819 = vset.pattern.permute.xlu0 8
      %1820 = vperm.xlu0 %1819, %v1393
      %v1821 = vpop.permute.xlu0 %1820
      %1823 = vset.pattern.permute.xlu0 8
      %1824 = vperm.xlu0 %1823, %v1394
      %v1825 = vpop.permute.xlu0 %1824
      %1827 = vset.pattern.permute.xlu0 8
      %1828 = vperm.xlu0 %1827, %v1395
      %v1829 = vpop.permute.xlu0 %1828
      %1831 = vset.pattern.permute.xlu0 8
      %1832 = vperm.xlu0 %1831, %v1396
      %v1833 = vpop.permute.xlu0 %1832
      %1835 = vset.pattern.permute.xlu0 8
      %1836 = vperm.xlu0 %1835, %v1397
      %v1837 = vpop.permute.xlu0 %1836
      %1839 = vset.pattern.permute.xlu0 8
      %1840 = vperm.xlu0 %1839, %v1398
      %v1841 = vpop.permute.xlu0 %1840
      %1843 = vset.pattern.permute.xlu0 8
      %1844 = vperm.xlu0 %1843, %v1399
      %v1845 = vpop.permute.xlu0 %1844
      %1847 = vset.pattern.permute.xlu0 8
      %1848 = vperm.xlu0 %1847, %v1400
      %v1849 = vpop.permute.xlu0 %1848
      %v1851 = vlaneseq
      %v1852 = vshrl.u32 %v1851, 7
      %v1853 = vsub.s32 0, %v1852
      %v1854 = vrot.slane %v1402, %v1853
      %v1855 = vmul.f32 %v1821, %v1854
      %v1856 = vmul.f32 %v1825, %v1854
      %v1857 = vmul.f32 %v1829, %v1854
      %v1858 = vmul.f32 %v1833, %v1854
      %v1859 = vmul.f32 %v1837, %v1854
      %v1860 = vmul.f32 %v1841, %v1854
      %v1861 = vmul.f32 %v1845, %v1854
      %v1862 = vmul.f32 %v1849, %v1854
      %v1863 = vadd.f32 %v1811, %v1855
      %v1864 = vadd.f32 %v1812, %v1856
      %v1865 = vadd.f32 %v1813, %v1857
      %v1866 = vadd.f32 %v1814, %v1858
      %v1867 = vadd.f32 %v1815, %v1859
      %v1868 = vadd.f32 %v1816, %v1860
      %v1869 = vadd.f32 %v1817, %v1861
      %v1870 = vadd.f32 %v1818, %v1862
      %1871 = vset.pattern.permute.xlu0 9
      %1872 = vperm.xlu0 %1871, %v1393
      %v1873 = vpop.permute.xlu0 %1872
      %1875 = vset.pattern.permute.xlu0 9
      %1876 = vperm.xlu0 %1875, %v1394
      %v1877 = vpop.permute.xlu0 %1876
      %1879 = vset.pattern.permute.xlu0 9
      %1880 = vperm.xlu0 %1879, %v1395
      %v1881 = vpop.permute.xlu0 %1880
      %1883 = vset.pattern.permute.xlu0 9
      %1884 = vperm.xlu0 %1883, %v1396
      %v1885 = vpop.permute.xlu0 %1884
      %1887 = vset.pattern.permute.xlu0 9
      %1888 = vperm.xlu0 %1887, %v1397
      %v1889 = vpop.permute.xlu0 %1888
      %1891 = vset.pattern.permute.xlu0 9
      %1892 = vperm.xlu0 %1891, %v1398
      %v1893 = vpop.permute.xlu0 %1892
      %1895 = vset.pattern.permute.xlu0 9
      %1896 = vperm.xlu0 %1895, %v1399
      %v1897 = vpop.permute.xlu0 %1896
      %1899 = vset.pattern.permute.xlu0 9
      %1900 = vperm.xlu0 %1899, %v1400
      %v1901 = vpop.permute.xlu0 %1900
      %v1903 = vlaneseq
      %v1904 = vshrl.u32 %v1903, 7
      %v1905 = vsub.s32 1, %v1904
      %v1906 = vrot.slane %v1402, %v1905
      %v1907 = vmul.f32 %v1873, %v1906
      %v1908 = vmul.f32 %v1877, %v1906
      %v1909 = vmul.f32 %v1881, %v1906
      %v1910 = vmul.f32 %v1885, %v1906
      %v1911 = vmul.f32 %v1889, %v1906
      %v1912 = vmul.f32 %v1893, %v1906
      %v1913 = vmul.f32 %v1897, %v1906
      %v1914 = vmul.f32 %v1901, %v1906
      %v1915 = vadd.f32 %v1863, %v1907
      %v1916 = vadd.f32 %v1864, %v1908
      %v1917 = vadd.f32 %v1865, %v1909
      %v1918 = vadd.f32 %v1866, %v1910
      %v1919 = vadd.f32 %v1867, %v1911
      %v1920 = vadd.f32 %v1868, %v1912
      %v1921 = vadd.f32 %v1869, %v1913
      %v1922 = vadd.f32 %v1870, %v1914
      %1923 = vset.pattern.permute.xlu0 10
      %1924 = vperm.xlu0 %1923, %v1393
      %v1925 = vpop.permute.xlu0 %1924
      %1927 = vset.pattern.permute.xlu0 10
      %1928 = vperm.xlu0 %1927, %v1394
      %v1929 = vpop.permute.xlu0 %1928
      %1931 = vset.pattern.permute.xlu0 10
      %1932 = vperm.xlu0 %1931, %v1395
      %v1933 = vpop.permute.xlu0 %1932
      %1935 = vset.pattern.permute.xlu0 10
      %1936 = vperm.xlu0 %1935, %v1396
      %v1937 = vpop.permute.xlu0 %1936
      %1939 = vset.pattern.permute.xlu0 10
      %1940 = vperm.xlu0 %1939, %v1397
      %v1941 = vpop.permute.xlu0 %1940
      %1943 = vset.pattern.permute.xlu0 10
      %1944 = vperm.xlu0 %1943, %v1398
      %v1945 = vpop.permute.xlu0 %1944
      %1947 = vset.pattern.permute.xlu0 10
      %1948 = vperm.xlu0 %1947, %v1399
      %v1949 = vpop.permute.xlu0 %1948
      %1951 = vset.pattern.permute.xlu0 10
      %1952 = vperm.xlu0 %1951, %v1400
      %v1953 = vpop.permute.xlu0 %1952
      %v1955 = vlaneseq
      %v1956 = vshrl.u32 %v1955, 7
      %v1957 = vsub.s32 2, %v1956
      %v1958 = vrot.slane %v1402, %v1957
      %v1959 = vmul.f32 %v1925, %v1958
      %v1960 = vmul.f32 %v1929, %v1958
      %v1961 = vmul.f32 %v1933, %v1958
      %v1962 = vmul.f32 %v1937, %v1958
      %v1963 = vmul.f32 %v1941, %v1958
      %v1964 = vmul.f32 %v1945, %v1958
      %v1965 = vmul.f32 %v1949, %v1958
      %v1966 = vmul.f32 %v1953, %v1958
      %v1967 = vadd.f32 %v1915, %v1959
      %v1968 = vadd.f32 %v1916, %v1960
      %v1969 = vadd.f32 %v1917, %v1961
      %v1970 = vadd.f32 %v1918, %v1962
      %v1971 = vadd.f32 %v1919, %v1963
      %v1972 = vadd.f32 %v1920, %v1964
      %v1973 = vadd.f32 %v1921, %v1965
      %v1974 = vadd.f32 %v1922, %v1966
      %1975 = vset.pattern.permute.xlu0 11
      %1976 = vperm.xlu0 %1975, %v1393
      %v1977 = vpop.permute.xlu0 %1976
      %1979 = vset.pattern.permute.xlu0 11
      %1980 = vperm.xlu0 %1979, %v1394
      %v1981 = vpop.permute.xlu0 %1980
      %1983 = vset.pattern.permute.xlu0 11
      %1984 = vperm.xlu0 %1983, %v1395
      %v1985 = vpop.permute.xlu0 %1984
      %1987 = vset.pattern.permute.xlu0 11
      %1988 = vperm.xlu0 %1987, %v1396
      %v1989 = vpop.permute.xlu0 %1988
      %1991 = vset.pattern.permute.xlu0 11
      %1992 = vperm.xlu0 %1991, %v1397
      %v1993 = vpop.permute.xlu0 %1992
      %1995 = vset.pattern.permute.xlu0 11
      %1996 = vperm.xlu0 %1995, %v1398
      %v1997 = vpop.permute.xlu0 %1996
      %1999 = vset.pattern.permute.xlu0 11
      %2000 = vperm.xlu0 %1999, %v1399
      %v2001 = vpop.permute.xlu0 %2000
      %2003 = vset.pattern.permute.xlu0 11
      %2004 = vperm.xlu0 %2003, %v1400
      %v2005 = vpop.permute.xlu0 %2004
      %v2007 = vlaneseq
      %v2008 = vshrl.u32 %v2007, 7
      %v2009 = vsub.s32 3, %v2008
      %v2010 = vrot.slane %v1402, %v2009
      %v2011 = vmul.f32 %v1977, %v2010
      %v2012 = vmul.f32 %v1981, %v2010
      %v2013 = vmul.f32 %v1985, %v2010
      %v2014 = vmul.f32 %v1989, %v2010
      %v2015 = vmul.f32 %v1993, %v2010
      %v2016 = vmul.f32 %v1997, %v2010
      %v2017 = vmul.f32 %v2001, %v2010
      %v2018 = vmul.f32 %v2005, %v2010
      %v2019 = vadd.f32 %v1967, %v2011
      %v2020 = vadd.f32 %v1968, %v2012
      %v2021 = vadd.f32 %v1969, %v2013
      %v2022 = vadd.f32 %v1970, %v2014
      %v2023 = vadd.f32 %v1971, %v2015
      %v2024 = vadd.f32 %v1972, %v2016
      %v2025 = vadd.f32 %v1973, %v2017
      %v2026 = vadd.f32 %v1974, %v2018
      %2027 = vset.pattern.permute.xlu0 12
      %2028 = vperm.xlu0 %2027, %v1393
      %v2029 = vpop.permute.xlu0 %2028
      %2031 = vset.pattern.permute.xlu0 12
      %2032 = vperm.xlu0 %2031, %v1394
      %v2033 = vpop.permute.xlu0 %2032
      %2035 = vset.pattern.permute.xlu0 12
      %2036 = vperm.xlu0 %2035, %v1395
      %v2037 = vpop.permute.xlu0 %2036
      %2039 = vset.pattern.permute.xlu0 12
      %2040 = vperm.xlu0 %2039, %v1396
      %v2041 = vpop.permute.xlu0 %2040
      %2043 = vset.pattern.permute.xlu0 12
      %2044 = vperm.xlu0 %2043, %v1397
      %v2045 = vpop.permute.xlu0 %2044
      %2047 = vset.pattern.permute.xlu0 12
      %2048 = vperm.xlu0 %2047, %v1398
      %v2049 = vpop.permute.xlu0 %2048
      %2051 = vset.pattern.permute.xlu0 12
      %2052 = vperm.xlu0 %2051, %v1399
      %v2053 = vpop.permute.xlu0 %2052
      %2055 = vset.pattern.permute.xlu0 12
      %2056 = vperm.xlu0 %2055, %v1400
      %v2057 = vpop.permute.xlu0 %2056
      %v2059 = vlaneseq
      %v2060 = vshrl.u32 %v2059, 7
      %v2061 = vsub.s32 4, %v2060
      %v2062 = vrot.slane %v1402, %v2061
      %v2063 = vmul.f32 %v2029, %v2062
      %v2064 = vmul.f32 %v2033, %v2062
      %v2065 = vmul.f32 %v2037, %v2062
      %v2066 = vmul.f32 %v2041, %v2062
      %v2067 = vmul.f32 %v2045, %v2062
      %v2068 = vmul.f32 %v2049, %v2062
      %v2069 = vmul.f32 %v2053, %v2062
      %v2070 = vmul.f32 %v2057, %v2062
      %v2071 = vadd.f32 %v2019, %v2063
      %v2072 = vadd.f32 %v2020, %v2064
      %v2073 = vadd.f32 %v2021, %v2065
      %v2074 = vadd.f32 %v2022, %v2066
      %v2075 = vadd.f32 %v2023, %v2067
      %v2076 = vadd.f32 %v2024, %v2068
      %v2077 = vadd.f32 %v2025, %v2069
      %v2078 = vadd.f32 %v2026, %v2070
      %2079 = vset.pattern.permute.xlu0 13
      %2080 = vperm.xlu0 %2079, %v1393
      %v2081 = vpop.permute.xlu0 %2080
      %2083 = vset.pattern.permute.xlu0 13
      %2084 = vperm.xlu0 %2083, %v1394
      %v2085 = vpop.permute.xlu0 %2084
      %2087 = vset.pattern.permute.xlu0 13
      %2088 = vperm.xlu0 %2087, %v1395
      %v2089 = vpop.permute.xlu0 %2088
      %2091 = vset.pattern.permute.xlu0 13
      %2092 = vperm.xlu0 %2091, %v1396
      %v2093 = vpop.permute.xlu0 %2092
      %2095 = vset.pattern.permute.xlu0 13
      %2096 = vperm.xlu0 %2095, %v1397
      %v2097 = vpop.permute.xlu0 %2096
      %2099 = vset.pattern.permute.xlu0 13
      %2100 = vperm.xlu0 %2099, %v1398
      %v2101 = vpop.permute.xlu0 %2100
      %2103 = vset.pattern.permute.xlu0 13
      %2104 = vperm.xlu0 %2103, %v1399
      %v2105 = vpop.permute.xlu0 %2104
      %2107 = vset.pattern.permute.xlu0 13
      %2108 = vperm.xlu0 %2107, %v1400
      %v2109 = vpop.permute.xlu0 %2108
      %v2111 = vlaneseq
      %v2112 = vshrl.u32 %v2111, 7
      %v2113 = vsub.s32 5, %v2112
      %v2114 = vrot.slane %v1402, %v2113
      %v2115 = vmul.f32 %v2081, %v2114
      %v2116 = vmul.f32 %v2085, %v2114
      %v2117 = vmul.f32 %v2089, %v2114
      %v2118 = vmul.f32 %v2093, %v2114
      %v2119 = vmul.f32 %v2097, %v2114
      %v2120 = vmul.f32 %v2101, %v2114
      %v2121 = vmul.f32 %v2105, %v2114
      %v2122 = vmul.f32 %v2109, %v2114
      %v2123 = vadd.f32 %v2071, %v2115
      %v2124 = vadd.f32 %v2072, %v2116
      %v2125 = vadd.f32 %v2073, %v2117
      %v2126 = vadd.f32 %v2074, %v2118
      %v2127 = vadd.f32 %v2075, %v2119
      %v2128 = vadd.f32 %v2076, %v2120
      %v2129 = vadd.f32 %v2077, %v2121
      %v2130 = vadd.f32 %v2078, %v2122
      %2131 = vset.pattern.permute.xlu0 14
      %2132 = vperm.xlu0 %2131, %v1393
      %v2133 = vpop.permute.xlu0 %2132
      %2135 = vset.pattern.permute.xlu0 14
      %2136 = vperm.xlu0 %2135, %v1394
      %v2137 = vpop.permute.xlu0 %2136
      %2139 = vset.pattern.permute.xlu0 14
      %2140 = vperm.xlu0 %2139, %v1395
      %v2141 = vpop.permute.xlu0 %2140
      %2143 = vset.pattern.permute.xlu0 14
      %2144 = vperm.xlu0 %2143, %v1396
      %v2145 = vpop.permute.xlu0 %2144
      %2147 = vset.pattern.permute.xlu0 14
      %2148 = vperm.xlu0 %2147, %v1397
      %v2149 = vpop.permute.xlu0 %2148
      %2151 = vset.pattern.permute.xlu0 14
      %2152 = vperm.xlu0 %2151, %v1398
      %v2153 = vpop.permute.xlu0 %2152
      %2155 = vset.pattern.permute.xlu0 14
      %2156 = vperm.xlu0 %2155, %v1399
      %v2157 = vpop.permute.xlu0 %2156
      %2159 = vset.pattern.permute.xlu0 14
      %2160 = vperm.xlu0 %2159, %v1400
      %v2161 = vpop.permute.xlu0 %2160
      %v2163 = vlaneseq
      %v2164 = vshrl.u32 %v2163, 7
      %v2165 = vsub.s32 6, %v2164
      %v2166 = vrot.slane %v1402, %v2165
      %v2167 = vmul.f32 %v2133, %v2166
      %v2168 = vmul.f32 %v2137, %v2166
      %v2169 = vmul.f32 %v2141, %v2166
      %v2170 = vmul.f32 %v2145, %v2166
      %v2171 = vmul.f32 %v2149, %v2166
      %v2172 = vmul.f32 %v2153, %v2166
      %v2173 = vmul.f32 %v2157, %v2166
      %v2174 = vmul.f32 %v2161, %v2166
      %v2175 = vadd.f32 %v2123, %v2167
      %v2176 = vadd.f32 %v2124, %v2168
      %v2177 = vadd.f32 %v2125, %v2169
      %v2178 = vadd.f32 %v2126, %v2170
      %v2179 = vadd.f32 %v2127, %v2171
      %v2180 = vadd.f32 %v2128, %v2172
      %v2181 = vadd.f32 %v2129, %v2173
      %v2182 = vadd.f32 %v2130, %v2174
      %2183 = vset.pattern.permute.xlu0 15
      %2184 = vperm.xlu0 %2183, %v1393
      %v2185 = vpop.permute.xlu0 %2184
      %2187 = vset.pattern.permute.xlu0 15
      %2188 = vperm.xlu0 %2187, %v1394
      %v2189 = vpop.permute.xlu0 %2188
      %2191 = vset.pattern.permute.xlu0 15
      %2192 = vperm.xlu0 %2191, %v1395
      %v2193 = vpop.permute.xlu0 %2192
      %2195 = vset.pattern.permute.xlu0 15
      %2196 = vperm.xlu0 %2195, %v1396
      %v2197 = vpop.permute.xlu0 %2196
      %2199 = vset.pattern.permute.xlu0 15
      %2200 = vperm.xlu0 %2199, %v1397
      %v2201 = vpop.permute.xlu0 %2200
      %2203 = vset.pattern.permute.xlu0 15
      %2204 = vperm.xlu0 %2203, %v1398
      %v2205 = vpop.permute.xlu0 %2204
      %2207 = vset.pattern.permute.xlu0 15
      %2208 = vperm.xlu0 %2207, %v1399
      %v2209 = vpop.permute.xlu0 %2208
      %2211 = vset.pattern.permute.xlu0 15
      %2212 = vperm.xlu0 %2211, %v1400
      %v2213 = vpop.permute.xlu0 %2212
      %v2215 = vlaneseq
      %v2216 = vshrl.u32 %v2215, 7
      %v2217 = vsub.s32 7, %v2216
      %v2218 = vrot.slane %v1402, %v2217
      %v2219 = vmul.f32 %v2185, %v2218
      %v2220 = vmul.f32 %v2189, %v2218
      %v2221 = vmul.f32 %v2193, %v2218
      %v2222 = vmul.f32 %v2197, %v2218
      %v2223 = vmul.f32 %v2201, %v2218
      %v2224 = vmul.f32 %v2205, %v2218
      %v2225 = vmul.f32 %v2209, %v2218
      %v2226 = vmul.f32 %v2213, %v2218
      %v2227 = vadd.f32 %v2175, %v2219
      %v2228 = vadd.f32 %v2176, %v2220
      %v2229 = vadd.f32 %v2177, %v2221
      %v2230 = vadd.f32 %v2178, %v2222
      %v2231 = vadd.f32 %v2179, %v2223
      %v2232 = vadd.f32 %v2180, %v2224
      %v2233 = vadd.f32 %v2181, %v2225
      %v2234 = vadd.f32 %v2182, %v2226
      %v2235 = vld [vmem:[%s12] sm:$0x1]
      %v2237 = vlaneseq
      %v2238 = vshrl.u32 %v2237, 7
      %v2239 = vsub.s32 0, %v2238
      %v2240 = vrot.slane %v2235, %v2239
      %v2242 = vmul.f32 %v2227, %v2240
      %v2243 = vmul.f32 %v2228, %v2240
      %v2244 = vmul.f32 %v2229, %v2240
      %v2245 = vmul.f32 %v2230, %v2240
      %v2246 = vmul.f32 %v2231, %v2240
      %v2247 = vmul.f32 %v2232, %v2240
      %v2248 = vmul.f32 %v2233, %v2240
      %v2249 = vmul.f32 %v2234, %v2240
      %v2250 = vld [vmem:[%s13] sm:$0x1]
      %v2252 = vlaneseq
      %v2253 = vshrl.u32 %v2252, 7
      %v2254 = vsub.s32 0, %v2253
      %v2255 = vrot.slane %v2250, %v2254
      %v2257 = vadd.f32 %v2242, %v2255
      %v2258 = vadd.f32 %v2243, %v2255
      %v2259 = vadd.f32 %v2244, %v2255
      %v2260 = vadd.f32 %v2245, %v2255
      %v2261 = vadd.f32 %v2246, %v2255
      %v2262 = vadd.f32 %v2247, %v2255
      %v2263 = vadd.f32 %v2248, %v2255
      %v2264 = vadd.f32 %v2249, %v2255
      %v2265 = vadd.f32 %v2257, %v468
      %v2266 = vadd.f32 %v2258, %v469
      %v2267 = vadd.f32 %v2259, %v470
      %v2268 = vadd.f32 %v2260, %v471
      %v2269 = vadd.f32 %v2261, %v472
      %v2270 = vadd.f32 %v2262, %v473
      %v2271 = vadd.f32 %v2263, %v474
      %v2272 = vadd.f32 %v2264, %v475
      %vm2273 = vcmask 64512
      %2274 = vst.msk [vmem:[%s467] sm:$0xff] %vm2273, %v2265
      %2275 = vst.msk [vmem:[%s467 + $0x8] sm:$0xff] %vm2273, %v2266
      %2276 = vst.msk [vmem:[%s467 + $0x10] sm:$0xff] %vm2273, %v2267
      %2277 = vst.msk [vmem:[%s467 + $0x18] sm:$0xff] %vm2273, %v2268
      %2278 = vst.msk [vmem:[%s467 + $0x20] sm:$0xff] %vm2273, %v2269
      %2279 = vst.msk [vmem:[%s467 + $0x28] sm:$0xff] %vm2273, %v2270
      %2280 = vst.msk [vmem:[%s467 + $0x30] sm:$0xff] %vm2273, %v2271
      %2281 = vst.msk [vmem:[%s467 + $0x38] sm:$0xff] %vm2273, %v2272
      %p2282 = scmp.lt.s32.totalorder %s25, 1
      %s2283 = scalar_select %p2282, %s25, 1
      %s2284 = smul.addr %s2283, 8
      %s2285 = smul.addr %s2284, 8
      %s2286 = scalar_lea.vmem %s14, %s2285
      // Predicated region
      $region77: #{_lambda_.5} parent=75 // pred_check
        %p2287 = pneg %p342
      $region78: #{_lambda_.5} parent=75 // pred_check_branch
        %2289 = sbr.rel (%p2287) target = $region80
      $region79: #{_lambda_.5} parent=75 // pred_region
        _
      $region80: #{_lambda_.5} parent=75 // pred_fallthru
        _
    $region76: #{_lambda_.5} parent=5 // pred_fallthru
      _
    %p2290 = scmp.le.s32.totalorder 2, %s20
    // Predicated region
    $region81: #{_lambda_.5} parent=5 // pred_check
      %p2291 = pneg %p2290
    $region82: #{_lambda_.5} parent=5 // pred_check_branch
      %2293 = sbr.rel (%p2291) target = $region84
    $region83: #{_lambda_.5} parent=5 // pred_region
      %s2294 = ssub.s32 %s20, 2
      // Predicated region
      $region85: #{_lambda_.5} parent=83 // pred_check
        %p2295 = pneg %p348
      $region86: #{_lambda_.5} parent=83 // pred_check_branch
        %2297 = sbr.rel (%p2295) target = $region88
      $region87: #{_lambda_.5} parent=83 // pred_region
        %p2298 = scmp.lt.s32.totalorder %s26, 1
        %s2299 = scalar_select %p2298, %s26, 1
        %s2300 = smul.addr %s2299, 8
        %s2301 = smul.addr %s2300, 8
        %s2302 = scalar_lea.vmem %s14, %s2301
      $region88: #{_lambda_.5} parent=83 // pred_fallthru
        _
    $region84: #{_lambda_.5} parent=5 // pred_fallthru
      _
  $region6: #{_lambda_.5} parent=0 // loop_footer
    %s24 = sadd.s32 1, %s20
  $region7: #{_lambda_.5} parent=0 // loop_footer_branch
    %19 = sbr.rel target = $region3
  $region8: #{_lambda_.5} parent=0 // loop_exit
    _

</llo_original>
